<compile_context>
chip_gen: v6e
topology: v6e:2x2x1
jax: 0.10.0
libtpu: 0.0.40
codegen_flags: <defaults>
</compile_context>

<pallas_src>
import functools

import jax
import jax.numpy as jnp
from jax.experimental import pallas as pl
from jax.experimental.pallas import tpu as pltpu

BN_EPS = 1e-5
_F32 = jnp.float32


def _pick_row_tile(n_rows, target=8):
    """Row-tile height: a multiple of 8 (sublane granularity) dividing n_rows,
    else the full extent (block dims must divide by 8 or span the array)."""
    if n_rows > target and n_rows % target == 0 and target % 8 == 0:
        return target
    return n_rows


def _make_stage_kernel(*, C_in, C_out, K, stride, pad, TH, OW, Hq, Q,
                       H_in, W_in, in_kernel_pad, fuse_affine):
    """Fused depthwise-KxK + pointwise-1x1 stage producing pre-BN activations
    plus per-(channel, column) sum / sum-of-squares for the cross-tile BN."""
    s = stride

    def _compute(src, wdw_ref, wpw_ref, y_ref, sum_ref, ssq_ref, t):
        base = pl.multiple_of(t * TH, TH)

        # ---- depthwise KxK: per input channel, K*K scalar-weighted windows
        # (channel planes are separate tiles; lane offsets are only kw-sized).
        dw = []
        for ci in range(C_in):
            acc = jnp.zeros((TH, OW), _F32)
            for kh in range(K):
                row0 = (kh % s) * Hq + base + (kh // s)
                for kw in range(K):
                    lane0 = (kw % s) * Q + (kw // s)
                    patch = src[ci, pl.ds(row0, TH), pl.ds(lane0, OW)]
                    acc = acc + patch * wdw_ref[(kh * K + kw) * C_in + ci]
            dw.append(acc)

        @pl.when(t == 0)
        def _init_stats():
            sum_ref[...] = jnp.zeros_like(sum_ref)
            ssq_ref[...] = jnp.zeros_like(ssq_ref)

        # ---- pointwise 1x1: C_in scalar-broadcast VPU MACs per output channel
        # (no MXU, no kron, no lane permutes) + per-channel BN stat accumulation.
        for co in range(C_out):
            y = dw[0] * wpw_ref[co]
            for ci in range(1, C_in):
                y = y + dw[ci] * wpw_ref[ci * C_out + co]
            y_ref[co] = y
            sum_ref[co] += jnp.sum(y, axis=0)
            ssq_ref[co] += jnp.sum(y * y, axis=0)

    if not in_kernel_pad:
        # Stride > 1: wrapper pre-padded + stride-phase-split the input, so
        # every tap is a contiguous window; no scratch needed.
        def kernel(x_ref, wdw_ref, wpw_ref, y_ref, sum_ref, ssq_ref):
            _compute(x_ref, wdw_ref, wpw_ref, y_ref, sum_ref, ssq_ref,
                     pl.program_id(1))
        return kernel

    if fuse_affine:
        # Stage 2: apply the previous stage's BatchNorm+ReLU (per-channel SMEM
        # scale/shift scalars) while building the zero-padded working copy.
        def kernel(x_ref, wdw_ref, wpw_ref, scale_ref, shift_ref,
                   y_ref, sum_ref, ssq_ref, pad_ref):
            t = pl.program_id(1)

            @pl.when(t == 0)
            def _prep():
                pad_ref[...] = jnp.zeros_like(pad_ref)
                for c in range(C_in):
                    h = x_ref[c] * scale_ref[c] + shift_ref[c]
                    pad_ref[c, pl.ds(pad, H_in), pl.ds(pad, W_in)] = \
                        jnp.maximum(h, 0.0)

            _compute(pad_ref, wdw_ref, wpw_ref, y_ref, sum_ref, ssq_ref, t)
        return kernel

    # Stage 1, stride == 1: zero padding fused into the kernel (no HBM pad).
    def kernel(x_ref, wdw_ref, wpw_ref, y_ref, sum_ref, ssq_ref, pad_ref):
        t = pl.program_id(1)

        @pl.when(t == 0)
        def _prep():
            pad_ref[...] = jnp.zeros_like(pad_ref)
            for c in range(C_in):
                pad_ref[c, pl.ds(pad, H_in), pl.ds(pad, W_in)] = x_ref[c]

        _compute(pad_ref, wdw_ref, wpw_ref, y_ref, sum_ref, ssq_ref, t)
    return kernel


def _run_stage(x, wdw_flat, wpw_flat, *, C_out, K, stride, pad,
               scale=None, shift=None):
    """One SepConv stage on NCHW input.  Returns pre-BN activations
    (N, C_out, OH, OW) plus per-(n, c, w) sum and sum-of-squares.

    If scale/shift are given, the previous stage's BN+ReLU is applied on the
    fly while the padded working copy is built (the intermediate lives in HBM
    once, pre-BN, unpadded, NCHW)."""
    N, C_in, H_in, W_in = x.shape
    s, p = stride, pad
    Hp, Wp = H_in + 2 * p, W_in + 2 * p
    OH = (Hp - K) // s + 1
    OW = (Wp - K) // s + 1

    fuse_affine = scale is not None
    in_kernel_pad = (s == 1)          # stride > 1 -> wrapper-side phase split
    assert not (fuse_affine and not in_kernel_pad)

    if in_kernel_pad:
        x_in = x
        Hq, Q = Hp, Wp
        rows, lanes = H_in, W_in
    else:
        # Pad and split H/W into `stride` phases so every depthwise tap is a
        # contiguous (rows, lanes) window (no strided / gathered loads).
        Hq, Q = -(-Hp // s), -(-Wp // s)
        xpad = jnp.pad(x, ((0, 0), (0, 0),
                           (p, p + Hq * s - Hp), (p, p + Q * s - Wp)))
        xph = xpad.reshape(N, C_in, Hq, s, Q, s).transpose(0, 1, 3, 2, 5, 4)
        x_in = xph.reshape(N, C_in, s * Hq, s * Q)
        rows, lanes = s * Hq, s * Q

    TH = _pick_row_tile(OH)
    T = OH // TH

    kern = _make_stage_kernel(C_in=C_in, C_out=C_out, K=K, stride=s, pad=p,
                              TH=TH, OW=OW, Hq=Hq, Q=Q, H_in=H_in, W_in=W_in,
                              in_kernel_pad=in_kernel_pad,
                              fuse_affine=fuse_affine)

    smem = pl.BlockSpec(memory_space=pltpu.MemorySpace.SMEM)
    in_specs = [
        pl.BlockSpec((None, C_in, rows, lanes), lambda n, t: (n, 0, 0, 0)),
        smem,   # flattened depthwise weights (K*K*C_in,)
        smem,   # flattened pointwise weights (C_in*C_out,)
    ]
    inputs = [x_in, wdw_flat, wpw_flat]
    if fuse_affine:
        in_specs += [smem, smem]
        inputs += [scale.astype(_F32), shift.astype(_F32)]

    out_shape = (
        jax.ShapeDtypeStruct((N, C_out, OH, OW), _F32),   # pre-BN activations
        jax.ShapeDtypeStruct((N, C_out, OW), _F32),       # per-(c, w) sum
        jax.ShapeDtypeStruct((N, C_out, OW), _F32),       # per-(c, w) sum sq
    )
    out_specs = (
        pl.BlockSpec((None, C_out, TH, OW), lambda n, t: (n, 0, t, 0)),
        pl.BlockSpec((None, C_out, OW), lambda n, t: (n, 0, 0)),
        pl.BlockSpec((None, C_out, OW), lambda n, t: (n, 0, 0)),
    )
    scratch_shapes = []
    if in_kernel_pad:
        scratch_shapes = [pltpu.VMEM((C_in, Hp, Wp), _F32)]

    y, lane_sum, lane_ssq = pl.pallas_call(
        kern,
        out_shape=out_shape,
        grid_spec=pltpu.PrefetchScalarGridSpec(
            num_scalar_prefetch=0, grid=(N, T),
            in_specs=in_specs, out_specs=out_specs,
            scratch_shapes=scratch_shapes),
        compiler_params=pltpu.CompilerParams(
            dimension_semantics=("parallel", "arbitrary")),
    )(*inputs)
    return y, lane_sum, lane_ssq


def _bn_scale_shift(lane_sum, lane_ssq, gamma, beta, count):
    """Finalize the cross-tile BN reduction into per-channel scale/shift."""
    ch_sum = lane_sum.sum(axis=(0, 2))
    ch_ssq = lane_ssq.sum(axis=(0, 2))
    mean = ch_sum / count
    var = jnp.maximum(ch_ssq / count - mean * mean, 0.0)  # biased (training BN)
    scale = gamma * jax.lax.rsqrt(var + BN_EPS)
    shift = beta - mean * scale
    return scale, shift


def _make_bn_relu_kernel(C):
    def kernel(x_ref, scale_ref, shift_ref, o_ref):
        for c in range(C):
            o_ref[c] = jnp.maximum(x_ref[c] * scale_ref[c] + shift_ref[c], 0.0)
    return kernel


def _apply_bn_relu(y, scale, shift):
    """Final BatchNorm+ReLU; input and output are already NCHW (no transposes)."""
    N, C, OH, OW = y.shape
    TH = _pick_row_tile(OH)
    T = OH // TH
    smem = pl.BlockSpec(memory_space=pltpu.MemorySpace.SMEM)
    return pl.pallas_call(
        _make_bn_relu_kernel(C),
        out_shape=jax.ShapeDtypeStruct((N, C, OH, OW), _F32),
        grid_spec=pltpu.PrefetchScalarGridSpec(
            num_scalar_prefetch=0, grid=(N, T),
            in_specs=[pl.BlockSpec((None, C, TH, OW),
                                   lambda n, t: (n, 0, t, 0)),
                      smem, smem],
            out_specs=pl.BlockSpec((None, C, TH, OW),
                                   lambda n, t: (n, 0, t, 0))),
        compiler_params=pltpu.CompilerParams(
            dimension_semantics=("parallel", "arbitrary")),
    )(y, scale.astype(_F32), shift.astype(_F32))


def prepare_params(params):
    """One-time, parameter-only prep OUTSIDE the jitted forward: flatten conv
    weights so the kernels read them as SMEM scalars (no per-call tiling/kron)."""
    return {
        "w_dw1": params["w_dw1"].astype(_F32).reshape(-1),  # (K*K*C_in,)
        "w_pw1": params["w_pw1"].astype(_F32).reshape(-1),  # (C_in*C_in,)
        "w_dw2": params["w_dw2"].astype(_F32).reshape(-1),  # (K*K*C_in,)
        "w_pw2": params["w_pw2"].astype(_F32).reshape(-1),  # (C_in*C_out,)
        "g1": params["g1"].astype(_F32), "b1": params["b1"].astype(_F32),
        "g2": params["g2"].astype(_F32), "b2": params["b2"].astype(_F32),
    }


@functools.partial(jax.jit, static_argnames=("kernel_size", "stride", "padding"))
def sepconv_forward(x_nchw, prepared, *, kernel_size, stride, padding):
    """SepConv forward.  x_nchw: (N, C_in, H, W) -> (N, C_out, OH, OW)."""
    x = x_nchw.astype(_F32)
    N, C_in, _, _ = x.shape
    C_out = prepared["w_pw2"].shape[0] // C_in
    K = kernel_size

    # ---- stage 1: dw(K, stride) + 1x1(C_in->C_in); BN stats per image tile.
    y1, s1, q1 = _run_stage(x, prepared["w_dw1"], prepared["w_pw1"],
                            C_out=C_in, K=K, stride=stride, pad=padding)
    OH1, OW1 = y1.shape[2], y1.shape[3]
    scale1, shift1 = _bn_scale_shift(s1, q1, prepared["g1"], prepared["b1"],
                                     N * OH1 * OW1)

    # ---- stage 2: BN1+ReLU folded into the padded-copy prep; dw(K,1)+1x1(->C_out).
    y2, s2, q2 = _run_stage(y1, prepared["w_dw2"], prepared["w_pw2"],
                            C_out=C_out, K=K, stride=1, pad=padding,
                            scale=scale1, shift=shift1)
    OH2, OW2 = y2.shape[2], y2.shape[3]
    scale2, shift2 = _bn_scale_shift(s2, q2, prepared["g2"], prepared["b2"],
                                     N * OH2 * OW2)

    # ---- finalize: BN2 + ReLU; output is already NCHW.
    return _apply_bn_relu(y2, scale2, shift2)


def init_params(key, C_in, C_out, K):
    """Deterministic init mirroring _initialize_weights (kaiming fan_out, relu)."""
    k1, k2, k3, k4 = jax.random.split(key, 4)
    std_dw = (2.0 / (C_in * K * K)) ** 0.5
    std_pw1 = (2.0 / C_in) ** 0.5
    std_pw2 = (2.0 / C_out) ** 0.5
    return {
        "w_dw1": jax.random.normal(k1, (K, K, C_in), _F32) * std_dw,
        "w_pw1": jax.random.normal(k2, (C_in, C_in), _F32) * std_pw1,
        "w_dw2": jax.random.normal(k3, (K, K, C_in), _F32) * std_dw,
        "w_pw2": jax.random.normal(k4, (C_in, C_out), _F32) * std_pw2,
        "g1": jnp.ones((C_in,), _F32), "b1": jnp.zeros((C_in,), _F32),
        "g2": jnp.ones((C_out,), _F32), "b2": jnp.zeros((C_out,), _F32),
    }


def _ref_sepconv(x_nchw, params, *, kernel_size, stride, padding):
    """Pure-JAX reference (lax.conv_general_dilated) for correctness check."""
    x = jnp.transpose(x_nchw, (0, 2, 3, 1)).astype(_F32)
    K = kernel_size

    def dw(x, w, s):
        C = x.shape[-1]
        return jax.lax.conv_general_dilated(
            x, w.reshape(K, K, 1, C), (s, s),
            [(padding, padding), (padding, padding)],
            dimension_numbers=("NHWC", "HWIO", "NHWC"),
            feature_group_count=C)

    def pw(x, w):
        return jnp.einsum("nhwc,cd->nhwd", x, w)

    def bn_relu(x, g, b):
        m = x.mean((0, 1, 2), keepdims=True)
        v = ((x - m) ** 2).mean((0, 1, 2), keepdims=True)
        return jnp.maximum((x - m) * jax.lax.rsqrt(v + BN_EPS) * g + b, 0.0)

    h = bn_relu(pw(dw(x, params["w_dw1"], stride), params["w_pw1"]),
                params["g1"], params["b1"])
    h = bn_relu(pw(dw(h, params["w_dw2"], 1), params["w_pw2"]),
                params["g2"], params["b2"])
    return jnp.transpose(h, (0, 3, 1, 2))


if __name__ == "__main__":
    N, C_in, C_out, H, W = 2, 4, 8, 16, 16
    K, pad = 3, 1

    key = jax.random.PRNGKey(0)
    kx, kp = jax.random.split(key)
    x = jax.random.normal(kx, (N, C_in, H, W), _F32)
    params = init_params(kp, C_in, C_out, K)
    prepared = prepare_params(params)          # parameter-only prep, outside jit

    for stride in (1, 2):   # stride=2 exercises the phase-split strided path
        out = sepconv_forward(x, prepared, kernel_size=K, stride=stride,
                              padding=pad)
        out = jax.block_until_ready(out)
        ref = _ref_sepconv(x, params, kernel_size=K, stride=stride,
                           padding=pad)
        OH = (H + 2 * pad - K) // stride + 1
        assert out.shape == (N, C_out, OH, OH), (stride, out.shape)
        err = float(jnp.max(jnp.abs(out - ref)))
        assert jnp.allclose(out, ref, atol=1e-3, rtol=1e-3), (stride, err)

    print("KERNEL_OK")
</pallas_src>

<mosaic_0001>
module attributes {stable_mosaic.version = 11 : i64} {
  func.func @kernel(%arg0: i32, %arg1: i32, %arg2: memref<1x4x16x16xf32, #tpu.memory_space<vmem>>, %arg3: memref<36xf32, #tpu.memory_space<smem>>, %arg4: memref<16xf32, #tpu.memory_space<smem>>, %arg5: memref<1x4x8x16xf32, #tpu.memory_space<vmem>>, %arg6: memref<1x4x16xf32, #tpu.memory_space<vmem>>, %arg7: memref<1x4x16xf32, #tpu.memory_space<vmem>>, %arg8: memref<4x18x18xf32, #tpu.memory_space<vmem>>) attributes {dimension_semantics = [#tpu.dimension_semantics<parallel>, #tpu.dimension_semantics<arbitrary>], iteration_bounds = array<i64: 2, 2>, scalar_prefetch = 0 : i64, scratch_operands = 1 : i64, tpu.core_type = #tpu.core_type<tc>, window_params = [{transform_indices = @transform_0, window_bounds = array<i64: 1, 4, 16, 16>}, {transform_indices = @transform_1, window_bounds = array<i64: 36>}, {transform_indices = @transform_2, window_bounds = array<i64: 16>}, {transform_indices = @transform_3, window_bounds = array<i64: 1, 4, 8, 16>}, {transform_indices = @transform_4, window_bounds = array<i64: 1, 4, 16>}, {transform_indices = @transform_5, window_bounds = array<i64: 1, 4, 16>}]} {
    %c0_i32 = arith.constant 0 : i32
    %0 = arith.cmpi eq, %arg1, %c0_i32 : i32
    %1 = arith.extui %0 : i1 to i32
    %c0_i32_0 = arith.constant 0 : i32
    %2 = arith.cmpi ne, %1, %c0_i32_0 : i32
    scf.if %2 {
      %cst_188 = arith.constant 0.000000e+00 : f32
      %420 = vector.broadcast %cst_188 : f32 to vector<4x18x18xf32>
      %c0_189 = arith.constant 0 : index
      %c0_190 = arith.constant 0 : index
      %c0_191 = arith.constant 0 : index
      %421 = vector.load %arg8[%c0_189, %c0_190, %c0_191] : memref<4x18x18xf32, #tpu.memory_space<vmem>>, vector<4x18x18xf32>
      tpu.vector_store %arg8[%c0_189, %c0_190, %c0_191], %420 {strides = array<i32>} : memref<4x18x18xf32, #tpu.memory_space<vmem>>, vector<4x18x18xf32>,
      %c0_192 = arith.constant 0 : index
      %c0_193 = arith.constant 0 : index
      %c0_194 = arith.constant 0 : index
      %c0_195 = arith.constant 0 : index
      %422 = vector.load %arg2[%c0_192, %c0_193, %c0_194, %c0_195] : memref<1x4x16x16xf32, #tpu.memory_space<vmem>>, vector<1x1x16x16xf32>
      %423 = vector.shape_cast %422 : vector<1x1x16x16xf32> to vector<16x16xf32>
      %c0_196 = arith.constant 0 : index
      %c1_197 = arith.constant 1 : index
      %c1_198 = arith.constant 1 : index
      %424 = vector.load %arg8[%c0_196, %c1_197, %c1_198] : memref<4x18x18xf32, #tpu.memory_space<vmem>>, vector<1x16x16xf32>
      %425 = vector.shape_cast %424 : vector<1x16x16xf32> to vector<16x16xf32>
      %426 = vector.shape_cast %423 : vector<16x16xf32> to vector<1x16x16xf32>
      tpu.vector_store %arg8[%c0_196, %c1_197, %c1_198], %426 {strides = array<i32>} : memref<4x18x18xf32, #tpu.memory_space<vmem>>, vector<1x16x16xf32>,
      %c0_199 = arith.constant 0 : index
      %c1_200 = arith.constant 1 : index
      %c0_201 = arith.constant 0 : index
      %c0_202 = arith.constant 0 : index
      %427 = vector.load %arg2[%c0_199, %c1_200, %c0_201, %c0_202] : memref<1x4x16x16xf32, #tpu.memory_space<vmem>>, vector<1x1x16x16xf32>
      %428 = vector.shape_cast %427 : vector<1x1x16x16xf32> to vector<16x16xf32>
      %c1_203 = arith.constant 1 : index
      %c1_204 = arith.constant 1 : index
      %c1_205 = arith.constant 1 : index
      %429 = vector.load %arg8[%c1_203, %c1_204, %c1_205] : memref<4x18x18xf32, #tpu.memory_space<vmem>>, vector<1x16x16xf32>
      %430 = vector.shape_cast %429 : vector<1x16x16xf32> to vector<16x16xf32>
      %431 = vector.shape_cast %428 : vector<16x16xf32> to vector<1x16x16xf32>
      tpu.vector_store %arg8[%c1_203, %c1_204, %c1_205], %431 {strides = array<i32>} : memref<4x18x18xf32, #tpu.memory_space<vmem>>, vector<1x16x16xf32>,
      %c0_206 = arith.constant 0 : index
      %c2_207 = arith.constant 2 : index
      %c0_208 = arith.constant 0 : index
      %c0_209 = arith.constant 0 : index
      %432 = vector.load %arg2[%c0_206, %c2_207, %c0_208, %c0_209] : memref<1x4x16x16xf32, #tpu.memory_space<vmem>>, vector<1x1x16x16xf32>
      %433 = vector.shape_cast %432 : vector<1x1x16x16xf32> to vector<16x16xf32>
      %c2_210 = arith.constant 2 : index
      %c1_211 = arith.constant 1 : index
      %c1_212 = arith.constant 1 : index
      %434 = vector.load %arg8[%c2_210, %c1_211, %c1_212] : memref<4x18x18xf32, #tpu.memory_space<vmem>>, vector<1x16x16xf32>
      %435 = vector.shape_cast %434 : vector<1x16x16xf32> to vector<16x16xf32>
      %436 = vector.shape_cast %433 : vector<16x16xf32> to vector<1x16x16xf32>
      tpu.vector_store %arg8[%c2_210, %c1_211, %c1_212], %436 {strides = array<i32>} : memref<4x18x18xf32, #tpu.memory_space<vmem>>, vector<1x16x16xf32>,
      %c0_213 = arith.constant 0 : index
      %c3_214 = arith.constant 3 : index
      %c0_215 = arith.constant 0 : index
      %c0_216 = arith.constant 0 : index
      %437 = vector.load %arg2[%c0_213, %c3_214, %c0_215, %c0_216] : memref<1x4x16x16xf32, #tpu.memory_space<vmem>>, vector<1x1x16x16xf32>
      %438 = vector.shape_cast %437 : vector<1x1x16x16xf32> to vector<16x16xf32>
      %c3_217 = arith.constant 3 : index
      %c1_218 = arith.constant 1 : index
      %c1_219 = arith.constant 1 : index
      %439 = vector.load %arg8[%c3_217, %c1_218, %c1_219] : memref<4x18x18xf32, #tpu.memory_space<vmem>>, vector<1x16x16xf32>
      %440 = vector.shape_cast %439 : vector<1x16x16xf32> to vector<16x16xf32>
      %441 = vector.shape_cast %438 : vector<16x16xf32> to vector<1x16x16xf32>
      tpu.vector_store %arg8[%c3_217, %c1_218, %c1_219], %441 {strides = array<i32>} : memref<4x18x18xf32, #tpu.memory_space<vmem>>, vector<1x16x16xf32>,
    } else {
    }
    %c8_i32 = arith.constant 8 : i32
    %3 = arith.muli %arg1, %c8_i32 : i32
    %4 = tpu.assume_multiple %3, 8 : i32
    %cst = arith.constant 0.000000e+00 : f32
    %5 = vector.broadcast %cst : f32 to vector<8x16xf32>
    %c0_i32_1 = arith.constant 0 : i32
    %6 = arith.addi %c0_i32_1, %4 : i32
    %c0_i32_2 = arith.constant 0 : i32
    %7 = arith.addi %6, %c0_i32_2 : i32
    %c0 = arith.constant 0 : index
    %8 = arith.index_cast %7 : i32 to index
    %c0_3 = arith.constant 0 : index
    %9 = vector.load %arg8[%c0, %8, %c0_3] : memref<4x18x18xf32, #tpu.memory_space<vmem>>, vector<1x8x16xf32>
    %10 = vector.shape_cast %9 : vector<1x8x16xf32> to vector<8x16xf32>
    %c0_4 = arith.constant 0 : index
    %11 = memref.load %arg3[%c0_4] : memref<36xf32, #tpu.memory_space<smem>>
    %12 = vector.broadcast %11 : f32 to vector<8x16xf32>
    %13 = arith.mulf %10, %12 : vector<8x16xf32>
    %14 = arith.addf %5, %13 : vector<8x16xf32>
    %c0_5 = arith.constant 0 : index
    %15 = arith.index_cast %7 : i32 to index
    %c1 = arith.constant 1 : index
    %16 = vector.load %arg8[%c0_5, %15, %c1] : memref<4x18x18xf32, #tpu.memory_space<vmem>>, vector<1x8x16xf32>
    %17 = vector.shape_cast %16 : vector<1x8x16xf32> to vector<8x16xf32>
    %c4 = arith.constant 4 : index
    %18 = memref.load %arg3[%c4] : memref<36xf32, #tpu.memory_space<smem>>
    %19 = vector.broadcast %18 : f32 to vector<8x16xf32>
    %20 = arith.mulf %17, %19 : vector<8x16xf32>
    %21 = arith.addf %14, %20 : vector<8x16xf32>
    %c0_6 = arith.constant 0 : index
    %22 = arith.index_cast %7 : i32 to index
    %c2 = arith.constant 2 : index
    %23 = vector.load %arg8[%c0_6, %22, %c2] : memref<4x18x18xf32, #tpu.memory_space<vmem>>, vector<1x8x16xf32>
    %24 = vector.shape_cast %23 : vector<1x8x16xf32> to vector<8x16xf32>
    %c8 = arith.constant 8 : index
    %25 = memref.load %arg3[%c8] : memref<36xf32, #tpu.memory_space<smem>>
    %26 = vector.broadcast %25 : f32 to vector<8x16xf32>
    %27 = arith.mulf %24, %26 : vector<8x16xf32>
    %28 = arith.addf %21, %27 : vector<8x16xf32>
    %c0_i32_7 = arith.constant 0 : i32
    %29 = arith.addi %c0_i32_7, %4 : i32
    %c1_i32 = arith.constant 1 : i32
    %30 = arith.addi %29, %c1_i32 : i32
    %c0_8 = arith.constant 0 : index
    %31 = arith.index_cast %30 : i32 to index
    %c0_9 = arith.constant 0 : index
    %32 = vector.load %arg8[%c0_8, %31, %c0_9] : memref<4x18x18xf32, #tpu.memory_space<vmem>>, vector<1x8x16xf32>
    %33 = vector.shape_cast %32 : vector<1x8x16xf32> to vector<8x16xf32>
    %c12 = arith.constant 12 : index
    %34 = memref.load %arg3[%c12] : memref<36xf32, #tpu.memory_space<smem>>
    %35 = vector.broadcast %34 : f32 to vector<8x16xf32>
    %36 = arith.mulf %33, %35 : vector<8x16xf32>
    %37 = arith.addf %28, %36 : vector<8x16xf32>
    %c0_10 = arith.constant 0 : index
    %38 = arith.index_cast %30 : i32 to index
    %c1_11 = arith.constant 1 : index
    %39 = vector.load %arg8[%c0_10, %38, %c1_11] : memref<4x18x18xf32, #tpu.memory_space<vmem>>, vector<1x8x16xf32>
    %40 = vector.shape_cast %39 : vector<1x8x16xf32> to vector<8x16xf32>
    %c16 = arith.constant 16 : index
    %41 = memref.load %arg3[%c16] : memref<36xf32, #tpu.memory_space<smem>>
    %42 = vector.broadcast %41 : f32 to vector<8x16xf32>
    %43 = arith.mulf %40, %42 : vector<8x16xf32>
    %44 = arith.addf %37, %43 : vector<8x16xf32>
    %c0_12 = arith.constant 0 : index
    %45 = arith.index_cast %30 : i32 to index
    %c2_13 = arith.constant 2 : index
    %46 = vector.load %arg8[%c0_12, %45, %c2_13] : memref<4x18x18xf32, #tpu.memory_space<vmem>>, vector<1x8x16xf32>
    %47 = vector.shape_cast %46 : vector<1x8x16xf32> to vector<8x16xf32>
    %c20 = arith.constant 20 : index
    %48 = memref.load %arg3[%c20] : memref<36xf32, #tpu.memory_space<smem>>
    %49 = vector.broadcast %48 : f32 to vector<8x16xf32>
    %50 = arith.mulf %47, %49 : vector<8x16xf32>
    %51 = arith.addf %44, %50 : vector<8x16xf32>
    %c0_i32_14 = arith.constant 0 : i32
    %52 = arith.addi %c0_i32_14, %4 : i32
    %c2_i32 = arith.constant 2 : i32
    %53 = arith.addi %52, %c2_i32 : i32
    %c0_15 = arith.constant 0 : index
    %54 = arith.index_cast %53 : i32 to index
    %c0_16 = arith.constant 0 : index
    %55 = vector.load %arg8[%c0_15, %54, %c0_16] : memref<4x18x18xf32, #tpu.memory_space<vmem>>, vector<1x8x16xf32>
    %56 = vector.shape_cast %55 : vector<1x8x16xf32> to vector<8x16xf32>
    %c24 = arith.constant 24 : index
    %57 = memref.load %arg3[%c24] : memref<36xf32, #tpu.memory_space<smem>>
    %58 = vector.broadcast %57 : f32 to vector<8x16xf32>
    %59 = arith.mulf %56, %58 : vector<8x16xf32>
    %60 = arith.addf %51, %59 : vector<8x16xf32>
    %c0_17 = arith.constant 0 : index
    %61 = arith.index_cast %53 : i32 to index
    %c1_18 = arith.constant 1 : index
    %62 = vector.load %arg8[%c0_17, %61, %c1_18] : memref<4x18x18xf32, #tpu.memory_space<vmem>>, vector<1x8x16xf32>
    %63 = vector.shape_cast %62 : vector<1x8x16xf32> to vector<8x16xf32>
    %c28 = arith.constant 28 : index
    %64 = memref.load %arg3[%c28] : memref<36xf32, #tpu.memory_space<smem>>
    %65 = vector.broadcast %64 : f32 to vector<8x16xf32>
    %66 = arith.mulf %63, %65 : vector<8x16xf32>
    %67 = arith.addf %60, %66 : vector<8x16xf32>
    %c0_19 = arith.constant 0 : index
    %68 = arith.index_cast %53 : i32 to index
    %c2_20 = arith.constant 2 : index
    %69 = vector.load %arg8[%c0_19, %68, %c2_20] : memref<4x18x18xf32, #tpu.memory_space<vmem>>, vector<1x8x16xf32>
    %70 = vector.shape_cast %69 : vector<1x8x16xf32> to vector<8x16xf32>
    %c32 = arith.constant 32 : index
    %71 = memref.load %arg3[%c32] : memref<36xf32, #tpu.memory_space<smem>>
    %72 = vector.broadcast %71 : f32 to vector<8x16xf32>
    %73 = arith.mulf %70, %72 : vector<8x16xf32>
    %74 = arith.addf %67, %73 : vector<8x16xf32>
    %cst_21 = arith.constant 0.000000e+00 : f32
    %75 = vector.broadcast %cst_21 : f32 to vector<8x16xf32>
    %c0_i32_22 = arith.constant 0 : i32
    %76 = arith.addi %c0_i32_22, %4 : i32
    %c0_i32_23 = arith.constant 0 : i32
    %77 = arith.addi %76, %c0_i32_23 : i32
    %c1_24 = arith.constant 1 : index
    %78 = arith.index_cast %77 : i32 to index
    %c0_25 = arith.constant 0 : index
    %79 = vector.load %arg8[%c1_24, %78, %c0_25] : memref<4x18x18xf32, #tpu.memory_space<vmem>>, vector<1x8x16xf32>
    %80 = vector.shape_cast %79 : vector<1x8x16xf32> to vector<8x16xf32>
    %c1_26 = arith.constant 1 : index
    %81 = memref.load %arg3[%c1_26] : memref<36xf32, #tpu.memory_space<smem>>
    %82 = vector.broadcast %81 : f32 to vector<8x16xf32>
    %83 = arith.mulf %80, %82 : vector<8x16xf32>
    %84 = arith.addf %75, %83 : vector<8x16xf32>
    %c1_27 = arith.constant 1 : index
    %85 = arith.index_cast %77 : i32 to index
    %c1_28 = arith.constant 1 : index
    %86 = vector.load %arg8[%c1_27, %85, %c1_28] : memref<4x18x18xf32, #tpu.memory_space<vmem>>, vector<1x8x16xf32>
    %87 = vector.shape_cast %86 : vector<1x8x16xf32> to vector<8x16xf32>
    %c5 = arith.constant 5 : index
    %88 = memref.load %arg3[%c5] : memref<36xf32, #tpu.memory_space<smem>>
    %89 = vector.broadcast %88 : f32 to vector<8x16xf32>
    %90 = arith.mulf %87, %89 : vector<8x16xf32>
    %91 = arith.addf %84, %90 : vector<8x16xf32>
    %c1_29 = arith.constant 1 : index
    %92 = arith.index_cast %77 : i32 to index
    %c2_30 = arith.constant 2 : index
    %93 = vector.load %arg8[%c1_29, %92, %c2_30] : memref<4x18x18xf32, #tpu.memory_space<vmem>>, vector<1x8x16xf32>
    %94 = vector.shape_cast %93 : vector<1x8x16xf32> to vector<8x16xf32>
    %c9 = arith.constant 9 : index
    %95 = memref.load %arg3[%c9] : memref<36xf32, #tpu.memory_space<smem>>
    %96 = vector.broadcast %95 : f32 to vector<8x16xf32>
    %97 = arith.mulf %94, %96 : vector<8x16xf32>
    %98 = arith.addf %91, %97 : vector<8x16xf32>
    %c0_i32_31 = arith.constant 0 : i32
    %99 = arith.addi %c0_i32_31, %4 : i32
    %c1_i32_32 = arith.constant 1 : i32
    %100 = arith.addi %99, %c1_i32_32 : i32
    %c1_33 = arith.constant 1 : index
    %101 = arith.index_cast %100 : i32 to index
    %c0_34 = arith.constant 0 : index
    %102 = vector.load %arg8[%c1_33, %101, %c0_34] : memref<4x18x18xf32, #tpu.memory_space<vmem>>, vector<1x8x16xf32>
    %103 = vector.shape_cast %102 : vector<1x8x16xf32> to vector<8x16xf32>
    %c13 = arith.constant 13 : index
    %104 = memref.load %arg3[%c13] : memref<36xf32, #tpu.memory_space<smem>>
    %105 = vector.broadcast %104 : f32 to vector<8x16xf32>
    %106 = arith.mulf %103, %105 : vector<8x16xf32>
    %107 = arith.addf %98, %106 : vector<8x16xf32>
    %c1_35 = arith.constant 1 : index
    %108 = arith.index_cast %100 : i32 to index
    %c1_36 = arith.constant 1 : index
    %109 = vector.load %arg8[%c1_35, %108, %c1_36] : memref<4x18x18xf32, #tpu.memory_space<vmem>>, vector<1x8x16xf32>
    %110 = vector.shape_cast %109 : vector<1x8x16xf32> to vector<8x16xf32>
    %c17 = arith.constant 17 : index
    %111 = memref.load %arg3[%c17] : memref<36xf32, #tpu.memory_space<smem>>
    %112 = vector.broadcast %111 : f32 to vector<8x16xf32>
    %113 = arith.mulf %110, %112 : vector<8x16xf32>
    %114 = arith.addf %107, %113 : vector<8x16xf32>
    %c1_37 = arith.constant 1 : index
    %115 = arith.index_cast %100 : i32 to index
    %c2_38 = arith.constant 2 : index
    %116 = vector.load %arg8[%c1_37, %115, %c2_38] : memref<4x18x18xf32, #tpu.memory_space<vmem>>, vector<1x8x16xf32>
    %117 = vector.shape_cast %116 : vector<1x8x16xf32> to vector<8x16xf32>
    %c21 = arith.constant 21 : index
    %118 = memref.load %arg3[%c21] : memref<36xf32, #tpu.memory_space<smem>>
    %119 = vector.broadcast %118 : f32 to vector<8x16xf32>
    %120 = arith.mulf %117, %119 : vector<8x16xf32>
    %121 = arith.addf %114, %120 : vector<8x16xf32>
    %c0_i32_39 = arith.constant 0 : i32
    %122 = arith.addi %c0_i32_39, %4 : i32
    %c2_i32_40 = arith.constant 2 : i32
    %123 = arith.addi %122, %c2_i32_40 : i32
    %c1_41 = arith.constant 1 : index
    %124 = arith.index_cast %123 : i32 to index
    %c0_42 = arith.constant 0 : index
    %125 = vector.load %arg8[%c1_41, %124, %c0_42] : memref<4x18x18xf32, #tpu.memory_space<vmem>>, vector<1x8x16xf32>
    %126 = vector.shape_cast %125 : vector<1x8x16xf32> to vector<8x16xf32>
    %c25 = arith.constant 25 : index
    %127 = memref.load %arg3[%c25] : memref<36xf32, #tpu.memory_space<smem>>
    %128 = vector.broadcast %127 : f32 to vector<8x16xf32>
    %129 = arith.mulf %126, %128 : vector<8x16xf32>
    %130 = arith.addf %121, %129 : vector<8x16xf32>
    %c1_43 = arith.constant 1 : index
    %131 = arith.index_cast %123 : i32 to index
    %c1_44 = arith.constant 1 : index
    %132 = vector.load %arg8[%c1_43, %131, %c1_44] : memref<4x18x18xf32, #tpu.memory_space<vmem>>, vector<1x8x16xf32>
    %133 = vector.shape_cast %132 : vector<1x8x16xf32> to vector<8x16xf32>
    %c29 = arith.constant 29 : index
    %134 = memref.load %arg3[%c29] : memref<36xf32, #tpu.memory_space<smem>>
    %135 = vector.broadcast %134 : f32 to vector<8x16xf32>
    %136 = arith.mulf %133, %135 : vector<8x16xf32>
    %137 = arith.addf %130, %136 : vector<8x16xf32>
    %c1_45 = arith.constant 1 : index
    %138 = arith.index_cast %123 : i32 to index
    %c2_46 = arith.constant 2 : index
    %139 = vector.load %arg8[%c1_45, %138, %c2_46] : memref<4x18x18xf32, #tpu.memory_space<vmem>>, vector<1x8x16xf32>
    %140 = vector.shape_cast %139 : vector<1x8x16xf32> to vector<8x16xf32>
    %c33 = arith.constant 33 : index
    %141 = memref.load %arg3[%c33] : memref<36xf32, #tpu.memory_space<smem>>
    %142 = vector.broadcast %141 : f32 to vector<8x16xf32>
    %143 = arith.mulf %140, %142 : vector<8x16xf32>
    %144 = arith.addf %137, %143 : vector<8x16xf32>
    %cst_47 = arith.constant 0.000000e+00 : f32
    %145 = vector.broadcast %cst_47 : f32 to vector<8x16xf32>
    %c0_i32_48 = arith.constant 0 : i32
    %146 = arith.addi %c0_i32_48, %4 : i32
    %c0_i32_49 = arith.constant 0 : i32
    %147 = arith.addi %146, %c0_i32_49 : i32
    %c2_50 = arith.constant 2 : index
    %148 = arith.index_cast %147 : i32 to index
    %c0_51 = arith.constant 0 : index
    %149 = vector.load %arg8[%c2_50, %148, %c0_51] : memref<4x18x18xf32, #tpu.memory_space<vmem>>, vector<1x8x16xf32>
    %150 = vector.shape_cast %149 : vector<1x8x16xf32> to vector<8x16xf32>
    %c2_52 = arith.constant 2 : index
    %151 = memref.load %arg3[%c2_52] : memref<36xf32, #tpu.memory_space<smem>>
    %152 = vector.broadcast %151 : f32 to vector<8x16xf32>
    %153 = arith.mulf %150, %152 : vector<8x16xf32>
    %154 = arith.addf %145, %153 : vector<8x16xf32>
    %c2_53 = arith.constant 2 : index
    %155 = arith.index_cast %147 : i32 to index
    %c1_54 = arith.constant 1 : index
    %156 = vector.load %arg8[%c2_53, %155, %c1_54] : memref<4x18x18xf32, #tpu.memory_space<vmem>>, vector<1x8x16xf32>
    %157 = vector.shape_cast %156 : vector<1x8x16xf32> to vector<8x16xf32>
    %c6 = arith.constant 6 : index
    %158 = memref.load %arg3[%c6] : memref<36xf32, #tpu.memory_space<smem>>
    %159 = vector.broadcast %158 : f32 to vector<8x16xf32>
    %160 = arith.mulf %157, %159 : vector<8x16xf32>
    %161 = arith.addf %154, %160 : vector<8x16xf32>
    %c2_55 = arith.constant 2 : index
    %162 = arith.index_cast %147 : i32 to index
    %c2_56 = arith.constant 2 : index
    %163 = vector.load %arg8[%c2_55, %162, %c2_56] : memref<4x18x18xf32, #tpu.memory_space<vmem>>, vector<1x8x16xf32>
    %164 = vector.shape_cast %163 : vector<1x8x16xf32> to vector<8x16xf32>
    %c10 = arith.constant 10 : index
    %165 = memref.load %arg3[%c10] : memref<36xf32, #tpu.memory_space<smem>>
    %166 = vector.broadcast %165 : f32 to vector<8x16xf32>
    %167 = arith.mulf %164, %166 : vector<8x16xf32>
    %168 = arith.addf %161, %167 : vector<8x16xf32>
    %c0_i32_57 = arith.constant 0 : i32
    %169 = arith.addi %c0_i32_57, %4 : i32
    %c1_i32_58 = arith.constant 1 : i32
    %170 = arith.addi %169, %c1_i32_58 : i32
    %c2_59 = arith.constant 2 : index
    %171 = arith.index_cast %170 : i32 to index
    %c0_60 = arith.constant 0 : index
    %172 = vector.load %arg8[%c2_59, %171, %c0_60] : memref<4x18x18xf32, #tpu.memory_space<vmem>>, vector<1x8x16xf32>
    %173 = vector.shape_cast %172 : vector<1x8x16xf32> to vector<8x16xf32>
    %c14 = arith.constant 14 : index
    %174 = memref.load %arg3[%c14] : memref<36xf32, #tpu.memory_space<smem>>
    %175 = vector.broadcast %174 : f32 to vector<8x16xf32>
    %176 = arith.mulf %173, %175 : vector<8x16xf32>
    %177 = arith.addf %168, %176 : vector<8x16xf32>
    %c2_61 = arith.constant 2 : index
    %178 = arith.index_cast %170 : i32 to index
    %c1_62 = arith.constant 1 : index
    %179 = vector.load %arg8[%c2_61, %178, %c1_62] : memref<4x18x18xf32, #tpu.memory_space<vmem>>, vector<1x8x16xf32>
    %180 = vector.shape_cast %179 : vector<1x8x16xf32> to vector<8x16xf32>
    %c18 = arith.constant 18 : index
    %181 = memref.load %arg3[%c18] : memref<36xf32, #tpu.memory_space<smem>>
    %182 = vector.broadcast %181 : f32 to vector<8x16xf32>
    %183 = arith.mulf %180, %182 : vector<8x16xf32>
    %184 = arith.addf %177, %183 : vector<8x16xf32>
    %c2_63 = arith.constant 2 : index
    %185 = arith.index_cast %170 : i32 to index
    %c2_64 = arith.constant 2 : index
    %186 = vector.load %arg8[%c2_63, %185, %c2_64] : memref<4x18x18xf32, #tpu.memory_space<vmem>>, vector<1x8x16xf32>
    %187 = vector.shape_cast %186 : vector<1x8x16xf32> to vector<8x16xf32>
    %c22 = arith.constant 22 : index
    %188 = memref.load %arg3[%c22] : memref<36xf32, #tpu.memory_space<smem>>
    %189 = vector.broadcast %188 : f32 to vector<8x16xf32>
    %190 = arith.mulf %187, %189 : vector<8x16xf32>
    %191 = arith.addf %184, %190 : vector<8x16xf32>
    %c0_i32_65 = arith.constant 0 : i32
    %192 = arith.addi %c0_i32_65, %4 : i32
    %c2_i32_66 = arith.constant 2 : i32
    %193 = arith.addi %192, %c2_i32_66 : i32
    %c2_67 = arith.constant 2 : index
    %194 = arith.index_cast %193 : i32 to index
    %c0_68 = arith.constant 0 : index
    %195 = vector.load %arg8[%c2_67, %194, %c0_68] : memref<4x18x18xf32, #tpu.memory_space<vmem>>, vector<1x8x16xf32>
    %196 = vector.shape_cast %195 : vector<1x8x16xf32> to vector<8x16xf32>
    %c26 = arith.constant 26 : index
    %197 = memref.load %arg3[%c26] : memref<36xf32, #tpu.memory_space<smem>>
    %198 = vector.broadcast %197 : f32 to vector<8x16xf32>
    %199 = arith.mulf %196, %198 : vector<8x16xf32>
    %200 = arith.addf %191, %199 : vector<8x16xf32>
    %c2_69 = arith.constant 2 : index
    %201 = arith.index_cast %193 : i32 to index
    %c1_70 = arith.constant 1 : index
    %202 = vector.load %arg8[%c2_69, %201, %c1_70] : memref<4x18x18xf32, #tpu.memory_space<vmem>>, vector<1x8x16xf32>
    %203 = vector.shape_cast %202 : vector<1x8x16xf32> to vector<8x16xf32>
    %c30 = arith.constant 30 : index
    %204 = memref.load %arg3[%c30] : memref<36xf32, #tpu.memory_space<smem>>
    %205 = vector.broadcast %204 : f32 to vector<8x16xf32>
    %206 = arith.mulf %203, %205 : vector<8x16xf32>
    %207 = arith.addf %200, %206 : vector<8x16xf32>
    %c2_71 = arith.constant 2 : index
    %208 = arith.index_cast %193 : i32 to index
    %c2_72 = arith.constant 2 : index
    %209 = vector.load %arg8[%c2_71, %208, %c2_72] : memref<4x18x18xf32, #tpu.memory_space<vmem>>, vector<1x8x16xf32>
    %210 = vector.shape_cast %209 : vector<1x8x16xf32> to vector<8x16xf32>
    %c34 = arith.constant 34 : index
    %211 = memref.load %arg3[%c34] : memref<36xf32, #tpu.memory_space<smem>>
    %212 = vector.broadcast %211 : f32 to vector<8x16xf32>
    %213 = arith.mulf %210, %212 : vector<8x16xf32>
    %214 = arith.addf %207, %213 : vector<8x16xf32>
    %cst_73 = arith.constant 0.000000e+00 : f32
    %215 = vector.broadcast %cst_73 : f32 to vector<8x16xf32>
    %c0_i32_74 = arith.constant 0 : i32
    %216 = arith.addi %c0_i32_74, %4 : i32
    %c0_i32_75 = arith.constant 0 : i32
    %217 = arith.addi %216, %c0_i32_75 : i32
    %c3 = arith.constant 3 : index
    %218 = arith.index_cast %217 : i32 to index
    %c0_76 = arith.constant 0 : index
    %219 = vector.load %arg8[%c3, %218, %c0_76] : memref<4x18x18xf32, #tpu.memory_space<vmem>>, vector<1x8x16xf32>
    %220 = vector.shape_cast %219 : vector<1x8x16xf32> to vector<8x16xf32>
    %c3_77 = arith.constant 3 : index
    %221 = memref.load %arg3[%c3_77] : memref<36xf32, #tpu.memory_space<smem>>
    %222 = vector.broadcast %221 : f32 to vector<8x16xf32>
    %223 = arith.mulf %220, %222 : vector<8x16xf32>
    %224 = arith.addf %215, %223 : vector<8x16xf32>
    %c3_78 = arith.constant 3 : index
    %225 = arith.index_cast %217 : i32 to index
    %c1_79 = arith.constant 1 : index
    %226 = vector.load %arg8[%c3_78, %225, %c1_79] : memref<4x18x18xf32, #tpu.memory_space<vmem>>, vector<1x8x16xf32>
    %227 = vector.shape_cast %226 : vector<1x8x16xf32> to vector<8x16xf32>
    %c7 = arith.constant 7 : index
    %228 = memref.load %arg3[%c7] : memref<36xf32, #tpu.memory_space<smem>>
    %229 = vector.broadcast %228 : f32 to vector<8x16xf32>
    %230 = arith.mulf %227, %229 : vector<8x16xf32>
    %231 = arith.addf %224, %230 : vector<8x16xf32>
    %c3_80 = arith.constant 3 : index
    %232 = arith.index_cast %217 : i32 to index
    %c2_81 = arith.constant 2 : index
    %233 = vector.load %arg8[%c3_80, %232, %c2_81] : memref<4x18x18xf32, #tpu.memory_space<vmem>>, vector<1x8x16xf32>
    %234 = vector.shape_cast %233 : vector<1x8x16xf32> to vector<8x16xf32>
    %c11 = arith.constant 11 : index
    %235 = memref.load %arg3[%c11] : memref<36xf32, #tpu.memory_space<smem>>
    %236 = vector.broadcast %235 : f32 to vector<8x16xf32>
    %237 = arith.mulf %234, %236 : vector<8x16xf32>
    %238 = arith.addf %231, %237 : vector<8x16xf32>
    %c0_i32_82 = arith.constant 0 : i32
    %239 = arith.addi %c0_i32_82, %4 : i32
    %c1_i32_83 = arith.constant 1 : i32
    %240 = arith.addi %239, %c1_i32_83 : i32
    %c3_84 = arith.constant 3 : index
    %241 = arith.index_cast %240 : i32 to index
    %c0_85 = arith.constant 0 : index
    %242 = vector.load %arg8[%c3_84, %241, %c0_85] : memref<4x18x18xf32, #tpu.memory_space<vmem>>, vector<1x8x16xf32>
    %243 = vector.shape_cast %242 : vector<1x8x16xf32> to vector<8x16xf32>
    %c15 = arith.constant 15 : index
    %244 = memref.load %arg3[%c15] : memref<36xf32, #tpu.memory_space<smem>>
    %245 = vector.broadcast %244 : f32 to vector<8x16xf32>
    %246 = arith.mulf %243, %245 : vector<8x16xf32>
    %247 = arith.addf %238, %246 : vector<8x16xf32>
    %c3_86 = arith.constant 3 : index
    %248 = arith.index_cast %240 : i32 to index
    %c1_87 = arith.constant 1 : index
    %249 = vector.load %arg8[%c3_86, %248, %c1_87] : memref<4x18x18xf32, #tpu.memory_space<vmem>>, vector<1x8x16xf32>
    %250 = vector.shape_cast %249 : vector<1x8x16xf32> to vector<8x16xf32>
    %c19 = arith.constant 19 : index
    %251 = memref.load %arg3[%c19] : memref<36xf32, #tpu.memory_space<smem>>
    %252 = vector.broadcast %251 : f32 to vector<8x16xf32>
    %253 = arith.mulf %250, %252 : vector<8x16xf32>
    %254 = arith.addf %247, %253 : vector<8x16xf32>
    %c3_88 = arith.constant 3 : index
    %255 = arith.index_cast %240 : i32 to index
    %c2_89 = arith.constant 2 : index
    %256 = vector.load %arg8[%c3_88, %255, %c2_89] : memref<4x18x18xf32, #tpu.memory_space<vmem>>, vector<1x8x16xf32>
    %257 = vector.shape_cast %256 : vector<1x8x16xf32> to vector<8x16xf32>
    %c23 = arith.constant 23 : index
    %258 = memref.load %arg3[%c23] : memref<36xf32, #tpu.memory_space<smem>>
    %259 = vector.broadcast %258 : f32 to vector<8x16xf32>
    %260 = arith.mulf %257, %259 : vector<8x16xf32>
    %261 = arith.addf %254, %260 : vector<8x16xf32>
    %c0_i32_90 = arith.constant 0 : i32
    %262 = arith.addi %c0_i32_90, %4 : i32
    %c2_i32_91 = arith.constant 2 : i32
    %263 = arith.addi %262, %c2_i32_91 : i32
    %c3_92 = arith.constant 3 : index
    %264 = arith.index_cast %263 : i32 to index
    %c0_93 = arith.constant 0 : index
    %265 = vector.load %arg8[%c3_92, %264, %c0_93] : memref<4x18x18xf32, #tpu.memory_space<vmem>>, vector<1x8x16xf32>
    %266 = vector.shape_cast %265 : vector<1x8x16xf32> to vector<8x16xf32>
    %c27 = arith.constant 27 : index
    %267 = memref.load %arg3[%c27] : memref<36xf32, #tpu.memory_space<smem>>
    %268 = vector.broadcast %267 : f32 to vector<8x16xf32>
    %269 = arith.mulf %266, %268 : vector<8x16xf32>
    %270 = arith.addf %261, %269 : vector<8x16xf32>
    %c3_94 = arith.constant 3 : index
    %271 = arith.index_cast %263 : i32 to index
    %c1_95 = arith.constant 1 : index
    %272 = vector.load %arg8[%c3_94, %271, %c1_95] : memref<4x18x18xf32, #tpu.memory_space<vmem>>, vector<1x8x16xf32>
    %273 = vector.shape_cast %272 : vector<1x8x16xf32> to vector<8x16xf32>
    %c31 = arith.constant 31 : index
    %274 = memref.load %arg3[%c31] : memref<36xf32, #tpu.memory_space<smem>>
    %275 = vector.broadcast %274 : f32 to vector<8x16xf32>
    %276 = arith.mulf %273, %275 : vector<8x16xf32>
    %277 = arith.addf %270, %276 : vector<8x16xf32>
    %c3_96 = arith.constant 3 : index
    %278 = arith.index_cast %263 : i32 to index
    %c2_97 = arith.constant 2 : index
    %279 = vector.load %arg8[%c3_96, %278, %c2_97] : memref<4x18x18xf32, #tpu.memory_space<vmem>>, vector<1x8x16xf32>
    %280 = vector.shape_cast %279 : vector<1x8x16xf32> to vector<8x16xf32>
    %c35 = arith.constant 35 : index
    %281 = memref.load %arg3[%c35] : memref<36xf32, #tpu.memory_space<smem>>
    %282 = vector.broadcast %281 : f32 to vector<8x16xf32>
    %283 = arith.mulf %280, %282 : vector<8x16xf32>
    %284 = arith.addf %277, %283 : vector<8x16xf32>
    %c0_i32_98 = arith.constant 0 : i32
    %285 = arith.cmpi eq, %arg1, %c0_i32_98 : i32
    %286 = arith.extui %285 : i1 to i32
    %c0_i32_99 = arith.constant 0 : i32
    %287 = arith.cmpi ne, %286, %c0_i32_99 : i32
    scf.if %287 {
      %cst_188 = arith.constant 0.000000e+00 : f32
      %420 = vector.broadcast %cst_188 : f32 to vector<4x16xf32>
      %c0_189 = arith.constant 0 : index
      %c0_190 = arith.constant 0 : index
      %c0_191 = arith.constant 0 : index
      %421 = vector.load %arg6[%c0_189, %c0_190, %c0_191] : memref<1x4x16xf32, #tpu.memory_space<vmem>>, vector<1x4x16xf32>
      %422 = vector.shape_cast %421 : vector<1x4x16xf32> to vector<4x16xf32>
      %423 = vector.shape_cast %420 : vector<4x16xf32> to vector<1x4x16xf32>
      tpu.vector_store %arg6[%c0_189, %c0_190, %c0_191], %423 {strides = array<i32>} : memref<1x4x16xf32, #tpu.memory_space<vmem>>, vector<1x4x16xf32>,
      %cst_192 = arith.constant 0.000000e+00 : f32
      %424 = vector.broadcast %cst_192 : f32 to vector<4x16xf32>
      %c0_193 = arith.constant 0 : index
      %c0_194 = arith.constant 0 : index
      %c0_195 = arith.constant 0 : index
      %425 = vector.load %arg7[%c0_193, %c0_194, %c0_195] : memref<1x4x16xf32, #tpu.memory_space<vmem>>, vector<1x4x16xf32>
      %426 = vector.shape_cast %425 : vector<1x4x16xf32> to vector<4x16xf32>
      %427 = vector.shape_cast %424 : vector<4x16xf32> to vector<1x4x16xf32>
      tpu.vector_store %arg7[%c0_193, %c0_194, %c0_195], %427 {strides = array<i32>} : memref<1x4x16xf32, #tpu.memory_space<vmem>>, vector<1x4x16xf32>,
    } else {
    }
    %c0_100 = arith.constant 0 : index
    %288 = memref.load %arg4[%c0_100] : memref<16xf32, #tpu.memory_space<smem>>
    %289 = vector.broadcast %288 : f32 to vector<8x16xf32>
    %290 = arith.mulf %74, %289 : vector<8x16xf32>
    %c4_101 = arith.constant 4 : index
    %291 = memref.load %arg4[%c4_101] : memref<16xf32, #tpu.memory_space<smem>>
    %292 = vector.broadcast %291 : f32 to vector<8x16xf32>
    %293 = arith.mulf %144, %292 : vector<8x16xf32>
    %294 = arith.addf %290, %293 : vector<8x16xf32>
    %c8_102 = arith.constant 8 : index
    %295 = memref.load %arg4[%c8_102] : memref<16xf32, #tpu.memory_space<smem>>
    %296 = vector.broadcast %295 : f32 to vector<8x16xf32>
    %297 = arith.mulf %214, %296 : vector<8x16xf32>
    %298 = arith.addf %294, %297 : vector<8x16xf32>
    %c12_103 = arith.constant 12 : index
    %299 = memref.load %arg4[%c12_103] : memref<16xf32, #tpu.memory_space<smem>>
    %300 = vector.broadcast %299 : f32 to vector<8x16xf32>
    %301 = arith.mulf %284, %300 : vector<8x16xf32>
    %302 = arith.addf %298, %301 : vector<8x16xf32>
    %c0_104 = arith.constant 0 : index
    %c0_105 = arith.constant 0 : index
    %c0_106 = arith.constant 0 : index
    %c0_107 = arith.constant 0 : index
    %303 = vector.load %arg5[%c0_104, %c0_105, %c0_106, %c0_107] : memref<1x4x8x16xf32, #tpu.memory_space<vmem>>, vector<1x1x8x16xf32>
    %304 = vector.shape_cast %303 : vector<1x1x8x16xf32> to vector<8x16xf32>
    %305 = vector.shape_cast %302 : vector<8x16xf32> to vector<1x1x8x16xf32>
    tpu.vector_store %arg5[%c0_104, %c0_105, %c0_106, %c0_107], %305 {strides = array<i32>} : memref<1x4x8x16xf32, #tpu.memory_space<vmem>>, vector<1x1x8x16xf32>,
    %c0_108 = arith.constant 0 : index
    %c0_109 = arith.constant 0 : index
    %c0_110 = arith.constant 0 : index
    %306 = vector.load %arg6[%c0_108, %c0_109, %c0_110] : memref<1x4x16xf32, #tpu.memory_space<vmem>>, vector<1x1x16xf32>
    %307 = vector.shape_cast %306 : vector<1x1x16xf32> to vector<16xf32>
    %cst_111 = arith.constant dense<0.000000e+00> : vector<16xf32>
    %308 = vector.multi_reduction <add>, %302, %cst_111 [0] : vector<8x16xf32> to vector<16xf32>
    %309 = arith.addf %307, %308 : vector<16xf32>
    %c0_112 = arith.constant 0 : index
    %c0_113 = arith.constant 0 : index
    %c0_114 = arith.constant 0 : index
    %310 = vector.load %arg6[%c0_112, %c0_113, %c0_114] : memref<1x4x16xf32, #tpu.memory_space<vmem>>, vector<1x1x16xf32>
    %311 = vector.shape_cast %310 : vector<1x1x16xf32> to vector<16xf32>
    %312 = vector.shape_cast %309 : vector<16xf32> to vector<1x1x16xf32>
    tpu.vector_store %arg6[%c0_112, %c0_113, %c0_114], %312 {strides = array<i32>} : memref<1x4x16xf32, #tpu.memory_space<vmem>>, vector<1x1x16xf32>,
    %c0_115 = arith.constant 0 : index
    %c0_116 = arith.constant 0 : index
    %c0_117 = arith.constant 0 : index
    %313 = vector.load %arg7[%c0_115, %c0_116, %c0_117] : memref<1x4x16xf32, #tpu.memory_space<vmem>>, vector<1x1x16xf32>
    %314 = vector.shape_cast %313 : vector<1x1x16xf32> to vector<16xf32>
    %315 = arith.mulf %302, %302 : vector<8x16xf32>
    %cst_118 = arith.constant dense<0.000000e+00> : vector<16xf32>
    %316 = vector.multi_reduction <add>, %315, %cst_118 [0] : vector<8x16xf32> to vector<16xf32>
    %317 = arith.addf %314, %316 : vector<16xf32>
    %c0_119 = arith.constant 0 : index
    %c0_120 = arith.constant 0 : index
    %c0_121 = arith.constant 0 : index
    %318 = vector.load %arg7[%c0_119, %c0_120, %c0_121] : memref<1x4x16xf32, #tpu.memory_space<vmem>>, vector<1x1x16xf32>
    %319 = vector.shape_cast %318 : vector<1x1x16xf32> to vector<16xf32>
    %320 = vector.shape_cast %317 : vector<16xf32> to vector<1x1x16xf32>
    tpu.vector_store %arg7[%c0_119, %c0_120, %c0_121], %320 {strides = array<i32>} : memref<1x4x16xf32, #tpu.memory_space<vmem>>, vector<1x1x16xf32>,
    %c1_122 = arith.constant 1 : index
    %321 = memref.load %arg4[%c1_122] : memref<16xf32, #tpu.memory_space<smem>>
    %322 = vector.broadcast %321 : f32 to vector<8x16xf32>
    %323 = arith.mulf %74, %322 : vector<8x16xf32>
    %c5_123 = arith.constant 5 : index
    %324 = memref.load %arg4[%c5_123] : memref<16xf32, #tpu.memory_space<smem>>
    %325 = vector.broadcast %324 : f32 to vector<8x16xf32>
    %326 = arith.mulf %144, %325 : vector<8x16xf32>
    %327 = arith.addf %323, %326 : vector<8x16xf32>
    %c9_124 = arith.constant 9 : index
    %328 = memref.load %arg4[%c9_124] : memref<16xf32, #tpu.memory_space<smem>>
    %329 = vector.broadcast %328 : f32 to vector<8x16xf32>
    %330 = arith.mulf %214, %329 : vector<8x16xf32>
    %331 = arith.addf %327, %330 : vector<8x16xf32>
    %c13_125 = arith.constant 13 : index
    %332 = memref.load %arg4[%c13_125] : memref<16xf32, #tpu.memory_space<smem>>
    %333 = vector.broadcast %332 : f32 to vector<8x16xf32>
    %334 = arith.mulf %284, %333 : vector<8x16xf32>
    %335 = arith.addf %331, %334 : vector<8x16xf32>
    %c0_126 = arith.constant 0 : index
    %c1_127 = arith.constant 1 : index
    %c0_128 = arith.constant 0 : index
    %c0_129 = arith.constant 0 : index
    %336 = vector.load %arg5[%c0_126, %c1_127, %c0_128, %c0_129] : memref<1x4x8x16xf32, #tpu.memory_space<vmem>>, vector<1x1x8x16xf32>
    %337 = vector.shape_cast %336 : vector<1x1x8x16xf32> to vector<8x16xf32>
    %338 = vector.shape_cast %335 : vector<8x16xf32> to vector<1x1x8x16xf32>
    tpu.vector_store %arg5[%c0_126, %c1_127, %c0_128, %c0_129], %338 {strides = array<i32>} : memref<1x4x8x16xf32, #tpu.memory_space<vmem>>, vector<1x1x8x16xf32>,
    %c0_130 = arith.constant 0 : index
    %c1_131 = arith.constant 1 : index
    %c0_132 = arith.constant 0 : index
    %339 = vector.load %arg6[%c0_130, %c1_131, %c0_132] : memref<1x4x16xf32, #tpu.memory_space<vmem>>, vector<1x1x16xf32>
    %340 = vector.shape_cast %339 : vector<1x1x16xf32> to vector<16xf32>
    %cst_133 = arith.constant dense<0.000000e+00> : vector<16xf32>
    %341 = vector.multi_reduction <add>, %335, %cst_133 [0] : vector<8x16xf32> to vector<16xf32>
    %342 = arith.addf %340, %341 : vector<16xf32>
    %c0_134 = arith.constant 0 : index
    %c1_135 = arith.constant 1 : index
    %c0_136 = arith.constant 0 : index
    %343 = vector.load %arg6[%c0_134, %c1_135, %c0_136] : memref<1x4x16xf32, #tpu.memory_space<vmem>>, vector<1x1x16xf32>
    %344 = vector.shape_cast %343 : vector<1x1x16xf32> to vector<16xf32>
    %345 = vector.shape_cast %342 : vector<16xf32> to vector<1x1x16xf32>
    tpu.vector_store %arg6[%c0_134, %c1_135, %c0_136], %345 {strides = array<i32>} : memref<1x4x16xf32, #tpu.memory_space<vmem>>, vector<1x1x16xf32>,
    %c0_137 = arith.constant 0 : index
    %c1_138 = arith.constant 1 : index
    %c0_139 = arith.constant 0 : index
    %346 = vector.load %arg7[%c0_137, %c1_138, %c0_139] : memref<1x4x16xf32, #tpu.memory_space<vmem>>, vector<1x1x16xf32>
    %347 = vector.shape_cast %346 : vector<1x1x16xf32> to vector<16xf32>
    %348 = arith.mulf %335, %335 : vector<8x16xf32>
    %cst_140 = arith.constant dense<0.000000e+00> : vector<16xf32>
    %349 = vector.multi_reduction <add>, %348, %cst_140 [0] : vector<8x16xf32> to vector<16xf32>
    %350 = arith.addf %347, %349 : vector<16xf32>
    %c0_141 = arith.constant 0 : index
    %c1_142 = arith.constant 1 : index
    %c0_143 = arith.constant 0 : index
    %351 = vector.load %arg7[%c0_141, %c1_142, %c0_143] : memref<1x4x16xf32, #tpu.memory_space<vmem>>, vector<1x1x16xf32>
    %352 = vector.shape_cast %351 : vector<1x1x16xf32> to vector<16xf32>
    %353 = vector.shape_cast %350 : vector<16xf32> to vector<1x1x16xf32>
    tpu.vector_store %arg7[%c0_141, %c1_142, %c0_143], %353 {strides = array<i32>} : memref<1x4x16xf32, #tpu.memory_space<vmem>>, vector<1x1x16xf32>,
    %c2_144 = arith.constant 2 : index
    %354 = memref.load %arg4[%c2_144] : memref<16xf32, #tpu.memory_space<smem>>
    %355 = vector.broadcast %354 : f32 to vector<8x16xf32>
    %356 = arith.mulf %74, %355 : vector<8x16xf32>
    %c6_145 = arith.constant 6 : index
    %357 = memref.load %arg4[%c6_145] : memref<16xf32, #tpu.memory_space<smem>>
    %358 = vector.broadcast %357 : f32 to vector<8x16xf32>
    %359 = arith.mulf %144, %358 : vector<8x16xf32>
    %360 = arith.addf %356, %359 : vector<8x16xf32>
    %c10_146 = arith.constant 10 : index
    %361 = memref.load %arg4[%c10_146] : memref<16xf32, #tpu.memory_space<smem>>
    %362 = vector.broadcast %361 : f32 to vector<8x16xf32>
    %363 = arith.mulf %214, %362 : vector<8x16xf32>
    %364 = arith.addf %360, %363 : vector<8x16xf32>
    %c14_147 = arith.constant 14 : index
    %365 = memref.load %arg4[%c14_147] : memref<16xf32, #tpu.memory_space<smem>>
    %366 = vector.broadcast %365 : f32 to vector<8x16xf32>
    %367 = arith.mulf %284, %366 : vector<8x16xf32>
    %368 = arith.addf %364, %367 : vector<8x16xf32>
    %c0_148 = arith.constant 0 : index
    %c2_149 = arith.constant 2 : index
    %c0_150 = arith.constant 0 : index
    %c0_151 = arith.constant 0 : index
    %369 = vector.load %arg5[%c0_148, %c2_149, %c0_150, %c0_151] : memref<1x4x8x16xf32, #tpu.memory_space<vmem>>, vector<1x1x8x16xf32>
    %370 = vector.shape_cast %369 : vector<1x1x8x16xf32> to vector<8x16xf32>
    %371 = vector.shape_cast %368 : vector<8x16xf32> to vector<1x1x8x16xf32>
    tpu.vector_store %arg5[%c0_148, %c2_149, %c0_150, %c0_151], %371 {strides = array<i32>} : memref<1x4x8x16xf32, #tpu.memory_space<vmem>>, vector<1x1x8x16xf32>,
    %c0_152 = arith.constant 0 : index
    %c2_153 = arith.constant 2 : index
    %c0_154 = arith.constant 0 : index
    %372 = vector.load %arg6[%c0_152, %c2_153, %c0_154] : memref<1x4x16xf32, #tpu.memory_space<vmem>>, vector<1x1x16xf32>
    %373 = vector.shape_cast %372 : vector<1x1x16xf32> to vector<16xf32>
    %cst_155 = arith.constant dense<0.000000e+00> : vector<16xf32>
    %374 = vector.multi_reduction <add>, %368, %cst_155 [0] : vector<8x16xf32> to vector<16xf32>
    %375 = arith.addf %373, %374 : vector<16xf32>
    %c0_156 = arith.constant 0 : index
    %c2_157 = arith.constant 2 : index
    %c0_158 = arith.constant 0 : index
    %376 = vector.load %arg6[%c0_156, %c2_157, %c0_158] : memref<1x4x16xf32, #tpu.memory_space<vmem>>, vector<1x1x16xf32>
    %377 = vector.shape_cast %376 : vector<1x1x16xf32> to vector<16xf32>
    %378 = vector.shape_cast %375 : vector<16xf32> to vector<1x1x16xf32>
    tpu.vector_store %arg6[%c0_156, %c2_157, %c0_158], %378 {strides = array<i32>} : memref<1x4x16xf32, #tpu.memory_space<vmem>>, vector<1x1x16xf32>,
    %c0_159 = arith.constant 0 : index
    %c2_160 = arith.constant 2 : index
    %c0_161 = arith.constant 0 : index
    %379 = vector.load %arg7[%c0_159, %c2_160, %c0_161] : memref<1x4x16xf32, #tpu.memory_space<vmem>>, vector<1x1x16xf32>
    %380 = vector.shape_cast %379 : vector<1x1x16xf32> to vector<16xf32>
    %381 = arith.mulf %368, %368 : vector<8x16xf32>
    %cst_162 = arith.constant dense<0.000000e+00> : vector<16xf32>
    %382 = vector.multi_reduction <add>, %381, %cst_162 [0] : vector<8x16xf32> to vector<16xf32>
    %383 = arith.addf %380, %382 : vector<16xf32>
    %c0_163 = arith.constant 0 : index
    %c2_164 = arith.constant 2 : index
    %c0_165 = arith.constant 0 : index
    %384 = vector.load %arg7[%c0_163, %c2_164, %c0_165] : memref<1x4x16xf32, #tpu.memory_space<vmem>>, vector<1x1x16xf32>
    %385 = vector.shape_cast %384 : vector<1x1x16xf32> to vector<16xf32>
    %386 = vector.shape_cast %383 : vector<16xf32> to vector<1x1x16xf32>
    tpu.vector_store %arg7[%c0_163, %c2_164, %c0_165], %386 {strides = array<i32>} : memref<1x4x16xf32, #tpu.memory_space<vmem>>, vector<1x1x16xf32>,
    %c3_166 = arith.constant 3 : index
    %387 = memref.load %arg4[%c3_166] : memref<16xf32, #tpu.memory_space<smem>>
    %388 = vector.broadcast %387 : f32 to vector<8x16xf32>
    %389 = arith.mulf %74, %388 : vector<8x16xf32>
    %c7_167 = arith.constant 7 : index
    %390 = memref.load %arg4[%c7_167] : memref<16xf32, #tpu.memory_space<smem>>
    %391 = vector.broadcast %390 : f32 to vector<8x16xf32>
    %392 = arith.mulf %144, %391 : vector<8x16xf32>
    %393 = arith.addf %389, %392 : vector<8x16xf32>
    %c11_168 = arith.constant 11 : index
    %394 = memref.load %arg4[%c11_168] : memref<16xf32, #tpu.memory_space<smem>>
    %395 = vector.broadcast %394 : f32 to vector<8x16xf32>
    %396 = arith.mulf %214, %395 : vector<8x16xf32>
    %397 = arith.addf %393, %396 : vector<8x16xf32>
    %c15_169 = arith.constant 15 : index
    %398 = memref.load %arg4[%c15_169] : memref<16xf32, #tpu.memory_space<smem>>
    %399 = vector.broadcast %398 : f32 to vector<8x16xf32>
    %400 = arith.mulf %284, %399 : vector<8x16xf32>
    %401 = arith.addf %397, %400 : vector<8x16xf32>
    %c0_170 = arith.constant 0 : index
    %c3_171 = arith.constant 3 : index
    %c0_172 = arith.constant 0 : index
    %c0_173 = arith.constant 0 : index
    %402 = vector.load %arg5[%c0_170, %c3_171, %c0_172, %c0_173] : memref<1x4x8x16xf32, #tpu.memory_space<vmem>>, vector<1x1x8x16xf32>
    %403 = vector.shape_cast %402 : vector<1x1x8x16xf32> to vector<8x16xf32>
    %404 = vector.shape_cast %401 : vector<8x16xf32> to vector<1x1x8x16xf32>
    tpu.vector_store %arg5[%c0_170, %c3_171, %c0_172, %c0_173], %404 {strides = array<i32>} : memref<1x4x8x16xf32, #tpu.memory_space<vmem>>, vector<1x1x8x16xf32>,
    %c0_174 = arith.constant 0 : index
    %c3_175 = arith.constant 3 : index
    %c0_176 = arith.constant 0 : index
    %405 = vector.load %arg6[%c0_174, %c3_175, %c0_176] : memref<1x4x16xf32, #tpu.memory_space<vmem>>, vector<1x1x16xf32>
    %406 = vector.shape_cast %405 : vector<1x1x16xf32> to vector<16xf32>
    %cst_177 = arith.constant dense<0.000000e+00> : vector<16xf32>
    %407 = vector.multi_reduction <add>, %401, %cst_177 [0] : vector<8x16xf32> to vector<16xf32>
    %408 = arith.addf %406, %407 : vector<16xf32>
    %c0_178 = arith.constant 0 : index
    %c3_179 = arith.constant 3 : index
    %c0_180 = arith.constant 0 : index
    %409 = vector.load %arg6[%c0_178, %c3_179, %c0_180] : memref<1x4x16xf32, #tpu.memory_space<vmem>>, vector<1x1x16xf32>
    %410 = vector.shape_cast %409 : vector<1x1x16xf32> to vector<16xf32>
    %411 = vector.shape_cast %408 : vector<16xf32> to vector<1x1x16xf32>
    tpu.vector_store %arg6[%c0_178, %c3_179, %c0_180], %411 {strides = array<i32>} : memref<1x4x16xf32, #tpu.memory_space<vmem>>, vector<1x1x16xf32>,
    %c0_181 = arith.constant 0 : index
    %c3_182 = arith.constant 3 : index
    %c0_183 = arith.constant 0 : index
    %412 = vector.load %arg7[%c0_181, %c3_182, %c0_183] : memref<1x4x16xf32, #tpu.memory_space<vmem>>, vector<1x1x16xf32>
    %413 = vector.shape_cast %412 : vector<1x1x16xf32> to vector<16xf32>
    %414 = arith.mulf %401, %401 : vector<8x16xf32>
    %cst_184 = arith.constant dense<0.000000e+00> : vector<16xf32>
    %415 = vector.multi_reduction <add>, %414, %cst_184 [0] : vector<8x16xf32> to vector<16xf32>
    %416 = arith.addf %413, %415 : vector<16xf32>
    %c0_185 = arith.constant 0 : index
    %c3_186 = arith.constant 3 : index
    %c0_187 = arith.constant 0 : index
    %417 = vector.load %arg7[%c0_185, %c3_186, %c0_187] : memref<1x4x16xf32, #tpu.memory_space<vmem>>, vector<1x1x16xf32>
    %418 = vector.shape_cast %417 : vector<1x1x16xf32> to vector<16xf32>
    %419 = vector.shape_cast %416 : vector<16xf32> to vector<1x1x16xf32>
    tpu.vector_store %arg7[%c0_185, %c3_186, %c0_187], %419 {strides = array<i32>} : memref<1x4x16xf32, #tpu.memory_space<vmem>>, vector<1x1x16xf32>,
    return
  }
  func.func @transform_0(%arg0: i32, %arg1: i32) -> (i32, i32, i32, i32) {
    %c0_i32 = arith.constant 0 : i32
    %c0_i32_0 = arith.constant 0 : i32
    %c0_i32_1 = arith.constant 0 : i32
    %c0_i32_2 = arith.constant 0 : i32
    return %arg0, %c0_i32, %c0_i32_0, %c0_i32_1 : i32, i32, i32, i32
  }
  func.func @transform_1(%arg0: i32, %arg1: i32) -> i32 {
    %c0_i32 = arith.constant 0 : i32
    %c0_i32_0 = arith.constant 0 : i32
    return %c0_i32 : i32
  }
  func.func @transform_2(%arg0: i32, %arg1: i32) -> i32 {
    %c0_i32 = arith.constant 0 : i32
    %c0_i32_0 = arith.constant 0 : i32
    return %c0_i32 : i32
  }
  func.func @transform_3(%arg0: i32, %arg1: i32) -> (i32, i32, i32, i32) {
    %c0_i32 = arith.constant 0 : i32
    %c0_i32_0 = arith.constant 0 : i32
    %c0_i32_1 = arith.constant 0 : i32
    return %arg0, %c0_i32, %arg1, %c0_i32_0 : i32, i32, i32, i32
  }
  func.func @transform_4(%arg0: i32, %arg1: i32) -> (i32, i32, i32) {
    %c0_i32 = arith.constant 0 : i32
    %c0_i32_0 = arith.constant 0 : i32
    %c0_i32_1 = arith.constant 0 : i32
    return %arg0, %c0_i32, %c0_i32_0 : i32, i32, i32
  }
  func.func @transform_5(%arg0: i32, %arg1: i32) -> (i32, i32, i32) {
    %c0_i32 = arith.constant 0 : i32
    %c0_i32_0 = arith.constant 0 : i32
    %c0_i32_1 = arith.constant 0 : i32
    return %arg0, %c0_i32, %c0_i32_0 : i32, i32, i32
  }
}

module attributes {stable_mosaic.version = 11 : i64} {
  func.func @kernel(%arg0: i32, %arg1: i32, %arg2: memref<1x4x16x16xf32, #tpu.memory_space<vmem>>, %arg3: memref<36xf32, #tpu.memory_space<smem>>, %arg4: memref<32xf32, #tpu.memory_space<smem>>, %arg5: memref<4xf32, #tpu.memory_space<smem>>, %arg6: memref<4xf32, #tpu.memory_space<smem>>, %arg7: memref<1x8x8x16xf32, #tpu.memory_space<vmem>>, %arg8: memref<1x8x16xf32, #tpu.memory_space<vmem>>, %arg9: memref<1x8x16xf32, #tpu.memory_space<vmem>>, %arg10: memref<4x18x18xf32, #tpu.memory_space<vmem>>) attributes {dimension_semantics = [#tpu.dimension_semantics<parallel>, #tpu.dimension_semantics<arbitrary>], iteration_bounds = array<i64: 2, 2>, scalar_prefetch = 0 : i64, scratch_operands = 1 : i64, tpu.core_type = #tpu.core_type<tc>, window_params = [{transform_indices = @transform_0, window_bounds = array<i64: 1, 4, 16, 16>}, {transform_indices = @transform_1, window_bounds = array<i64: 36>}, {transform_indices = @transform_2, window_bounds = array<i64: 32>}, {transform_indices = @transform_3, window_bounds = array<i64: 4>}, {transform_indices = @transform_4, window_bounds = array<i64: 4>}, {transform_indices = @transform_5, window_bounds = array<i64: 1, 8, 8, 16>}, {transform_indices = @transform_6, window_bounds = array<i64: 1, 8, 16>}, {transform_indices = @transform_7, window_bounds = array<i64: 1, 8, 16>}]} {
    %c0_i32 = arith.constant 0 : i32
    %0 = arith.cmpi eq, %arg1, %c0_i32 : i32
    %1 = arith.extui %0 : i1 to i32
    %c0_i32_0 = arith.constant 0 : i32
    %2 = arith.cmpi ne, %1, %c0_i32_0 : i32
    scf.if %2 {
      %cst_276 = arith.constant 0.000000e+00 : f32
      %552 = vector.broadcast %cst_276 : f32 to vector<4x18x18xf32>
      %c0_277 = arith.constant 0 : index
      %c0_278 = arith.constant 0 : index
      %c0_279 = arith.constant 0 : index
      %553 = vector.load %arg10[%c0_277, %c0_278, %c0_279] : memref<4x18x18xf32, #tpu.memory_space<vmem>>, vector<4x18x18xf32>
      tpu.vector_store %arg10[%c0_277, %c0_278, %c0_279], %552 {strides = array<i32>} : memref<4x18x18xf32, #tpu.memory_space<vmem>>, vector<4x18x18xf32>,
      %c0_280 = arith.constant 0 : index
      %c0_281 = arith.constant 0 : index
      %c0_282 = arith.constant 0 : index
      %c0_283 = arith.constant 0 : index
      %554 = vector.load %arg2[%c0_280, %c0_281, %c0_282, %c0_283] : memref<1x4x16x16xf32, #tpu.memory_space<vmem>>, vector<1x1x16x16xf32>
      %555 = vector.shape_cast %554 : vector<1x1x16x16xf32> to vector<16x16xf32>
      %c0_284 = arith.constant 0 : index
      %556 = memref.load %arg5[%c0_284] : memref<4xf32, #tpu.memory_space<smem>>
      %557 = vector.broadcast %556 : f32 to vector<16x16xf32>
      %558 = arith.mulf %555, %557 : vector<16x16xf32>
      %c0_285 = arith.constant 0 : index
      %559 = memref.load %arg6[%c0_285] : memref<4xf32, #tpu.memory_space<smem>>
      %560 = vector.broadcast %559 : f32 to vector<16x16xf32>
      %561 = arith.addf %558, %560 : vector<16x16xf32>
      %cst_286 = arith.constant 0.000000e+00 : f32
      %562 = vector.broadcast %cst_286 : f32 to vector<16x16xf32>
      %563 = arith.maximumf %561, %562 : vector<16x16xf32>
      %c0_287 = arith.constant 0 : index
      %c1_288 = arith.constant 1 : index
      %c1_289 = arith.constant 1 : index
      %564 = vector.load %arg10[%c0_287, %c1_288, %c1_289] : memref<4x18x18xf32, #tpu.memory_space<vmem>>, vector<1x16x16xf32>
      %565 = vector.shape_cast %564 : vector<1x16x16xf32> to vector<16x16xf32>
      %566 = vector.shape_cast %563 : vector<16x16xf32> to vector<1x16x16xf32>
      tpu.vector_store %arg10[%c0_287, %c1_288, %c1_289], %566 {strides = array<i32>} : memref<4x18x18xf32, #tpu.memory_space<vmem>>, vector<1x16x16xf32>,
      %c0_290 = arith.constant 0 : index
      %c1_291 = arith.constant 1 : index
      %c0_292 = arith.constant 0 : index
      %c0_293 = arith.constant 0 : index
      %567 = vector.load %arg2[%c0_290, %c1_291, %c0_292, %c0_293] : memref<1x4x16x16xf32, #tpu.memory_space<vmem>>, vector<1x1x16x16xf32>
      %568 = vector.shape_cast %567 : vector<1x1x16x16xf32> to vector<16x16xf32>
      %c1_294 = arith.constant 1 : index
      %569 = memref.load %arg5[%c1_294] : memref<4xf32, #tpu.memory_space<smem>>
      %570 = vector.broadcast %569 : f32 to vector<16x16xf32>
      %571 = arith.mulf %568, %570 : vector<16x16xf32>
      %c1_295 = arith.constant 1 : index
      %572 = memref.load %arg6[%c1_295] : memref<4xf32, #tpu.memory_space<smem>>
      %573 = vector.broadcast %572 : f32 to vector<16x16xf32>
      %574 = arith.addf %571, %573 : vector<16x16xf32>
      %cst_296 = arith.constant 0.000000e+00 : f32
      %575 = vector.broadcast %cst_296 : f32 to vector<16x16xf32>
      %576 = arith.maximumf %574, %575 : vector<16x16xf32>
      %c1_297 = arith.constant 1 : index
      %c1_298 = arith.constant 1 : index
      %c1_299 = arith.constant 1 : index
      %577 = vector.load %arg10[%c1_297, %c1_298, %c1_299] : memref<4x18x18xf32, #tpu.memory_space<vmem>>, vector<1x16x16xf32>
      %578 = vector.shape_cast %577 : vector<1x16x16xf32> to vector<16x16xf32>
      %579 = vector.shape_cast %576 : vector<16x16xf32> to vector<1x16x16xf32>
      tpu.vector_store %arg10[%c1_297, %c1_298, %c1_299], %579 {strides = array<i32>} : memref<4x18x18xf32, #tpu.memory_space<vmem>>, vector<1x16x16xf32>,
      %c0_300 = arith.constant 0 : index
      %c2_301 = arith.constant 2 : index
      %c0_302 = arith.constant 0 : index
      %c0_303 = arith.constant 0 : index
      %580 = vector.load %arg2[%c0_300, %c2_301, %c0_302, %c0_303] : memref<1x4x16x16xf32, #tpu.memory_space<vmem>>, vector<1x1x16x16xf32>
      %581 = vector.shape_cast %580 : vector<1x1x16x16xf32> to vector<16x16xf32>
      %c2_304 = arith.constant 2 : index
      %582 = memref.load %arg5[%c2_304] : memref<4xf32, #tpu.memory_space<smem>>
      %583 = vector.broadcast %582 : f32 to vector<16x16xf32>
      %584 = arith.mulf %581, %583 : vector<16x16xf32>
      %c2_305 = arith.constant 2 : index
      %585 = memref.load %arg6[%c2_305] : memref<4xf32, #tpu.memory_space<smem>>
      %586 = vector.broadcast %585 : f32 to vector<16x16xf32>
      %587 = arith.addf %584, %586 : vector<16x16xf32>
      %cst_306 = arith.constant 0.000000e+00 : f32
      %588 = vector.broadcast %cst_306 : f32 to vector<16x16xf32>
      %589 = arith.maximumf %587, %588 : vector<16x16xf32>
      %c2_307 = arith.constant 2 : index
      %c1_308 = arith.constant 1 : index
      %c1_309 = arith.constant 1 : index
      %590 = vector.load %arg10[%c2_307, %c1_308, %c1_309] : memref<4x18x18xf32, #tpu.memory_space<vmem>>, vector<1x16x16xf32>
      %591 = vector.shape_cast %590 : vector<1x16x16xf32> to vector<16x16xf32>
      %592 = vector.shape_cast %589 : vector<16x16xf32> to vector<1x16x16xf32>
      tpu.vector_store %arg10[%c2_307, %c1_308, %c1_309], %592 {strides = array<i32>} : memref<4x18x18xf32, #tpu.memory_space<vmem>>, vector<1x16x16xf32>,
      %c0_310 = arith.constant 0 : index
      %c3_311 = arith.constant 3 : index
      %c0_312 = arith.constant 0 : index
      %c0_313 = arith.constant 0 : index
      %593 = vector.load %arg2[%c0_310, %c3_311, %c0_312, %c0_313] : memref<1x4x16x16xf32, #tpu.memory_space<vmem>>, vector<1x1x16x16xf32>
      %594 = vector.shape_cast %593 : vector<1x1x16x16xf32> to vector<16x16xf32>
      %c3_314 = arith.constant 3 : index
      %595 = memref.load %arg5[%c3_314] : memref<4xf32, #tpu.memory_space<smem>>
      %596 = vector.broadcast %595 : f32 to vector<16x16xf32>
      %597 = arith.mulf %594, %596 : vector<16x16xf32>
      %c3_315 = arith.constant 3 : index
      %598 = memref.load %arg6[%c3_315] : memref<4xf32, #tpu.memory_space<smem>>
      %599 = vector.broadcast %598 : f32 to vector<16x16xf32>
      %600 = arith.addf %597, %599 : vector<16x16xf32>
      %cst_316 = arith.constant 0.000000e+00 : f32
      %601 = vector.broadcast %cst_316 : f32 to vector<16x16xf32>
      %602 = arith.maximumf %600, %601 : vector<16x16xf32>
      %c3_317 = arith.constant 3 : index
      %c1_318 = arith.constant 1 : index
      %c1_319 = arith.constant 1 : index
      %603 = vector.load %arg10[%c3_317, %c1_318, %c1_319] : memref<4x18x18xf32, #tpu.memory_space<vmem>>, vector<1x16x16xf32>
      %604 = vector.shape_cast %603 : vector<1x16x16xf32> to vector<16x16xf32>
      %605 = vector.shape_cast %602 : vector<16x16xf32> to vector<1x16x16xf32>
      tpu.vector_store %arg10[%c3_317, %c1_318, %c1_319], %605 {strides = array<i32>} : memref<4x18x18xf32, #tpu.memory_space<vmem>>, vector<1x16x16xf32>,
    } else {
    }
    %c8_i32 = arith.constant 8 : i32
    %3 = arith.muli %arg1, %c8_i32 : i32
    %4 = tpu.assume_multiple %3, 8 : i32
    %cst = arith.constant 0.000000e+00 : f32
    %5 = vector.broadcast %cst : f32 to vector<8x16xf32>
    %c0_i32_1 = arith.constant 0 : i32
    %6 = arith.addi %c0_i32_1, %4 : i32
    %c0_i32_2 = arith.constant 0 : i32
    %7 = arith.addi %6, %c0_i32_2 : i32
    %c0 = arith.constant 0 : index
    %8 = arith.index_cast %7 : i32 to index
    %c0_3 = arith.constant 0 : index
    %9 = vector.load %arg10[%c0, %8, %c0_3] : memref<4x18x18xf32, #tpu.memory_space<vmem>>, vector<1x8x16xf32>
    %10 = vector.shape_cast %9 : vector<1x8x16xf32> to vector<8x16xf32>
    %c0_4 = arith.constant 0 : index
    %11 = memref.load %arg3[%c0_4] : memref<36xf32, #tpu.memory_space<smem>>
    %12 = vector.broadcast %11 : f32 to vector<8x16xf32>
    %13 = arith.mulf %10, %12 : vector<8x16xf32>
    %14 = arith.addf %5, %13 : vector<8x16xf32>
    %c0_5 = arith.constant 0 : index
    %15 = arith.index_cast %7 : i32 to index
    %c1 = arith.constant 1 : index
    %16 = vector.load %arg10[%c0_5, %15, %c1] : memref<4x18x18xf32, #tpu.memory_space<vmem>>, vector<1x8x16xf32>
    %17 = vector.shape_cast %16 : vector<1x8x16xf32> to vector<8x16xf32>
    %c4 = arith.constant 4 : index
    %18 = memref.load %arg3[%c4] : memref<36xf32, #tpu.memory_space<smem>>
    %19 = vector.broadcast %18 : f32 to vector<8x16xf32>
    %20 = arith.mulf %17, %19 : vector<8x16xf32>
    %21 = arith.addf %14, %20 : vector<8x16xf32>
    %c0_6 = arith.constant 0 : index
    %22 = arith.index_cast %7 : i32 to index
    %c2 = arith.constant 2 : index
    %23 = vector.load %arg10[%c0_6, %22, %c2] : memref<4x18x18xf32, #tpu.memory_space<vmem>>, vector<1x8x16xf32>
    %24 = vector.shape_cast %23 : vector<1x8x16xf32> to vector<8x16xf32>
    %c8 = arith.constant 8 : index
    %25 = memref.load %arg3[%c8] : memref<36xf32, #tpu.memory_space<smem>>
    %26 = vector.broadcast %25 : f32 to vector<8x16xf32>
    %27 = arith.mulf %24, %26 : vector<8x16xf32>
    %28 = arith.addf %21, %27 : vector<8x16xf32>
    %c0_i32_7 = arith.constant 0 : i32
    %29 = arith.addi %c0_i32_7, %4 : i32
    %c1_i32 = arith.constant 1 : i32
    %30 = arith.addi %29, %c1_i32 : i32
    %c0_8 = arith.constant 0 : index
    %31 = arith.index_cast %30 : i32 to index
    %c0_9 = arith.constant 0 : index
    %32 = vector.load %arg10[%c0_8, %31, %c0_9] : memref<4x18x18xf32, #tpu.memory_space<vmem>>, vector<1x8x16xf32>
    %33 = vector.shape_cast %32 : vector<1x8x16xf32> to vector<8x16xf32>
    %c12 = arith.constant 12 : index
    %34 = memref.load %arg3[%c12] : memref<36xf32, #tpu.memory_space<smem>>
    %35 = vector.broadcast %34 : f32 to vector<8x16xf32>
    %36 = arith.mulf %33, %35 : vector<8x16xf32>
    %37 = arith.addf %28, %36 : vector<8x16xf32>
    %c0_10 = arith.constant 0 : index
    %38 = arith.index_cast %30 : i32 to index
    %c1_11 = arith.constant 1 : index
    %39 = vector.load %arg10[%c0_10, %38, %c1_11] : memref<4x18x18xf32, #tpu.memory_space<vmem>>, vector<1x8x16xf32>
    %40 = vector.shape_cast %39 : vector<1x8x16xf32> to vector<8x16xf32>
    %c16 = arith.constant 16 : index
    %41 = memref.load %arg3[%c16] : memref<36xf32, #tpu.memory_space<smem>>
    %42 = vector.broadcast %41 : f32 to vector<8x16xf32>
    %43 = arith.mulf %40, %42 : vector<8x16xf32>
    %44 = arith.addf %37, %43 : vector<8x16xf32>
    %c0_12 = arith.constant 0 : index
    %45 = arith.index_cast %30 : i32 to index
    %c2_13 = arith.constant 2 : index
    %46 = vector.load %arg10[%c0_12, %45, %c2_13] : memref<4x18x18xf32, #tpu.memory_space<vmem>>, vector<1x8x16xf32>
    %47 = vector.shape_cast %46 : vector<1x8x16xf32> to vector<8x16xf32>
    %c20 = arith.constant 20 : index
    %48 = memref.load %arg3[%c20] : memref<36xf32, #tpu.memory_space<smem>>
    %49 = vector.broadcast %48 : f32 to vector<8x16xf32>
    %50 = arith.mulf %47, %49 : vector<8x16xf32>
    %51 = arith.addf %44, %50 : vector<8x16xf32>
    %c0_i32_14 = arith.constant 0 : i32
    %52 = arith.addi %c0_i32_14, %4 : i32
    %c2_i32 = arith.constant 2 : i32
    %53 = arith.addi %52, %c2_i32 : i32
    %c0_15 = arith.constant 0 : index
    %54 = arith.index_cast %53 : i32 to index
    %c0_16 = arith.constant 0 : index
    %55 = vector.load %arg10[%c0_15, %54, %c0_16] : memref<4x18x18xf32, #tpu.memory_space<vmem>>, vector<1x8x16xf32>
    %56 = vector.shape_cast %55 : vector<1x8x16xf32> to vector<8x16xf32>
    %c24 = arith.constant 24 : index
    %57 = memref.load %arg3[%c24] : memref<36xf32, #tpu.memory_space<smem>>
    %58 = vector.broadcast %57 : f32 to vector<8x16xf32>
    %59 = arith.mulf %56, %58 : vector<8x16xf32>
    %60 = arith.addf %51, %59 : vector<8x16xf32>
    %c0_17 = arith.constant 0 : index
    %61 = arith.index_cast %53 : i32 to index
    %c1_18 = arith.constant 1 : index
    %62 = vector.load %arg10[%c0_17, %61, %c1_18] : memref<4x18x18xf32, #tpu.memory_space<vmem>>, vector<1x8x16xf32>
    %63 = vector.shape_cast %62 : vector<1x8x16xf32> to vector<8x16xf32>
    %c28 = arith.constant 28 : index
    %64 = memref.load %arg3[%c28] : memref<36xf32, #tpu.memory_space<smem>>
    %65 = vector.broadcast %64 : f32 to vector<8x16xf32>
    %66 = arith.mulf %63, %65 : vector<8x16xf32>
    %67 = arith.addf %60, %66 : vector<8x16xf32>
    %c0_19 = arith.constant 0 : index
    %68 = arith.index_cast %53 : i32 to index
    %c2_20 = arith.constant 2 : index
    %69 = vector.load %arg10[%c0_19, %68, %c2_20] : memref<4x18x18xf32, #tpu.memory_space<vmem>>, vector<1x8x16xf32>
    %70 = vector.shape_cast %69 : vector<1x8x16xf32> to vector<8x16xf32>
    %c32 = arith.constant 32 : index
    %71 = memref.load %arg3[%c32] : memref<36xf32, #tpu.memory_space<smem>>
    %72 = vector.broadcast %71 : f32 to vector<8x16xf32>
    %73 = arith.mulf %70, %72 : vector<8x16xf32>
    %74 = arith.addf %67, %73 : vector<8x16xf32>
    %cst_21 = arith.constant 0.000000e+00 : f32
    %75 = vector.broadcast %cst_21 : f32 to vector<8x16xf32>
    %c0_i32_22 = arith.constant 0 : i32
    %76 = arith.addi %c0_i32_22, %4 : i32
    %c0_i32_23 = arith.constant 0 : i32
    %77 = arith.addi %76, %c0_i32_23 : i32
    %c1_24 = arith.constant 1 : index
    %78 = arith.index_cast %77 : i32 to index
    %c0_25 = arith.constant 0 : index
    %79 = vector.load %arg10[%c1_24, %78, %c0_25] : memref<4x18x18xf32, #tpu.memory_space<vmem>>, vector<1x8x16xf32>
    %80 = vector.shape_cast %79 : vector<1x8x16xf32> to vector<8x16xf32>
    %c1_26 = arith.constant 1 : index
    %81 = memref.load %arg3[%c1_26] : memref<36xf32, #tpu.memory_space<smem>>
    %82 = vector.broadcast %81 : f32 to vector<8x16xf32>
    %83 = arith.mulf %80, %82 : vector<8x16xf32>
    %84 = arith.addf %75, %83 : vector<8x16xf32>
    %c1_27 = arith.constant 1 : index
    %85 = arith.index_cast %77 : i32 to index
    %c1_28 = arith.constant 1 : index
    %86 = vector.load %arg10[%c1_27, %85, %c1_28] : memref<4x18x18xf32, #tpu.memory_space<vmem>>, vector<1x8x16xf32>
    %87 = vector.shape_cast %86 : vector<1x8x16xf32> to vector<8x16xf32>
    %c5 = arith.constant 5 : index
    %88 = memref.load %arg3[%c5] : memref<36xf32, #tpu.memory_space<smem>>
    %89 = vector.broadcast %88 : f32 to vector<8x16xf32>
    %90 = arith.mulf %87, %89 : vector<8x16xf32>
    %91 = arith.addf %84, %90 : vector<8x16xf32>
    %c1_29 = arith.constant 1 : index
    %92 = arith.index_cast %77 : i32 to index
    %c2_30 = arith.constant 2 : index
    %93 = vector.load %arg10[%c1_29, %92, %c2_30] : memref<4x18x18xf32, #tpu.memory_space<vmem>>, vector<1x8x16xf32>
    %94 = vector.shape_cast %93 : vector<1x8x16xf32> to vector<8x16xf32>
    %c9 = arith.constant 9 : index
    %95 = memref.load %arg3[%c9] : memref<36xf32, #tpu.memory_space<smem>>
    %96 = vector.broadcast %95 : f32 to vector<8x16xf32>
    %97 = arith.mulf %94, %96 : vector<8x16xf32>
    %98 = arith.addf %91, %97 : vector<8x16xf32>
    %c0_i32_31 = arith.constant 0 : i32
    %99 = arith.addi %c0_i32_31, %4 : i32
    %c1_i32_32 = arith.constant 1 : i32
    %100 = arith.addi %99, %c1_i32_32 : i32
    %c1_33 = arith.constant 1 : index
    %101 = arith.index_cast %100 : i32 to index
    %c0_34 = arith.constant 0 : index
    %102 = vector.load %arg10[%c1_33, %101, %c0_34] : memref<4x18x18xf32, #tpu.memory_space<vmem>>, vector<1x8x16xf32>
    %103 = vector.shape_cast %102 : vector<1x8x16xf32> to vector<8x16xf32>
    %c13 = arith.constant 13 : index
    %104 = memref.load %arg3[%c13] : memref<36xf32, #tpu.memory_space<smem>>
    %105 = vector.broadcast %104 : f32 to vector<8x16xf32>
    %106 = arith.mulf %103, %105 : vector<8x16xf32>
    %107 = arith.addf %98, %106 : vector<8x16xf32>
    %c1_35 = arith.constant 1 : index
    %108 = arith.index_cast %100 : i32 to index
    %c1_36 = arith.constant 1 : index
    %109 = vector.load %arg10[%c1_35, %108, %c1_36] : memref<4x18x18xf32, #tpu.memory_space<vmem>>, vector<1x8x16xf32>
    %110 = vector.shape_cast %109 : vector<1x8x16xf32> to vector<8x16xf32>
    %c17 = arith.constant 17 : index
    %111 = memref.load %arg3[%c17] : memref<36xf32, #tpu.memory_space<smem>>
    %112 = vector.broadcast %111 : f32 to vector<8x16xf32>
    %113 = arith.mulf %110, %112 : vector<8x16xf32>
    %114 = arith.addf %107, %113 : vector<8x16xf32>
    %c1_37 = arith.constant 1 : index
    %115 = arith.index_cast %100 : i32 to index
    %c2_38 = arith.constant 2 : index
    %116 = vector.load %arg10[%c1_37, %115, %c2_38] : memref<4x18x18xf32, #tpu.memory_space<vmem>>, vector<1x8x16xf32>
    %117 = vector.shape_cast %116 : vector<1x8x16xf32> to vector<8x16xf32>
    %c21 = arith.constant 21 : index
    %118 = memref.load %arg3[%c21] : memref<36xf32, #tpu.memory_space<smem>>
    %119 = vector.broadcast %118 : f32 to vector<8x16xf32>
    %120 = arith.mulf %117, %119 : vector<8x16xf32>
    %121 = arith.addf %114, %120 : vector<8x16xf32>
    %c0_i32_39 = arith.constant 0 : i32
    %122 = arith.addi %c0_i32_39, %4 : i32
    %c2_i32_40 = arith.constant 2 : i32
    %123 = arith.addi %122, %c2_i32_40 : i32
    %c1_41 = arith.constant 1 : index
    %124 = arith.index_cast %123 : i32 to index
    %c0_42 = arith.constant 0 : index
    %125 = vector.load %arg10[%c1_41, %124, %c0_42] : memref<4x18x18xf32, #tpu.memory_space<vmem>>, vector<1x8x16xf32>
    %126 = vector.shape_cast %125 : vector<1x8x16xf32> to vector<8x16xf32>
    %c25 = arith.constant 25 : index
    %127 = memref.load %arg3[%c25] : memref<36xf32, #tpu.memory_space<smem>>
    %128 = vector.broadcast %127 : f32 to vector<8x16xf32>
    %129 = arith.mulf %126, %128 : vector<8x16xf32>
    %130 = arith.addf %121, %129 : vector<8x16xf32>
    %c1_43 = arith.constant 1 : index
    %131 = arith.index_cast %123 : i32 to index
    %c1_44 = arith.constant 1 : index
    %132 = vector.load %arg10[%c1_43, %131, %c1_44] : memref<4x18x18xf32, #tpu.memory_space<vmem>>, vector<1x8x16xf32>
    %133 = vector.shape_cast %132 : vector<1x8x16xf32> to vector<8x16xf32>
    %c29 = arith.constant 29 : index
    %134 = memref.load %arg3[%c29] : memref<36xf32, #tpu.memory_space<smem>>
    %135 = vector.broadcast %134 : f32 to vector<8x16xf32>
    %136 = arith.mulf %133, %135 : vector<8x16xf32>
    %137 = arith.addf %130, %136 : vector<8x16xf32>
    %c1_45 = arith.constant 1 : index
    %138 = arith.index_cast %123 : i32 to index
    %c2_46 = arith.constant 2 : index
    %139 = vector.load %arg10[%c1_45, %138, %c2_46] : memref<4x18x18xf32, #tpu.memory_space<vmem>>, vector<1x8x16xf32>
    %140 = vector.shape_cast %139 : vector<1x8x16xf32> to vector<8x16xf32>
    %c33 = arith.constant 33 : index
    %141 = memref.load %arg3[%c33] : memref<36xf32, #tpu.memory_space<smem>>
    %142 = vector.broadcast %141 : f32 to vector<8x16xf32>
    %143 = arith.mulf %140, %142 : vector<8x16xf32>
    %144 = arith.addf %137, %143 : vector<8x16xf32>
    %cst_47 = arith.constant 0.000000e+00 : f32
    %145 = vector.broadcast %cst_47 : f32 to vector<8x16xf32>
    %c0_i32_48 = arith.constant 0 : i32
    %146 = arith.addi %c0_i32_48, %4 : i32
    %c0_i32_49 = arith.constant 0 : i32
    %147 = arith.addi %146, %c0_i32_49 : i32
    %c2_50 = arith.constant 2 : index
    %148 = arith.index_cast %147 : i32 to index
    %c0_51 = arith.constant 0 : index
    %149 = vector.load %arg10[%c2_50, %148, %c0_51] : memref<4x18x18xf32, #tpu.memory_space<vmem>>, vector<1x8x16xf32>
    %150 = vector.shape_cast %149 : vector<1x8x16xf32> to vector<8x16xf32>
    %c2_52 = arith.constant 2 : index
    %151 = memref.load %arg3[%c2_52] : memref<36xf32, #tpu.memory_space<smem>>
    %152 = vector.broadcast %151 : f32 to vector<8x16xf32>
    %153 = arith.mulf %150, %152 : vector<8x16xf32>
    %154 = arith.addf %145, %153 : vector<8x16xf32>
    %c2_53 = arith.constant 2 : index
    %155 = arith.index_cast %147 : i32 to index
    %c1_54 = arith.constant 1 : index
    %156 = vector.load %arg10[%c2_53, %155, %c1_54] : memref<4x18x18xf32, #tpu.memory_space<vmem>>, vector<1x8x16xf32>
    %157 = vector.shape_cast %156 : vector<1x8x16xf32> to vector<8x16xf32>
    %c6 = arith.constant 6 : index
    %158 = memref.load %arg3[%c6] : memref<36xf32, #tpu.memory_space<smem>>
    %159 = vector.broadcast %158 : f32 to vector<8x16xf32>
    %160 = arith.mulf %157, %159 : vector<8x16xf32>
    %161 = arith.addf %154, %160 : vector<8x16xf32>
    %c2_55 = arith.constant 2 : index
    %162 = arith.index_cast %147 : i32 to index
    %c2_56 = arith.constant 2 : index
    %163 = vector.load %arg10[%c2_55, %162, %c2_56] : memref<4x18x18xf32, #tpu.memory_space<vmem>>, vector<1x8x16xf32>
    %164 = vector.shape_cast %163 : vector<1x8x16xf32> to vector<8x16xf32>
    %c10 = arith.constant 10 : index
    %165 = memref.load %arg3[%c10] : memref<36xf32, #tpu.memory_space<smem>>
    %166 = vector.broadcast %165 : f32 to vector<8x16xf32>
    %167 = arith.mulf %164, %166 : vector<8x16xf32>
    %168 = arith.addf %161, %167 : vector<8x16xf32>
    %c0_i32_57 = arith.constant 0 : i32
    %169 = arith.addi %c0_i32_57, %4 : i32
    %c1_i32_58 = arith.constant 1 : i32
    %170 = arith.addi %169, %c1_i32_58 : i32
    %c2_59 = arith.constant 2 : index
    %171 = arith.index_cast %170 : i32 to index
    %c0_60 = arith.constant 0 : index
    %172 = vector.load %arg10[%c2_59, %171, %c0_60] : memref<4x18x18xf32, #tpu.memory_space<vmem>>, vector<1x8x16xf32>
    %173 = vector.shape_cast %172 : vector<1x8x16xf32> to vector<8x16xf32>
    %c14 = arith.constant 14 : index
    %174 = memref.load %arg3[%c14] : memref<36xf32, #tpu.memory_space<smem>>
    %175 = vector.broadcast %174 : f32 to vector<8x16xf32>
    %176 = arith.mulf %173, %175 : vector<8x16xf32>
    %177 = arith.addf %168, %176 : vector<8x16xf32>
    %c2_61 = arith.constant 2 : index
    %178 = arith.index_cast %170 : i32 to index
    %c1_62 = arith.constant 1 : index
    %179 = vector.load %arg10[%c2_61, %178, %c1_62] : memref<4x18x18xf32, #tpu.memory_space<vmem>>, vector<1x8x16xf32>
    %180 = vector.shape_cast %179 : vector<1x8x16xf32> to vector<8x16xf32>
    %c18 = arith.constant 18 : index
    %181 = memref.load %arg3[%c18] : memref<36xf32, #tpu.memory_space<smem>>
    %182 = vector.broadcast %181 : f32 to vector<8x16xf32>
    %183 = arith.mulf %180, %182 : vector<8x16xf32>
    %184 = arith.addf %177, %183 : vector<8x16xf32>
    %c2_63 = arith.constant 2 : index
    %185 = arith.index_cast %170 : i32 to index
    %c2_64 = arith.constant 2 : index
    %186 = vector.load %arg10[%c2_63, %185, %c2_64] : memref<4x18x18xf32, #tpu.memory_space<vmem>>, vector<1x8x16xf32>
    %187 = vector.shape_cast %186 : vector<1x8x16xf32> to vector<8x16xf32>
    %c22 = arith.constant 22 : index
    %188 = memref.load %arg3[%c22] : memref<36xf32, #tpu.memory_space<smem>>
    %189 = vector.broadcast %188 : f32 to vector<8x16xf32>
    %190 = arith.mulf %187, %189 : vector<8x16xf32>
    %191 = arith.addf %184, %190 : vector<8x16xf32>
    %c0_i32_65 = arith.constant 0 : i32
    %192 = arith.addi %c0_i32_65, %4 : i32
    %c2_i32_66 = arith.constant 2 : i32
    %193 = arith.addi %192, %c2_i32_66 : i32
    %c2_67 = arith.constant 2 : index
    %194 = arith.index_cast %193 : i32 to index
    %c0_68 = arith.constant 0 : index
    %195 = vector.load %arg10[%c2_67, %194, %c0_68] : memref<4x18x18xf32, #tpu.memory_space<vmem>>, vector<1x8x16xf32>
    %196 = vector.shape_cast %195 : vector<1x8x16xf32> to vector<8x16xf32>
    %c26 = arith.constant 26 : index
    %197 = memref.load %arg3[%c26] : memref<36xf32, #tpu.memory_space<smem>>
    %198 = vector.broadcast %197 : f32 to vector<8x16xf32>
    %199 = arith.mulf %196, %198 : vector<8x16xf32>
    %200 = arith.addf %191, %199 : vector<8x16xf32>
    %c2_69 = arith.constant 2 : index
    %201 = arith.index_cast %193 : i32 to index
    %c1_70 = arith.constant 1 : index
    %202 = vector.load %arg10[%c2_69, %201, %c1_70] : memref<4x18x18xf32, #tpu.memory_space<vmem>>, vector<1x8x16xf32>
    %203 = vector.shape_cast %202 : vector<1x8x16xf32> to vector<8x16xf32>
    %c30 = arith.constant 30 : index
    %204 = memref.load %arg3[%c30] : memref<36xf32, #tpu.memory_space<smem>>
    %205 = vector.broadcast %204 : f32 to vector<8x16xf32>
    %206 = arith.mulf %203, %205 : vector<8x16xf32>
    %207 = arith.addf %200, %206 : vector<8x16xf32>
    %c2_71 = arith.constant 2 : index
    %208 = arith.index_cast %193 : i32 to index
    %c2_72 = arith.constant 2 : index
    %209 = vector.load %arg10[%c2_71, %208, %c2_72] : memref<4x18x18xf32, #tpu.memory_space<vmem>>, vector<1x8x16xf32>
    %210 = vector.shape_cast %209 : vector<1x8x16xf32> to vector<8x16xf32>
    %c34 = arith.constant 34 : index
    %211 = memref.load %arg3[%c34] : memref<36xf32, #tpu.memory_space<smem>>
    %212 = vector.broadcast %211 : f32 to vector<8x16xf32>
    %213 = arith.mulf %210, %212 : vector<8x16xf32>
    %214 = arith.addf %207, %213 : vector<8x16xf32>
    %cst_73 = arith.constant 0.000000e+00 : f32
    %215 = vector.broadcast %cst_73 : f32 to vector<8x16xf32>
    %c0_i32_74 = arith.constant 0 : i32
    %216 = arith.addi %c0_i32_74, %4 : i32
    %c0_i32_75 = arith.constant 0 : i32
    %217 = arith.addi %216, %c0_i32_75 : i32
    %c3 = arith.constant 3 : index
    %218 = arith.index_cast %217 : i32 to index
    %c0_76 = arith.constant 0 : index
    %219 = vector.load %arg10[%c3, %218, %c0_76] : memref<4x18x18xf32, #tpu.memory_space<vmem>>, vector<1x8x16xf32>
    %220 = vector.shape_cast %219 : vector<1x8x16xf32> to vector<8x16xf32>
    %c3_77 = arith.constant 3 : index
    %221 = memref.load %arg3[%c3_77] : memref<36xf32, #tpu.memory_space<smem>>
    %222 = vector.broadcast %221 : f32 to vector<8x16xf32>
    %223 = arith.mulf %220, %222 : vector<8x16xf32>
    %224 = arith.addf %215, %223 : vector<8x16xf32>
    %c3_78 = arith.constant 3 : index
    %225 = arith.index_cast %217 : i32 to index
    %c1_79 = arith.constant 1 : index
    %226 = vector.load %arg10[%c3_78, %225, %c1_79] : memref<4x18x18xf32, #tpu.memory_space<vmem>>, vector<1x8x16xf32>
    %227 = vector.shape_cast %226 : vector<1x8x16xf32> to vector<8x16xf32>
    %c7 = arith.constant 7 : index
    %228 = memref.load %arg3[%c7] : memref<36xf32, #tpu.memory_space<smem>>
    %229 = vector.broadcast %228 : f32 to vector<8x16xf32>
    %230 = arith.mulf %227, %229 : vector<8x16xf32>
    %231 = arith.addf %224, %230 : vector<8x16xf32>
    %c3_80 = arith.constant 3 : index
    %232 = arith.index_cast %217 : i32 to index
    %c2_81 = arith.constant 2 : index
    %233 = vector.load %arg10[%c3_80, %232, %c2_81] : memref<4x18x18xf32, #tpu.memory_space<vmem>>, vector<1x8x16xf32>
    %234 = vector.shape_cast %233 : vector<1x8x16xf32> to vector<8x16xf32>
    %c11 = arith.constant 11 : index
    %235 = memref.load %arg3[%c11] : memref<36xf32, #tpu.memory_space<smem>>
    %236 = vector.broadcast %235 : f32 to vector<8x16xf32>
    %237 = arith.mulf %234, %236 : vector<8x16xf32>
    %238 = arith.addf %231, %237 : vector<8x16xf32>
    %c0_i32_82 = arith.constant 0 : i32
    %239 = arith.addi %c0_i32_82, %4 : i32
    %c1_i32_83 = arith.constant 1 : i32
    %240 = arith.addi %239, %c1_i32_83 : i32
    %c3_84 = arith.constant 3 : index
    %241 = arith.index_cast %240 : i32 to index
    %c0_85 = arith.constant 0 : index
    %242 = vector.load %arg10[%c3_84, %241, %c0_85] : memref<4x18x18xf32, #tpu.memory_space<vmem>>, vector<1x8x16xf32>
    %243 = vector.shape_cast %242 : vector<1x8x16xf32> to vector<8x16xf32>
    %c15 = arith.constant 15 : index
    %244 = memref.load %arg3[%c15] : memref<36xf32, #tpu.memory_space<smem>>
    %245 = vector.broadcast %244 : f32 to vector<8x16xf32>
    %246 = arith.mulf %243, %245 : vector<8x16xf32>
    %247 = arith.addf %238, %246 : vector<8x16xf32>
    %c3_86 = arith.constant 3 : index
    %248 = arith.index_cast %240 : i32 to index
    %c1_87 = arith.constant 1 : index
    %249 = vector.load %arg10[%c3_86, %248, %c1_87] : memref<4x18x18xf32, #tpu.memory_space<vmem>>, vector<1x8x16xf32>
    %250 = vector.shape_cast %249 : vector<1x8x16xf32> to vector<8x16xf32>
    %c19 = arith.constant 19 : index
    %251 = memref.load %arg3[%c19] : memref<36xf32, #tpu.memory_space<smem>>
    %252 = vector.broadcast %251 : f32 to vector<8x16xf32>
    %253 = arith.mulf %250, %252 : vector<8x16xf32>
    %254 = arith.addf %247, %253 : vector<8x16xf32>
    %c3_88 = arith.constant 3 : index
    %255 = arith.index_cast %240 : i32 to index
    %c2_89 = arith.constant 2 : index
    %256 = vector.load %arg10[%c3_88, %255, %c2_89] : memref<4x18x18xf32, #tpu.memory_space<vmem>>, vector<1x8x16xf32>
    %257 = vector.shape_cast %256 : vector<1x8x16xf32> to vector<8x16xf32>
    %c23 = arith.constant 23 : index
    %258 = memref.load %arg3[%c23] : memref<36xf32, #tpu.memory_space<smem>>
    %259 = vector.broadcast %258 : f32 to vector<8x16xf32>
    %260 = arith.mulf %257, %259 : vector<8x16xf32>
    %261 = arith.addf %254, %260 : vector<8x16xf32>
    %c0_i32_90 = arith.constant 0 : i32
    %262 = arith.addi %c0_i32_90, %4 : i32
    %c2_i32_91 = arith.constant 2 : i32
    %263 = arith.addi %262, %c2_i32_91 : i32
    %c3_92 = arith.constant 3 : index
    %264 = arith.index_cast %263 : i32 to index
    %c0_93 = arith.constant 0 : index
    %265 = vector.load %arg10[%c3_92, %264, %c0_93] : memref<4x18x18xf32, #tpu.memory_space<vmem>>, vector<1x8x16xf32>
    %266 = vector.shape_cast %265 : vector<1x8x16xf32> to vector<8x16xf32>
    %c27 = arith.constant 27 : index
    %267 = memref.load %arg3[%c27] : memref<36xf32, #tpu.memory_space<smem>>
    %268 = vector.broadcast %267 : f32 to vector<8x16xf32>
    %269 = arith.mulf %266, %268 : vector<8x16xf32>
    %270 = arith.addf %261, %269 : vector<8x16xf32>
    %c3_94 = arith.constant 3 : index
    %271 = arith.index_cast %263 : i32 to index
    %c1_95 = arith.constant 1 : index
    %272 = vector.load %arg10[%c3_94, %271, %c1_95] : memref<4x18x18xf32, #tpu.memory_space<vmem>>, vector<1x8x16xf32>
    %273 = vector.shape_cast %272 : vector<1x8x16xf32> to vector<8x16xf32>
    %c31 = arith.constant 31 : index
    %274 = memref.load %arg3[%c31] : memref<36xf32, #tpu.memory_space<smem>>
    %275 = vector.broadcast %274 : f32 to vector<8x16xf32>
    %276 = arith.mulf %273, %275 : vector<8x16xf32>
    %277 = arith.addf %270, %276 : vector<8x16xf32>
    %c3_96 = arith.constant 3 : index
    %278 = arith.index_cast %263 : i32 to index
    %c2_97 = arith.constant 2 : index
    %279 = vector.load %arg10[%c3_96, %278, %c2_97] : memref<4x18x18xf32, #tpu.memory_space<vmem>>, vector<1x8x16xf32>
    %280 = vector.shape_cast %279 : vector<1x8x16xf32> to vector<8x16xf32>
    %c35 = arith.constant 35 : index
    %281 = memref.load %arg3[%c35] : memref<36xf32, #tpu.memory_space<smem>>
    %282 = vector.broadcast %281 : f32 to vector<8x16xf32>
    %283 = arith.mulf %280, %282 : vector<8x16xf32>
    %284 = arith.addf %277, %283 : vector<8x16xf32>
    %c0_i32_98 = arith.constant 0 : i32
    %285 = arith.cmpi eq, %arg1, %c0_i32_98 : i32
    %286 = arith.extui %285 : i1 to i32
    %c0_i32_99 = arith.constant 0 : i32
    %287 = arith.cmpi ne, %286, %c0_i32_99 : i32
    scf.if %287 {
      %cst_276 = arith.constant 0.000000e+00 : f32
      %552 = vector.broadcast %cst_276 : f32 to vector<8x16xf32>
      %c0_277 = arith.constant 0 : index
      %c0_278 = arith.constant 0 : index
      %c0_279 = arith.constant 0 : index
      %553 = vector.load %arg8[%c0_277, %c0_278, %c0_279] : memref<1x8x16xf32, #tpu.memory_space<vmem>>, vector<1x8x16xf32>
      %554 = vector.shape_cast %553 : vector<1x8x16xf32> to vector<8x16xf32>
      %555 = vector.shape_cast %552 : vector<8x16xf32> to vector<1x8x16xf32>
      tpu.vector_store %arg8[%c0_277, %c0_278, %c0_279], %555 {strides = array<i32>} : memref<1x8x16xf32, #tpu.memory_space<vmem>>, vector<1x8x16xf32>,
      %cst_280 = arith.constant 0.000000e+00 : f32
      %556 = vector.broadcast %cst_280 : f32 to vector<8x16xf32>
      %c0_281 = arith.constant 0 : index
      %c0_282 = arith.constant 0 : index
      %c0_283 = arith.constant 0 : index
      %557 = vector.load %arg9[%c0_281, %c0_282, %c0_283] : memref<1x8x16xf32, #tpu.memory_space<vmem>>, vector<1x8x16xf32>
      %558 = vector.shape_cast %557 : vector<1x8x16xf32> to vector<8x16xf32>
      %559 = vector.shape_cast %556 : vector<8x16xf32> to vector<1x8x16xf32>
      tpu.vector_store %arg9[%c0_281, %c0_282, %c0_283], %559 {strides = array<i32>} : memref<1x8x16xf32, #tpu.memory_space<vmem>>, vector<1x8x16xf32>,
    } else {
    }
    %c0_100 = arith.constant 0 : index
    %288 = memref.load %arg4[%c0_100] : memref<32xf32, #tpu.memory_space<smem>>
    %289 = vector.broadcast %288 : f32 to vector<8x16xf32>
    %290 = arith.mulf %74, %289 : vector<8x16xf32>
    %c8_101 = arith.constant 8 : index
    %291 = memref.load %arg4[%c8_101] : memref<32xf32, #tpu.memory_space<smem>>
    %292 = vector.broadcast %291 : f32 to vector<8x16xf32>
    %293 = arith.mulf %144, %292 : vector<8x16xf32>
    %294 = arith.addf %290, %293 : vector<8x16xf32>
    %c16_102 = arith.constant 16 : index
    %295 = memref.load %arg4[%c16_102] : memref<32xf32, #tpu.memory_space<smem>>
    %296 = vector.broadcast %295 : f32 to vector<8x16xf32>
    %297 = arith.mulf %214, %296 : vector<8x16xf32>
    %298 = arith.addf %294, %297 : vector<8x16xf32>
    %c24_103 = arith.constant 24 : index
    %299 = memref.load %arg4[%c24_103] : memref<32xf32, #tpu.memory_space<smem>>
    %300 = vector.broadcast %299 : f32 to vector<8x16xf32>
    %301 = arith.mulf %284, %300 : vector<8x16xf32>
    %302 = arith.addf %298, %301 : vector<8x16xf32>
    %c0_104 = arith.constant 0 : index
    %c0_105 = arith.constant 0 : index
    %c0_106 = arith.constant 0 : index
    %c0_107 = arith.constant 0 : index
    %303 = vector.load %arg7[%c0_104, %c0_105, %c0_106, %c0_107] : memref<1x8x8x16xf32, #tpu.memory_space<vmem>>, vector<1x1x8x16xf32>
    %304 = vector.shape_cast %303 : vector<1x1x8x16xf32> to vector<8x16xf32>
    %305 = vector.shape_cast %302 : vector<8x16xf32> to vector<1x1x8x16xf32>
    tpu.vector_store %arg7[%c0_104, %c0_105, %c0_106, %c0_107], %305 {strides = array<i32>} : memref<1x8x8x16xf32, #tpu.memory_space<vmem>>, vector<1x1x8x16xf32>,
    %c0_108 = arith.constant 0 : index
    %c0_109 = arith.constant 0 : index
    %c0_110 = arith.constant 0 : index
    %306 = vector.load %arg8[%c0_108, %c0_109, %c0_110] : memref<1x8x16xf32, #tpu.memory_space<vmem>>, vector<1x1x16xf32>
    %307 = vector.shape_cast %306 : vector<1x1x16xf32> to vector<16xf32>
    %cst_111 = arith.constant dense<0.000000e+00> : vector<16xf32>
    %308 = vector.multi_reduction <add>, %302, %cst_111 [0] : vector<8x16xf32> to vector<16xf32>
    %309 = arith.addf %307, %308 : vector<16xf32>
    %c0_112 = arith.constant 0 : index
    %c0_113 = arith.constant 0 : index
    %c0_114 = arith.constant 0 : index
    %310 = vector.load %arg8[%c0_112, %c0_113, %c0_114] : memref<1x8x16xf32, #tpu.memory_space<vmem>>, vector<1x1x16xf32>
    %311 = vector.shape_cast %310 : vector<1x1x16xf32> to vector<16xf32>
    %312 = vector.shape_cast %309 : vector<16xf32> to vector<1x1x16xf32>
    tpu.vector_store %arg8[%c0_112, %c0_113, %c0_114], %312 {strides = array<i32>} : memref<1x8x16xf32, #tpu.memory_space<vmem>>, vector<1x1x16xf32>,
    %c0_115 = arith.constant 0 : index
    %c0_116 = arith.constant 0 : index
    %c0_117 = arith.constant 0 : index
    %313 = vector.load %arg9[%c0_115, %c0_116, %c0_117] : memref<1x8x16xf32, #tpu.memory_space<vmem>>, vector<1x1x16xf32>
    %314 = vector.shape_cast %313 : vector<1x1x16xf32> to vector<16xf32>
    %315 = arith.mulf %302, %302 : vector<8x16xf32>
    %cst_118 = arith.constant dense<0.000000e+00> : vector<16xf32>
    %316 = vector.multi_reduction <add>, %315, %cst_118 [0] : vector<8x16xf32> to vector<16xf32>
    %317 = arith.addf %314, %316 : vector<16xf32>
    %c0_119 = arith.constant 0 : index
    %c0_120 = arith.constant 0 : index
    %c0_121 = arith.constant 0 : index
    %318 = vector.load %arg9[%c0_119, %c0_120, %c0_121] : memref<1x8x16xf32, #tpu.memory_space<vmem>>, vector<1x1x16xf32>
    %319 = vector.shape_cast %318 : vector<1x1x16xf32> to vector<16xf32>
    %320 = vector.shape_cast %317 : vector<16xf32> to vector<1x1x16xf32>
    tpu.vector_store %arg9[%c0_119, %c0_120, %c0_121], %320 {strides = array<i32>} : memref<1x8x16xf32, #tpu.memory_space<vmem>>, vector<1x1x16xf32>,
    %c1_122 = arith.constant 1 : index
    %321 = memref.load %arg4[%c1_122] : memref<32xf32, #tpu.memory_space<smem>>
    %322 = vector.broadcast %321 : f32 to vector<8x16xf32>
    %323 = arith.mulf %74, %322 : vector<8x16xf32>
    %c9_123 = arith.constant 9 : index
    %324 = memref.load %arg4[%c9_123] : memref<32xf32, #tpu.memory_space<smem>>
    %325 = vector.broadcast %324 : f32 to vector<8x16xf32>
    %326 = arith.mulf %144, %325 : vector<8x16xf32>
    %327 = arith.addf %323, %326 : vector<8x16xf32>
    %c17_124 = arith.constant 17 : index
    %328 = memref.load %arg4[%c17_124] : memref<32xf32, #tpu.memory_space<smem>>
    %329 = vector.broadcast %328 : f32 to vector<8x16xf32>
    %330 = arith.mulf %214, %329 : vector<8x16xf32>
    %331 = arith.addf %327, %330 : vector<8x16xf32>
    %c25_125 = arith.constant 25 : index
    %332 = memref.load %arg4[%c25_125] : memref<32xf32, #tpu.memory_space<smem>>
    %333 = vector.broadcast %332 : f32 to vector<8x16xf32>
    %334 = arith.mulf %284, %333 : vector<8x16xf32>
    %335 = arith.addf %331, %334 : vector<8x16xf32>
    %c0_126 = arith.constant 0 : index
    %c1_127 = arith.constant 1 : index
    %c0_128 = arith.constant 0 : index
    %c0_129 = arith.constant 0 : index
    %336 = vector.load %arg7[%c0_126, %c1_127, %c0_128, %c0_129] : memref<1x8x8x16xf32, #tpu.memory_space<vmem>>, vector<1x1x8x16xf32>
    %337 = vector.shape_cast %336 : vector<1x1x8x16xf32> to vector<8x16xf32>
    %338 = vector.shape_cast %335 : vector<8x16xf32> to vector<1x1x8x16xf32>
    tpu.vector_store %arg7[%c0_126, %c1_127, %c0_128, %c0_129], %338 {strides = array<i32>} : memref<1x8x8x16xf32, #tpu.memory_space<vmem>>, vector<1x1x8x16xf32>,
    %c0_130 = arith.constant 0 : index
    %c1_131 = arith.constant 1 : index
    %c0_132 = arith.constant 0 : index
    %339 = vector.load %arg8[%c0_130, %c1_131, %c0_132] : memref<1x8x16xf32, #tpu.memory_space<vmem>>, vector<1x1x16xf32>
    %340 = vector.shape_cast %339 : vector<1x1x16xf32> to vector<16xf32>
    %cst_133 = arith.constant dense<0.000000e+00> : vector<16xf32>
    %341 = vector.multi_reduction <add>, %335, %cst_133 [0] : vector<8x16xf32> to vector<16xf32>
    %342 = arith.addf %340, %341 : vector<16xf32>
    %c0_134 = arith.constant 0 : index
    %c1_135 = arith.constant 1 : index
    %c0_136 = arith.constant 0 : index
    %343 = vector.load %arg8[%c0_134, %c1_135, %c0_136] : memref<1x8x16xf32, #tpu.memory_space<vmem>>, vector<1x1x16xf32>
    %344 = vector.shape_cast %343 : vector<1x1x16xf32> to vector<16xf32>
    %345 = vector.shape_cast %342 : vector<16xf32> to vector<1x1x16xf32>
    tpu.vector_store %arg8[%c0_134, %c1_135, %c0_136], %345 {strides = array<i32>} : memref<1x8x16xf32, #tpu.memory_space<vmem>>, vector<1x1x16xf32>,
    %c0_137 = arith.constant 0 : index
    %c1_138 = arith.constant 1 : index
    %c0_139 = arith.constant 0 : index
    %346 = vector.load %arg9[%c0_137, %c1_138, %c0_139] : memref<1x8x16xf32, #tpu.memory_space<vmem>>, vector<1x1x16xf32>
    %347 = vector.shape_cast %346 : vector<1x1x16xf32> to vector<16xf32>
    %348 = arith.mulf %335, %335 : vector<8x16xf32>
    %cst_140 = arith.constant dense<0.000000e+00> : vector<16xf32>
    %349 = vector.multi_reduction <add>, %348, %cst_140 [0] : vector<8x16xf32> to vector<16xf32>
    %350 = arith.addf %347, %349 : vector<16xf32>
    %c0_141 = arith.constant 0 : index
    %c1_142 = arith.constant 1 : index
    %c0_143 = arith.constant 0 : index
    %351 = vector.load %arg9[%c0_141, %c1_142, %c0_143] : memref<1x8x16xf32, #tpu.memory_space<vmem>>, vector<1x1x16xf32>
    %352 = vector.shape_cast %351 : vector<1x1x16xf32> to vector<16xf32>
    %353 = vector.shape_cast %350 : vector<16xf32> to vector<1x1x16xf32>
    tpu.vector_store %arg9[%c0_141, %c1_142, %c0_143], %353 {strides = array<i32>} : memref<1x8x16xf32, #tpu.memory_space<vmem>>, vector<1x1x16xf32>,
    %c2_144 = arith.constant 2 : index
    %354 = memref.load %arg4[%c2_144] : memref<32xf32, #tpu.memory_space<smem>>
    %355 = vector.broadcast %354 : f32 to vector<8x16xf32>
    %356 = arith.mulf %74, %355 : vector<8x16xf32>
    %c10_145 = arith.constant 10 : index
    %357 = memref.load %arg4[%c10_145] : memref<32xf32, #tpu.memory_space<smem>>
    %358 = vector.broadcast %357 : f32 to vector<8x16xf32>
    %359 = arith.mulf %144, %358 : vector<8x16xf32>
    %360 = arith.addf %356, %359 : vector<8x16xf32>
    %c18_146 = arith.constant 18 : index
    %361 = memref.load %arg4[%c18_146] : memref<32xf32, #tpu.memory_space<smem>>
    %362 = vector.broadcast %361 : f32 to vector<8x16xf32>
    %363 = arith.mulf %214, %362 : vector<8x16xf32>
    %364 = arith.addf %360, %363 : vector<8x16xf32>
    %c26_147 = arith.constant 26 : index
    %365 = memref.load %arg4[%c26_147] : memref<32xf32, #tpu.memory_space<smem>>
    %366 = vector.broadcast %365 : f32 to vector<8x16xf32>
    %367 = arith.mulf %284, %366 : vector<8x16xf32>
    %368 = arith.addf %364, %367 : vector<8x16xf32>
    %c0_148 = arith.constant 0 : index
    %c2_149 = arith.constant 2 : index
    %c0_150 = arith.constant 0 : index
    %c0_151 = arith.constant 0 : index
    %369 = vector.load %arg7[%c0_148, %c2_149, %c0_150, %c0_151] : memref<1x8x8x16xf32, #tpu.memory_space<vmem>>, vector<1x1x8x16xf32>
    %370 = vector.shape_cast %369 : vector<1x1x8x16xf32> to vector<8x16xf32>
    %371 = vector.shape_cast %368 : vector<8x16xf32> to vector<1x1x8x16xf32>
    tpu.vector_store %arg7[%c0_148, %c2_149, %c0_150, %c0_151], %371 {strides = array<i32>} : memref<1x8x8x16xf32, #tpu.memory_space<vmem>>, vector<1x1x8x16xf32>,
    %c0_152 = arith.constant 0 : index
    %c2_153 = arith.constant 2 : index
    %c0_154 = arith.constant 0 : index
    %372 = vector.load %arg8[%c0_152, %c2_153, %c0_154] : memref<1x8x16xf32, #tpu.memory_space<vmem>>, vector<1x1x16xf32>
    %373 = vector.shape_cast %372 : vector<1x1x16xf32> to vector<16xf32>
    %cst_155 = arith.constant dense<0.000000e+00> : vector<16xf32>
    %374 = vector.multi_reduction <add>, %368, %cst_155 [0] : vector<8x16xf32> to vector<16xf32>
    %375 = arith.addf %373, %374 : vector<16xf32>
    %c0_156 = arith.constant 0 : index
    %c2_157 = arith.constant 2 : index
    %c0_158 = arith.constant 0 : index
    %376 = vector.load %arg8[%c0_156, %c2_157, %c0_158] : memref<1x8x16xf32, #tpu.memory_space<vmem>>, vector<1x1x16xf32>
    %377 = vector.shape_cast %376 : vector<1x1x16xf32> to vector<16xf32>
    %378 = vector.shape_cast %375 : vector<16xf32> to vector<1x1x16xf32>
    tpu.vector_store %arg8[%c0_156, %c2_157, %c0_158], %378 {strides = array<i32>} : memref<1x8x16xf32, #tpu.memory_space<vmem>>, vector<1x1x16xf32>,
    %c0_159 = arith.constant 0 : index
    %c2_160 = arith.constant 2 : index
    %c0_161 = arith.constant 0 : index
    %379 = vector.load %arg9[%c0_159, %c2_160, %c0_161] : memref<1x8x16xf32, #tpu.memory_space<vmem>>, vector<1x1x16xf32>
    %380 = vector.shape_cast %379 : vector<1x1x16xf32> to vector<16xf32>
    %381 = arith.mulf %368, %368 : vector<8x16xf32>
    %cst_162 = arith.constant dense<0.000000e+00> : vector<16xf32>
    %382 = vector.multi_reduction <add>, %381, %cst_162 [0] : vector<8x16xf32> to vector<16xf32>
    %383 = arith.addf %380, %382 : vector<16xf32>
    %c0_163 = arith.constant 0 : index
    %c2_164 = arith.constant 2 : index
    %c0_165 = arith.constant 0 : index
    %384 = vector.load %arg9[%c0_163, %c2_164, %c0_165] : memref<1x8x16xf32, #tpu.memory_space<vmem>>, vector<1x1x16xf32>
    %385 = vector.shape_cast %384 : vector<1x1x16xf32> to vector<16xf32>
    %386 = vector.shape_cast %383 : vector<16xf32> to vector<1x1x16xf32>
    tpu.vector_store %arg9[%c0_163, %c2_164, %c0_165], %386 {strides = array<i32>} : memref<1x8x16xf32, #tpu.memory_space<vmem>>, vector<1x1x16xf32>,
    %c3_166 = arith.constant 3 : index
    %387 = memref.load %arg4[%c3_166] : memref<32xf32, #tpu.memory_space<smem>>
    %388 = vector.broadcast %387 : f32 to vector<8x16xf32>
    %389 = arith.mulf %74, %388 : vector<8x16xf32>
    %c11_167 = arith.constant 11 : index
    %390 = memref.load %arg4[%c11_167] : memref<32xf32, #tpu.memory_space<smem>>
    %391 = vector.broadcast %390 : f32 to vector<8x16xf32>
    %392 = arith.mulf %144, %391 : vector<8x16xf32>
    %393 = arith.addf %389, %392 : vector<8x16xf32>
    %c19_168 = arith.constant 19 : index
    %394 = memref.load %arg4[%c19_168] : memref<32xf32, #tpu.memory_space<smem>>
    %395 = vector.broadcast %394 : f32 to vector<8x16xf32>
    %396 = arith.mulf %214, %395 : vector<8x16xf32>
    %397 = arith.addf %393, %396 : vector<8x16xf32>
    %c27_169 = arith.constant 27 : index
    %398 = memref.load %arg4[%c27_169] : memref<32xf32, #tpu.memory_space<smem>>
    %399 = vector.broadcast %398 : f32 to vector<8x16xf32>
    %400 = arith.mulf %284, %399 : vector<8x16xf32>
    %401 = arith.addf %397, %400 : vector<8x16xf32>
    %c0_170 = arith.constant 0 : index
    %c3_171 = arith.constant 3 : index
    %c0_172 = arith.constant 0 : index
    %c0_173 = arith.constant 0 : index
    %402 = vector.load %arg7[%c0_170, %c3_171, %c0_172, %c0_173] : memref<1x8x8x16xf32, #tpu.memory_space<vmem>>, vector<1x1x8x16xf32>
    %403 = vector.shape_cast %402 : vector<1x1x8x16xf32> to vector<8x16xf32>
    %404 = vector.shape_cast %401 : vector<8x16xf32> to vector<1x1x8x16xf32>
    tpu.vector_store %arg7[%c0_170, %c3_171, %c0_172, %c0_173], %404 {strides = array<i32>} : memref<1x8x8x16xf32, #tpu.memory_space<vmem>>, vector<1x1x8x16xf32>,
    %c0_174 = arith.constant 0 : index
    %c3_175 = arith.constant 3 : index
    %c0_176 = arith.constant 0 : index
    %405 = vector.load %arg8[%c0_174, %c3_175, %c0_176] : memref<1x8x16xf32, #tpu.memory_space<vmem>>, vector<1x1x16xf32>
    %406 = vector.shape_cast %405 : vector<1x1x16xf32> to vector<16xf32>
    %cst_177 = arith.constant dense<0.000000e+00> : vector<16xf32>
    %407 = vector.multi_reduction <add>, %401, %cst_177 [0] : vector<8x16xf32> to vector<16xf32>
    %408 = arith.addf %406, %407 : vector<16xf32>
    %c0_178 = arith.constant 0 : index
    %c3_179 = arith.constant 3 : index
    %c0_180 = arith.constant 0 : index
    %409 = vector.load %arg8[%c0_178, %c3_179, %c0_180] : memref<1x8x16xf32, #tpu.memory_space<vmem>>, vector<1x1x16xf32>
    %410 = vector.shape_cast %409 : vector<1x1x16xf32> to vector<16xf32>
    %411 = vector.shape_cast %408 : vector<16xf32> to vector<1x1x16xf32>
    tpu.vector_store %arg8[%c0_178, %c3_179, %c0_180], %411 {strides = array<i32>} : memref<1x8x16xf32, #tpu.memory_space<vmem>>, vector<1x1x16xf32>,
    %c0_181 = arith.constant 0 : index
    %c3_182 = arith.constant 3 : index
    %c0_183 = arith.constant 0 : index
    %412 = vector.load %arg9[%c0_181, %c3_182, %c0_183] : memref<1x8x16xf32, #tpu.memory_space<vmem>>, vector<1x1x16xf32>
    %413 = vector.shape_cast %412 : vector<1x1x16xf32> to vector<16xf32>
    %414 = arith.mulf %401, %401 : vector<8x16xf32>
    %cst_184 = arith.constant dense<0.000000e+00> : vector<16xf32>
    %415 = vector.multi_reduction <add>, %414, %cst_184 [0] : vector<8x16xf32> to vector<16xf32>
    %416 = arith.addf %413, %415 : vector<16xf32>
    %c0_185 = arith.constant 0 : index
    %c3_186 = arith.constant 3 : index
    %c0_187 = arith.constant 0 : index
    %417 = vector.load %arg9[%c0_185, %c3_186, %c0_187] : memref<1x8x16xf32, #tpu.memory_space<vmem>>, vector<1x1x16xf32>
    %418 = vector.shape_cast %417 : vector<1x1x16xf32> to vector<16xf32>
    %419 = vector.shape_cast %416 : vector<16xf32> to vector<1x1x16xf32>
    tpu.vector_store %arg9[%c0_185, %c3_186, %c0_187], %419 {strides = array<i32>} : memref<1x8x16xf32, #tpu.memory_space<vmem>>, vector<1x1x16xf32>,
    %c4_188 = arith.constant 4 : index
    %420 = memref.load %arg4[%c4_188] : memref<32xf32, #tpu.memory_space<smem>>
    %421 = vector.broadcast %420 : f32 to vector<8x16xf32>
    %422 = arith.mulf %74, %421 : vector<8x16xf32>
    %c12_189 = arith.constant 12 : index
    %423 = memref.load %arg4[%c12_189] : memref<32xf32, #tpu.memory_space<smem>>
    %424 = vector.broadcast %423 : f32 to vector<8x16xf32>
    %425 = arith.mulf %144, %424 : vector<8x16xf32>
    %426 = arith.addf %422, %425 : vector<8x16xf32>
    %c20_190 = arith.constant 20 : index
    %427 = memref.load %arg4[%c20_190] : memref<32xf32, #tpu.memory_space<smem>>
    %428 = vector.broadcast %427 : f32 to vector<8x16xf32>
    %429 = arith.mulf %214, %428 : vector<8x16xf32>
    %430 = arith.addf %426, %429 : vector<8x16xf32>
    %c28_191 = arith.constant 28 : index
    %431 = memref.load %arg4[%c28_191] : memref<32xf32, #tpu.memory_space<smem>>
    %432 = vector.broadcast %431 : f32 to vector<8x16xf32>
    %433 = arith.mulf %284, %432 : vector<8x16xf32>
    %434 = arith.addf %430, %433 : vector<8x16xf32>
    %c0_192 = arith.constant 0 : index
    %c4_193 = arith.constant 4 : index
    %c0_194 = arith.constant 0 : index
    %c0_195 = arith.constant 0 : index
    %435 = vector.load %arg7[%c0_192, %c4_193, %c0_194, %c0_195] : memref<1x8x8x16xf32, #tpu.memory_space<vmem>>, vector<1x1x8x16xf32>
    %436 = vector.shape_cast %435 : vector<1x1x8x16xf32> to vector<8x16xf32>
    %437 = vector.shape_cast %434 : vector<8x16xf32> to vector<1x1x8x16xf32>
    tpu.vector_store %arg7[%c0_192, %c4_193, %c0_194, %c0_195], %437 {strides = array<i32>} : memref<1x8x8x16xf32, #tpu.memory_space<vmem>>, vector<1x1x8x16xf32>,
    %c0_196 = arith.constant 0 : index
    %c4_197 = arith.constant 4 : index
    %c0_198 = arith.constant 0 : index
    %438 = vector.load %arg8[%c0_196, %c4_197, %c0_198] : memref<1x8x16xf32, #tpu.memory_space<vmem>>, vector<1x1x16xf32>
    %439 = vector.shape_cast %438 : vector<1x1x16xf32> to vector<16xf32>
    %cst_199 = arith.constant dense<0.000000e+00> : vector<16xf32>
    %440 = vector.multi_reduction <add>, %434, %cst_199 [0] : vector<8x16xf32> to vector<16xf32>
    %441 = arith.addf %439, %440 : vector<16xf32>
    %c0_200 = arith.constant 0 : index
    %c4_201 = arith.constant 4 : index
    %c0_202 = arith.constant 0 : index
    %442 = vector.load %arg8[%c0_200, %c4_201, %c0_202] : memref<1x8x16xf32, #tpu.memory_space<vmem>>, vector<1x1x16xf32>
    %443 = vector.shape_cast %442 : vector<1x1x16xf32> to vector<16xf32>
    %444 = vector.shape_cast %441 : vector<16xf32> to vector<1x1x16xf32>
    tpu.vector_store %arg8[%c0_200, %c4_201, %c0_202], %444 {strides = array<i32>} : memref<1x8x16xf32, #tpu.memory_space<vmem>>, vector<1x1x16xf32>,
    %c0_203 = arith.constant 0 : index
    %c4_204 = arith.constant 4 : index
    %c0_205 = arith.constant 0 : index
    %445 = vector.load %arg9[%c0_203, %c4_204, %c0_205] : memref<1x8x16xf32, #tpu.memory_space<vmem>>, vector<1x1x16xf32>
    %446 = vector.shape_cast %445 : vector<1x1x16xf32> to vector<16xf32>
    %447 = arith.mulf %434, %434 : vector<8x16xf32>
    %cst_206 = arith.constant dense<0.000000e+00> : vector<16xf32>
    %448 = vector.multi_reduction <add>, %447, %cst_206 [0] : vector<8x16xf32> to vector<16xf32>
    %449 = arith.addf %446, %448 : vector<16xf32>
    %c0_207 = arith.constant 0 : index
    %c4_208 = arith.constant 4 : index
    %c0_209 = arith.constant 0 : index
    %450 = vector.load %arg9[%c0_207, %c4_208, %c0_209] : memref<1x8x16xf32, #tpu.memory_space<vmem>>, vector<1x1x16xf32>
    %451 = vector.shape_cast %450 : vector<1x1x16xf32> to vector<16xf32>
    %452 = vector.shape_cast %449 : vector<16xf32> to vector<1x1x16xf32>
    tpu.vector_store %arg9[%c0_207, %c4_208, %c0_209], %452 {strides = array<i32>} : memref<1x8x16xf32, #tpu.memory_space<vmem>>, vector<1x1x16xf32>,
    %c5_210 = arith.constant 5 : index
    %453 = memref.load %arg4[%c5_210] : memref<32xf32, #tpu.memory_space<smem>>
    %454 = vector.broadcast %453 : f32 to vector<8x16xf32>
    %455 = arith.mulf %74, %454 : vector<8x16xf32>
    %c13_211 = arith.constant 13 : index
    %456 = memref.load %arg4[%c13_211] : memref<32xf32, #tpu.memory_space<smem>>
    %457 = vector.broadcast %456 : f32 to vector<8x16xf32>
    %458 = arith.mulf %144, %457 : vector<8x16xf32>
    %459 = arith.addf %455, %458 : vector<8x16xf32>
    %c21_212 = arith.constant 21 : index
    %460 = memref.load %arg4[%c21_212] : memref<32xf32, #tpu.memory_space<smem>>
    %461 = vector.broadcast %460 : f32 to vector<8x16xf32>
    %462 = arith.mulf %214, %461 : vector<8x16xf32>
    %463 = arith.addf %459, %462 : vector<8x16xf32>
    %c29_213 = arith.constant 29 : index
    %464 = memref.load %arg4[%c29_213] : memref<32xf32, #tpu.memory_space<smem>>
    %465 = vector.broadcast %464 : f32 to vector<8x16xf32>
    %466 = arith.mulf %284, %465 : vector<8x16xf32>
    %467 = arith.addf %463, %466 : vector<8x16xf32>
    %c0_214 = arith.constant 0 : index
    %c5_215 = arith.constant 5 : index
    %c0_216 = arith.constant 0 : index
    %c0_217 = arith.constant 0 : index
    %468 = vector.load %arg7[%c0_214, %c5_215, %c0_216, %c0_217] : memref<1x8x8x16xf32, #tpu.memory_space<vmem>>, vector<1x1x8x16xf32>
    %469 = vector.shape_cast %468 : vector<1x1x8x16xf32> to vector<8x16xf32>
    %470 = vector.shape_cast %467 : vector<8x16xf32> to vector<1x1x8x16xf32>
    tpu.vector_store %arg7[%c0_214, %c5_215, %c0_216, %c0_217], %470 {strides = array<i32>} : memref<1x8x8x16xf32, #tpu.memory_space<vmem>>, vector<1x1x8x16xf32>,
    %c0_218 = arith.constant 0 : index
    %c5_219 = arith.constant 5 : index
    %c0_220 = arith.constant 0 : index
    %471 = vector.load %arg8[%c0_218, %c5_219, %c0_220] : memref<1x8x16xf32, #tpu.memory_space<vmem>>, vector<1x1x16xf32>
    %472 = vector.shape_cast %471 : vector<1x1x16xf32> to vector<16xf32>
    %cst_221 = arith.constant dense<0.000000e+00> : vector<16xf32>
    %473 = vector.multi_reduction <add>, %467, %cst_221 [0] : vector<8x16xf32> to vector<16xf32>
    %474 = arith.addf %472, %473 : vector<16xf32>
    %c0_222 = arith.constant 0 : index
    %c5_223 = arith.constant 5 : index
    %c0_224 = arith.constant 0 : index
    %475 = vector.load %arg8[%c0_222, %c5_223, %c0_224] : memref<1x8x16xf32, #tpu.memory_space<vmem>>, vector<1x1x16xf32>
    %476 = vector.shape_cast %475 : vector<1x1x16xf32> to vector<16xf32>
    %477 = vector.shape_cast %474 : vector<16xf32> to vector<1x1x16xf32>
    tpu.vector_store %arg8[%c0_222, %c5_223, %c0_224], %477 {strides = array<i32>} : memref<1x8x16xf32, #tpu.memory_space<vmem>>, vector<1x1x16xf32>,
    %c0_225 = arith.constant 0 : index
    %c5_226 = arith.constant 5 : index
    %c0_227 = arith.constant 0 : index
    %478 = vector.load %arg9[%c0_225, %c5_226, %c0_227] : memref<1x8x16xf32, #tpu.memory_space<vmem>>, vector<1x1x16xf32>
    %479 = vector.shape_cast %478 : vector<1x1x16xf32> to vector<16xf32>
    %480 = arith.mulf %467, %467 : vector<8x16xf32>
    %cst_228 = arith.constant dense<0.000000e+00> : vector<16xf32>
    %481 = vector.multi_reduction <add>, %480, %cst_228 [0] : vector<8x16xf32> to vector<16xf32>
    %482 = arith.addf %479, %481 : vector<16xf32>
    %c0_229 = arith.constant 0 : index
    %c5_230 = arith.constant 5 : index
    %c0_231 = arith.constant 0 : index
    %483 = vector.load %arg9[%c0_229, %c5_230, %c0_231] : memref<1x8x16xf32, #tpu.memory_space<vmem>>, vector<1x1x16xf32>
    %484 = vector.shape_cast %483 : vector<1x1x16xf32> to vector<16xf32>
    %485 = vector.shape_cast %482 : vector<16xf32> to vector<1x1x16xf32>
    tpu.vector_store %arg9[%c0_229, %c5_230, %c0_231], %485 {strides = array<i32>} : memref<1x8x16xf32, #tpu.memory_space<vmem>>, vector<1x1x16xf32>,
    %c6_232 = arith.constant 6 : index
    %486 = memref.load %arg4[%c6_232] : memref<32xf32, #tpu.memory_space<smem>>
    %487 = vector.broadcast %486 : f32 to vector<8x16xf32>
    %488 = arith.mulf %74, %487 : vector<8x16xf32>
    %c14_233 = arith.constant 14 : index
    %489 = memref.load %arg4[%c14_233] : memref<32xf32, #tpu.memory_space<smem>>
    %490 = vector.broadcast %489 : f32 to vector<8x16xf32>
    %491 = arith.mulf %144, %490 : vector<8x16xf32>
    %492 = arith.addf %488, %491 : vector<8x16xf32>
    %c22_234 = arith.constant 22 : index
    %493 = memref.load %arg4[%c22_234] : memref<32xf32, #tpu.memory_space<smem>>
    %494 = vector.broadcast %493 : f32 to vector<8x16xf32>
    %495 = arith.mulf %214, %494 : vector<8x16xf32>
    %496 = arith.addf %492, %495 : vector<8x16xf32>
    %c30_235 = arith.constant 30 : index
    %497 = memref.load %arg4[%c30_235] : memref<32xf32, #tpu.memory_space<smem>>
    %498 = vector.broadcast %497 : f32 to vector<8x16xf32>
    %499 = arith.mulf %284, %498 : vector<8x16xf32>
    %500 = arith.addf %496, %499 : vector<8x16xf32>
    %c0_236 = arith.constant 0 : index
    %c6_237 = arith.constant 6 : index
    %c0_238 = arith.constant 0 : index
    %c0_239 = arith.constant 0 : index
    %501 = vector.load %arg7[%c0_236, %c6_237, %c0_238, %c0_239] : memref<1x8x8x16xf32, #tpu.memory_space<vmem>>, vector<1x1x8x16xf32>
    %502 = vector.shape_cast %501 : vector<1x1x8x16xf32> to vector<8x16xf32>
    %503 = vector.shape_cast %500 : vector<8x16xf32> to vector<1x1x8x16xf32>
    tpu.vector_store %arg7[%c0_236, %c6_237, %c0_238, %c0_239], %503 {strides = array<i32>} : memref<1x8x8x16xf32, #tpu.memory_space<vmem>>, vector<1x1x8x16xf32>,
    %c0_240 = arith.constant 0 : index
    %c6_241 = arith.constant 6 : index
    %c0_242 = arith.constant 0 : index
    %504 = vector.load %arg8[%c0_240, %c6_241, %c0_242] : memref<1x8x16xf32, #tpu.memory_space<vmem>>, vector<1x1x16xf32>
    %505 = vector.shape_cast %504 : vector<1x1x16xf32> to vector<16xf32>
    %cst_243 = arith.constant dense<0.000000e+00> : vector<16xf32>
    %506 = vector.multi_reduction <add>, %500, %cst_243 [0] : vector<8x16xf32> to vector<16xf32>
    %507 = arith.addf %505, %506 : vector<16xf32>
    %c0_244 = arith.constant 0 : index
    %c6_245 = arith.constant 6 : index
    %c0_246 = arith.constant 0 : index
    %508 = vector.load %arg8[%c0_244, %c6_245, %c0_246] : memref<1x8x16xf32, #tpu.memory_space<vmem>>, vector<1x1x16xf32>
    %509 = vector.shape_cast %508 : vector<1x1x16xf32> to vector<16xf32>
    %510 = vector.shape_cast %507 : vector<16xf32> to vector<1x1x16xf32>
    tpu.vector_store %arg8[%c0_244, %c6_245, %c0_246], %510 {strides = array<i32>} : memref<1x8x16xf32, #tpu.memory_space<vmem>>, vector<1x1x16xf32>,
    %c0_247 = arith.constant 0 : index
    %c6_248 = arith.constant 6 : index
    %c0_249 = arith.constant 0 : index
    %511 = vector.load %arg9[%c0_247, %c6_248, %c0_249] : memref<1x8x16xf32, #tpu.memory_space<vmem>>, vector<1x1x16xf32>
    %512 = vector.shape_cast %511 : vector<1x1x16xf32> to vector<16xf32>
    %513 = arith.mulf %500, %500 : vector<8x16xf32>
    %cst_250 = arith.constant dense<0.000000e+00> : vector<16xf32>
    %514 = vector.multi_reduction <add>, %513, %cst_250 [0] : vector<8x16xf32> to vector<16xf32>
    %515 = arith.addf %512, %514 : vector<16xf32>
    %c0_251 = arith.constant 0 : index
    %c6_252 = arith.constant 6 : index
    %c0_253 = arith.constant 0 : index
    %516 = vector.load %arg9[%c0_251, %c6_252, %c0_253] : memref<1x8x16xf32, #tpu.memory_space<vmem>>, vector<1x1x16xf32>
    %517 = vector.shape_cast %516 : vector<1x1x16xf32> to vector<16xf32>
    %518 = vector.shape_cast %515 : vector<16xf32> to vector<1x1x16xf32>
    tpu.vector_store %arg9[%c0_251, %c6_252, %c0_253], %518 {strides = array<i32>} : memref<1x8x16xf32, #tpu.memory_space<vmem>>, vector<1x1x16xf32>,
    %c7_254 = arith.constant 7 : index
    %519 = memref.load %arg4[%c7_254] : memref<32xf32, #tpu.memory_space<smem>>
    %520 = vector.broadcast %519 : f32 to vector<8x16xf32>
    %521 = arith.mulf %74, %520 : vector<8x16xf32>
    %c15_255 = arith.constant 15 : index
    %522 = memref.load %arg4[%c15_255] : memref<32xf32, #tpu.memory_space<smem>>
    %523 = vector.broadcast %522 : f32 to vector<8x16xf32>
    %524 = arith.mulf %144, %523 : vector<8x16xf32>
    %525 = arith.addf %521, %524 : vector<8x16xf32>
    %c23_256 = arith.constant 23 : index
    %526 = memref.load %arg4[%c23_256] : memref<32xf32, #tpu.memory_space<smem>>
    %527 = vector.broadcast %526 : f32 to vector<8x16xf32>
    %528 = arith.mulf %214, %527 : vector<8x16xf32>
    %529 = arith.addf %525, %528 : vector<8x16xf32>
    %c31_257 = arith.constant 31 : index
    %530 = memref.load %arg4[%c31_257] : memref<32xf32, #tpu.memory_space<smem>>
    %531 = vector.broadcast %530 : f32 to vector<8x16xf32>
    %532 = arith.mulf %284, %531 : vector<8x16xf32>
    %533 = arith.addf %529, %532 : vector<8x16xf32>
    %c0_258 = arith.constant 0 : index
    %c7_259 = arith.constant 7 : index
    %c0_260 = arith.constant 0 : index
    %c0_261 = arith.constant 0 : index
    %534 = vector.load %arg7[%c0_258, %c7_259, %c0_260, %c0_261] : memref<1x8x8x16xf32, #tpu.memory_space<vmem>>, vector<1x1x8x16xf32>
    %535 = vector.shape_cast %534 : vector<1x1x8x16xf32> to vector<8x16xf32>
    %536 = vector.shape_cast %533 : vector<8x16xf32> to vector<1x1x8x16xf32>
    tpu.vector_store %arg7[%c0_258, %c7_259, %c0_260, %c0_261], %536 {strides = array<i32>} : memref<1x8x8x16xf32, #tpu.memory_space<vmem>>, vector<1x1x8x16xf32>,
    %c0_262 = arith.constant 0 : index
    %c7_263 = arith.constant 7 : index
    %c0_264 = arith.constant 0 : index
    %537 = vector.load %arg8[%c0_262, %c7_263, %c0_264] : memref<1x8x16xf32, #tpu.memory_space<vmem>>, vector<1x1x16xf32>
    %538 = vector.shape_cast %537 : vector<1x1x16xf32> to vector<16xf32>
    %cst_265 = arith.constant dense<0.000000e+00> : vector<16xf32>
    %539 = vector.multi_reduction <add>, %533, %cst_265 [0] : vector<8x16xf32> to vector<16xf32>
    %540 = arith.addf %538, %539 : vector<16xf32>
    %c0_266 = arith.constant 0 : index
    %c7_267 = arith.constant 7 : index
    %c0_268 = arith.constant 0 : index
    %541 = vector.load %arg8[%c0_266, %c7_267, %c0_268] : memref<1x8x16xf32, #tpu.memory_space<vmem>>, vector<1x1x16xf32>
    %542 = vector.shape_cast %541 : vector<1x1x16xf32> to vector<16xf32>
    %543 = vector.shape_cast %540 : vector<16xf32> to vector<1x1x16xf32>
    tpu.vector_store %arg8[%c0_266, %c7_267, %c0_268], %543 {strides = array<i32>} : memref<1x8x16xf32, #tpu.memory_space<vmem>>, vector<1x1x16xf32>,
    %c0_269 = arith.constant 0 : index
    %c7_270 = arith.constant 7 : index
    %c0_271 = arith.constant 0 : index
    %544 = vector.load %arg9[%c0_269, %c7_270, %c0_271] : memref<1x8x16xf32, #tpu.memory_space<vmem>>, vector<1x1x16xf32>
    %545 = vector.shape_cast %544 : vector<1x1x16xf32> to vector<16xf32>
    %546 = arith.mulf %533, %533 : vector<8x16xf32>
    %cst_272 = arith.constant dense<0.000000e+00> : vector<16xf32>
    %547 = vector.multi_reduction <add>, %546, %cst_272 [0] : vector<8x16xf32> to vector<16xf32>
    %548 = arith.addf %545, %547 : vector<16xf32>
    %c0_273 = arith.constant 0 : index
    %c7_274 = arith.constant 7 : index
    %c0_275 = arith.constant 0 : index
    %549 = vector.load %arg9[%c0_273, %c7_274, %c0_275] : memref<1x8x16xf32, #tpu.memory_space<vmem>>, vector<1x1x16xf32>
    %550 = vector.shape_cast %549 : vector<1x1x16xf32> to vector<16xf32>
    %551 = vector.shape_cast %548 : vector<16xf32> to vector<1x1x16xf32>
    tpu.vector_store %arg9[%c0_273, %c7_274, %c0_275], %551 {strides = array<i32>} : memref<1x8x16xf32, #tpu.memory_space<vmem>>, vector<1x1x16xf32>,
    return
  }
  func.func @transform_0(%arg0: i32, %arg1: i32) -> (i32, i32, i32, i32) {
    %c0_i32 = arith.constant 0 : i32
    %c0_i32_0 = arith.constant 0 : i32
    %c0_i32_1 = arith.constant 0 : i32
    %c0_i32_2 = arith.constant 0 : i32
    return %arg0, %c0_i32, %c0_i32_0, %c0_i32_1 : i32, i32, i32, i32
  }
  func.func @transform_1(%arg0: i32, %arg1: i32) -> i32 {
    %c0_i32 = arith.constant 0 : i32
    %c0_i32_0 = arith.constant 0 : i32
    return %c0_i32 : i32
  }
  func.func @transform_2(%arg0: i32, %arg1: i32) -> i32 {
    %c0_i32 = arith.constant 0 : i32
    %c0_i32_0 = arith.constant 0 : i32
    return %c0_i32 : i32
  }
  func.func @transform_3(%arg0: i32, %arg1: i32) -> i32 {
    %c0_i32 = arith.constant 0 : i32
    %c0_i32_0 = arith.constant 0 : i32
    return %c0_i32 : i32
  }
  func.func @transform_4(%arg0: i32, %arg1: i32) -> i32 {
    %c0_i32 = arith.constant 0 : i32
    %c0_i32_0 = arith.constant 0 : i32
    return %c0_i32 : i32
  }
  func.func @transform_5(%arg0: i32, %arg1: i32) -> (i32, i32, i32, i32) {
    %c0_i32 = arith.constant 0 : i32
    %c0_i32_0 = arith.constant 0 : i32
    %c0_i32_1 = arith.constant 0 : i32
    return %arg0, %c0_i32, %arg1, %c0_i32_0 : i32, i32, i32, i32
  }
  func.func @transform_6(%arg0: i32, %arg1: i32) -> (i32, i32, i32) {
    %c0_i32 = arith.constant 0 : i32
    %c0_i32_0 = arith.constant 0 : i32
    %c0_i32_1 = arith.constant 0 : i32
    return %arg0, %c0_i32, %c0_i32_0 : i32, i32, i32
  }
  func.func @transform_7(%arg0: i32, %arg1: i32) -> (i32, i32, i32) {
    %c0_i32 = arith.constant 0 : i32
    %c0_i32_0 = arith.constant 0 : i32
    %c0_i32_1 = arith.constant 0 : i32
    return %arg0, %c0_i32, %c0_i32_0 : i32, i32, i32
  }
}

module attributes {stable_mosaic.version = 11 : i64} {
  func.func @kernel(%arg0: i32, %arg1: i32, %arg2: memref<1x8x8x16xf32, #tpu.memory_space<vmem>>, %arg3: memref<8xf32, #tpu.memory_space<smem>>, %arg4: memref<8xf32, #tpu.memory_space<smem>>, %arg5: memref<1x8x8x16xf32, #tpu.memory_space<vmem>>) attributes {dimension_semantics = [#tpu.dimension_semantics<parallel>, #tpu.dimension_semantics<arbitrary>], iteration_bounds = array<i64: 2, 2>, scalar_prefetch = 0 : i64, scratch_operands = 0 : i64, tpu.core_type = #tpu.core_type<tc>, window_params = [{transform_indices = @transform_0, window_bounds = array<i64: 1, 8, 8, 16>}, {transform_indices = @transform_1, window_bounds = array<i64: 8>}, {transform_indices = @transform_2, window_bounds = array<i64: 8>}, {transform_indices = @transform_3, window_bounds = array<i64: 1, 8, 8, 16>}]} {
    %c0 = arith.constant 0 : index
    %c0_0 = arith.constant 0 : index
    %c0_1 = arith.constant 0 : index
    %c0_2 = arith.constant 0 : index
    %0 = vector.load %arg2[%c0, %c0_0, %c0_1, %c0_2] : memref<1x8x8x16xf32, #tpu.memory_space<vmem>>, vector<1x1x8x16xf32>
    %1 = vector.shape_cast %0 : vector<1x1x8x16xf32> to vector<8x16xf32>
    %c0_3 = arith.constant 0 : index
    %2 = memref.load %arg3[%c0_3] : memref<8xf32, #tpu.memory_space<smem>>
    %3 = vector.broadcast %2 : f32 to vector<8x16xf32>
    %4 = arith.mulf %1, %3 : vector<8x16xf32>
    %c0_4 = arith.constant 0 : index
    %5 = memref.load %arg4[%c0_4] : memref<8xf32, #tpu.memory_space<smem>>
    %6 = vector.broadcast %5 : f32 to vector<8x16xf32>
    %7 = arith.addf %4, %6 : vector<8x16xf32>
    %cst = arith.constant 0.000000e+00 : f32
    %8 = vector.broadcast %cst : f32 to vector<8x16xf32>
    %9 = arith.maximumf %7, %8 : vector<8x16xf32>
    %c0_5 = arith.constant 0 : index
    %c0_6 = arith.constant 0 : index
    %c0_7 = arith.constant 0 : index
    %c0_8 = arith.constant 0 : index
    %10 = vector.load %arg5[%c0_5, %c0_6, %c0_7, %c0_8] : memref<1x8x8x16xf32, #tpu.memory_space<vmem>>, vector<1x1x8x16xf32>
    %11 = vector.shape_cast %10 : vector<1x1x8x16xf32> to vector<8x16xf32>
    %12 = vector.shape_cast %9 : vector<8x16xf32> to vector<1x1x8x16xf32>
    tpu.vector_store %arg5[%c0_5, %c0_6, %c0_7, %c0_8], %12 {strides = array<i32>} : memref<1x8x8x16xf32, #tpu.memory_space<vmem>>, vector<1x1x8x16xf32>,
    %c0_9 = arith.constant 0 : index
    %c1 = arith.constant 1 : index
    %c0_10 = arith.constant 0 : index
    %c0_11 = arith.constant 0 : index
    %13 = vector.load %arg2[%c0_9, %c1, %c0_10, %c0_11] : memref<1x8x8x16xf32, #tpu.memory_space<vmem>>, vector<1x1x8x16xf32>
    %14 = vector.shape_cast %13 : vector<1x1x8x16xf32> to vector<8x16xf32>
    %c1_12 = arith.constant 1 : index
    %15 = memref.load %arg3[%c1_12] : memref<8xf32, #tpu.memory_space<smem>>
    %16 = vector.broadcast %15 : f32 to vector<8x16xf32>
    %17 = arith.mulf %14, %16 : vector<8x16xf32>
    %c1_13 = arith.constant 1 : index
    %18 = memref.load %arg4[%c1_13] : memref<8xf32, #tpu.memory_space<smem>>
    %19 = vector.broadcast %18 : f32 to vector<8x16xf32>
    %20 = arith.addf %17, %19 : vector<8x16xf32>
    %cst_14 = arith.constant 0.000000e+00 : f32
    %21 = vector.broadcast %cst_14 : f32 to vector<8x16xf32>
    %22 = arith.maximumf %20, %21 : vector<8x16xf32>
    %c0_15 = arith.constant 0 : index
    %c1_16 = arith.constant 1 : index
    %c0_17 = arith.constant 0 : index
    %c0_18 = arith.constant 0 : index
    %23 = vector.load %arg5[%c0_15, %c1_16, %c0_17, %c0_18] : memref<1x8x8x16xf32, #tpu.memory_space<vmem>>, vector<1x1x8x16xf32>
    %24 = vector.shape_cast %23 : vector<1x1x8x16xf32> to vector<8x16xf32>
    %25 = vector.shape_cast %22 : vector<8x16xf32> to vector<1x1x8x16xf32>
    tpu.vector_store %arg5[%c0_15, %c1_16, %c0_17, %c0_18], %25 {strides = array<i32>} : memref<1x8x8x16xf32, #tpu.memory_space<vmem>>, vector<1x1x8x16xf32>,
    %c0_19 = arith.constant 0 : index
    %c2 = arith.constant 2 : index
    %c0_20 = arith.constant 0 : index
    %c0_21 = arith.constant 0 : index
    %26 = vector.load %arg2[%c0_19, %c2, %c0_20, %c0_21] : memref<1x8x8x16xf32, #tpu.memory_space<vmem>>, vector<1x1x8x16xf32>
    %27 = vector.shape_cast %26 : vector<1x1x8x16xf32> to vector<8x16xf32>
    %c2_22 = arith.constant 2 : index
    %28 = memref.load %arg3[%c2_22] : memref<8xf32, #tpu.memory_space<smem>>
    %29 = vector.broadcast %28 : f32 to vector<8x16xf32>
    %30 = arith.mulf %27, %29 : vector<8x16xf32>
    %c2_23 = arith.constant 2 : index
    %31 = memref.load %arg4[%c2_23] : memref<8xf32, #tpu.memory_space<smem>>
    %32 = vector.broadcast %31 : f32 to vector<8x16xf32>
    %33 = arith.addf %30, %32 : vector<8x16xf32>
    %cst_24 = arith.constant 0.000000e+00 : f32
    %34 = vector.broadcast %cst_24 : f32 to vector<8x16xf32>
    %35 = arith.maximumf %33, %34 : vector<8x16xf32>
    %c0_25 = arith.constant 0 : index
    %c2_26 = arith.constant 2 : index
    %c0_27 = arith.constant 0 : index
    %c0_28 = arith.constant 0 : index
    %36 = vector.load %arg5[%c0_25, %c2_26, %c0_27, %c0_28] : memref<1x8x8x16xf32, #tpu.memory_space<vmem>>, vector<1x1x8x16xf32>
    %37 = vector.shape_cast %36 : vector<1x1x8x16xf32> to vector<8x16xf32>
    %38 = vector.shape_cast %35 : vector<8x16xf32> to vector<1x1x8x16xf32>
    tpu.vector_store %arg5[%c0_25, %c2_26, %c0_27, %c0_28], %38 {strides = array<i32>} : memref<1x8x8x16xf32, #tpu.memory_space<vmem>>, vector<1x1x8x16xf32>,
    %c0_29 = arith.constant 0 : index
    %c3 = arith.constant 3 : index
    %c0_30 = arith.constant 0 : index
    %c0_31 = arith.constant 0 : index
    %39 = vector.load %arg2[%c0_29, %c3, %c0_30, %c0_31] : memref<1x8x8x16xf32, #tpu.memory_space<vmem>>, vector<1x1x8x16xf32>
    %40 = vector.shape_cast %39 : vector<1x1x8x16xf32> to vector<8x16xf32>
    %c3_32 = arith.constant 3 : index
    %41 = memref.load %arg3[%c3_32] : memref<8xf32, #tpu.memory_space<smem>>
    %42 = vector.broadcast %41 : f32 to vector<8x16xf32>
    %43 = arith.mulf %40, %42 : vector<8x16xf32>
    %c3_33 = arith.constant 3 : index
    %44 = memref.load %arg4[%c3_33] : memref<8xf32, #tpu.memory_space<smem>>
    %45 = vector.broadcast %44 : f32 to vector<8x16xf32>
    %46 = arith.addf %43, %45 : vector<8x16xf32>
    %cst_34 = arith.constant 0.000000e+00 : f32
    %47 = vector.broadcast %cst_34 : f32 to vector<8x16xf32>
    %48 = arith.maximumf %46, %47 : vector<8x16xf32>
    %c0_35 = arith.constant 0 : index
    %c3_36 = arith.constant 3 : index
    %c0_37 = arith.constant 0 : index
    %c0_38 = arith.constant 0 : index
    %49 = vector.load %arg5[%c0_35, %c3_36, %c0_37, %c0_38] : memref<1x8x8x16xf32, #tpu.memory_space<vmem>>, vector<1x1x8x16xf32>
    %50 = vector.shape_cast %49 : vector<1x1x8x16xf32> to vector<8x16xf32>
    %51 = vector.shape_cast %48 : vector<8x16xf32> to vector<1x1x8x16xf32>
    tpu.vector_store %arg5[%c0_35, %c3_36, %c0_37, %c0_38], %51 {strides = array<i32>} : memref<1x8x8x16xf32, #tpu.memory_space<vmem>>, vector<1x1x8x16xf32>,
    %c0_39 = arith.constant 0 : index
    %c4 = arith.constant 4 : index
    %c0_40 = arith.constant 0 : index
    %c0_41 = arith.constant 0 : index
    %52 = vector.load %arg2[%c0_39, %c4, %c0_40, %c0_41] : memref<1x8x8x16xf32, #tpu.memory_space<vmem>>, vector<1x1x8x16xf32>
    %53 = vector.shape_cast %52 : vector<1x1x8x16xf32> to vector<8x16xf32>
    %c4_42 = arith.constant 4 : index
    %54 = memref.load %arg3[%c4_42] : memref<8xf32, #tpu.memory_space<smem>>
    %55 = vector.broadcast %54 : f32 to vector<8x16xf32>
    %56 = arith.mulf %53, %55 : vector<8x16xf32>
    %c4_43 = arith.constant 4 : index
    %57 = memref.load %arg4[%c4_43] : memref<8xf32, #tpu.memory_space<smem>>
    %58 = vector.broadcast %57 : f32 to vector<8x16xf32>
    %59 = arith.addf %56, %58 : vector<8x16xf32>
    %cst_44 = arith.constant 0.000000e+00 : f32
    %60 = vector.broadcast %cst_44 : f32 to vector<8x16xf32>
    %61 = arith.maximumf %59, %60 : vector<8x16xf32>
    %c0_45 = arith.constant 0 : index
    %c4_46 = arith.constant 4 : index
    %c0_47 = arith.constant 0 : index
    %c0_48 = arith.constant 0 : index
    %62 = vector.load %arg5[%c0_45, %c4_46, %c0_47, %c0_48] : memref<1x8x8x16xf32, #tpu.memory_space<vmem>>, vector<1x1x8x16xf32>
    %63 = vector.shape_cast %62 : vector<1x1x8x16xf32> to vector<8x16xf32>
    %64 = vector.shape_cast %61 : vector<8x16xf32> to vector<1x1x8x16xf32>
    tpu.vector_store %arg5[%c0_45, %c4_46, %c0_47, %c0_48], %64 {strides = array<i32>} : memref<1x8x8x16xf32, #tpu.memory_space<vmem>>, vector<1x1x8x16xf32>,
    %c0_49 = arith.constant 0 : index
    %c5 = arith.constant 5 : index
    %c0_50 = arith.constant 0 : index
    %c0_51 = arith.constant 0 : index
    %65 = vector.load %arg2[%c0_49, %c5, %c0_50, %c0_51] : memref<1x8x8x16xf32, #tpu.memory_space<vmem>>, vector<1x1x8x16xf32>
    %66 = vector.shape_cast %65 : vector<1x1x8x16xf32> to vector<8x16xf32>
    %c5_52 = arith.constant 5 : index
    %67 = memref.load %arg3[%c5_52] : memref<8xf32, #tpu.memory_space<smem>>
    %68 = vector.broadcast %67 : f32 to vector<8x16xf32>
    %69 = arith.mulf %66, %68 : vector<8x16xf32>
    %c5_53 = arith.constant 5 : index
    %70 = memref.load %arg4[%c5_53] : memref<8xf32, #tpu.memory_space<smem>>
    %71 = vector.broadcast %70 : f32 to vector<8x16xf32>
    %72 = arith.addf %69, %71 : vector<8x16xf32>
    %cst_54 = arith.constant 0.000000e+00 : f32
    %73 = vector.broadcast %cst_54 : f32 to vector<8x16xf32>
    %74 = arith.maximumf %72, %73 : vector<8x16xf32>
    %c0_55 = arith.constant 0 : index
    %c5_56 = arith.constant 5 : index
    %c0_57 = arith.constant 0 : index
    %c0_58 = arith.constant 0 : index
    %75 = vector.load %arg5[%c0_55, %c5_56, %c0_57, %c0_58] : memref<1x8x8x16xf32, #tpu.memory_space<vmem>>, vector<1x1x8x16xf32>
    %76 = vector.shape_cast %75 : vector<1x1x8x16xf32> to vector<8x16xf32>
    %77 = vector.shape_cast %74 : vector<8x16xf32> to vector<1x1x8x16xf32>
    tpu.vector_store %arg5[%c0_55, %c5_56, %c0_57, %c0_58], %77 {strides = array<i32>} : memref<1x8x8x16xf32, #tpu.memory_space<vmem>>, vector<1x1x8x16xf32>,
    %c0_59 = arith.constant 0 : index
    %c6 = arith.constant 6 : index
    %c0_60 = arith.constant 0 : index
    %c0_61 = arith.constant 0 : index
    %78 = vector.load %arg2[%c0_59, %c6, %c0_60, %c0_61] : memref<1x8x8x16xf32, #tpu.memory_space<vmem>>, vector<1x1x8x16xf32>
    %79 = vector.shape_cast %78 : vector<1x1x8x16xf32> to vector<8x16xf32>
    %c6_62 = arith.constant 6 : index
    %80 = memref.load %arg3[%c6_62] : memref<8xf32, #tpu.memory_space<smem>>
    %81 = vector.broadcast %80 : f32 to vector<8x16xf32>
    %82 = arith.mulf %79, %81 : vector<8x16xf32>
    %c6_63 = arith.constant 6 : index
    %83 = memref.load %arg4[%c6_63] : memref<8xf32, #tpu.memory_space<smem>>
    %84 = vector.broadcast %83 : f32 to vector<8x16xf32>
    %85 = arith.addf %82, %84 : vector<8x16xf32>
    %cst_64 = arith.constant 0.000000e+00 : f32
    %86 = vector.broadcast %cst_64 : f32 to vector<8x16xf32>
    %87 = arith.maximumf %85, %86 : vector<8x16xf32>
    %c0_65 = arith.constant 0 : index
    %c6_66 = arith.constant 6 : index
    %c0_67 = arith.constant 0 : index
    %c0_68 = arith.constant 0 : index
    %88 = vector.load %arg5[%c0_65, %c6_66, %c0_67, %c0_68] : memref<1x8x8x16xf32, #tpu.memory_space<vmem>>, vector<1x1x8x16xf32>
    %89 = vector.shape_cast %88 : vector<1x1x8x16xf32> to vector<8x16xf32>
    %90 = vector.shape_cast %87 : vector<8x16xf32> to vector<1x1x8x16xf32>
    tpu.vector_store %arg5[%c0_65, %c6_66, %c0_67, %c0_68], %90 {strides = array<i32>} : memref<1x8x8x16xf32, #tpu.memory_space<vmem>>, vector<1x1x8x16xf32>,
    %c0_69 = arith.constant 0 : index
    %c7 = arith.constant 7 : index
    %c0_70 = arith.constant 0 : index
    %c0_71 = arith.constant 0 : index
    %91 = vector.load %arg2[%c0_69, %c7, %c0_70, %c0_71] : memref<1x8x8x16xf32, #tpu.memory_space<vmem>>, vector<1x1x8x16xf32>
    %92 = vector.shape_cast %91 : vector<1x1x8x16xf32> to vector<8x16xf32>
    %c7_72 = arith.constant 7 : index
    %93 = memref.load %arg3[%c7_72] : memref<8xf32, #tpu.memory_space<smem>>
    %94 = vector.broadcast %93 : f32 to vector<8x16xf32>
    %95 = arith.mulf %92, %94 : vector<8x16xf32>
    %c7_73 = arith.constant 7 : index
    %96 = memref.load %arg4[%c7_73] : memref<8xf32, #tpu.memory_space<smem>>
    %97 = vector.broadcast %96 : f32 to vector<8x16xf32>
    %98 = arith.addf %95, %97 : vector<8x16xf32>
    %cst_74 = arith.constant 0.000000e+00 : f32
    %99 = vector.broadcast %cst_74 : f32 to vector<8x16xf32>
    %100 = arith.maximumf %98, %99 : vector<8x16xf32>
    %c0_75 = arith.constant 0 : index
    %c7_76 = arith.constant 7 : index
    %c0_77 = arith.constant 0 : index
    %c0_78 = arith.constant 0 : index
    %101 = vector.load %arg5[%c0_75, %c7_76, %c0_77, %c0_78] : memref<1x8x8x16xf32, #tpu.memory_space<vmem>>, vector<1x1x8x16xf32>
    %102 = vector.shape_cast %101 : vector<1x1x8x16xf32> to vector<8x16xf32>
    %103 = vector.shape_cast %100 : vector<8x16xf32> to vector<1x1x8x16xf32>
    tpu.vector_store %arg5[%c0_75, %c7_76, %c0_77, %c0_78], %103 {strides = array<i32>} : memref<1x8x8x16xf32, #tpu.memory_space<vmem>>, vector<1x1x8x16xf32>,
    return
  }
  func.func @transform_0(%arg0: i32, %arg1: i32) -> (i32, i32, i32, i32) {
    %c0_i32 = arith.constant 0 : i32
    %c0_i32_0 = arith.constant 0 : i32
    %c0_i32_1 = arith.constant 0 : i32
    return %arg0, %c0_i32, %arg1, %c0_i32_0 : i32, i32, i32, i32
  }
  func.func @transform_1(%arg0: i32, %arg1: i32) -> i32 {
    %c0_i32 = arith.constant 0 : i32
    %c0_i32_0 = arith.constant 0 : i32
    return %c0_i32 : i32
  }
  func.func @transform_2(%arg0: i32, %arg1: i32) -> i32 {
    %c0_i32 = arith.constant 0 : i32
    %c0_i32_0 = arith.constant 0 : i32
    return %c0_i32 : i32
  }
  func.func @transform_3(%arg0: i32, %arg1: i32) -> (i32, i32, i32, i32) {
    %c0_i32 = arith.constant 0 : i32
    %c0_i32_0 = arith.constant 0 : i32
    %c0_i32_1 = arith.constant 0 : i32
    return %arg0, %c0_i32, %arg1, %c0_i32_0 : i32, i32, i32, i32
  }
}

</mosaic_0001>

<llo_original>
// kernel: sepconv_forward.5
$region0: #{sepconv_forward.5}
  #allocation0 [shape = 'u32[]', space=smem, size = 0x4, offset = 0x4, fixed_abs, tag = 'smem constant byte address 0x4 - core index']
  #allocation1 [shape = 'u32[144,128]{1,0:T(1,128)}', space=vmem, size = 0x12000, scoped, tag = 'internal scratch']
  %s0 = inlined_call_operand.vmem [shape: f32[2,8,16,16], index: 0, kind: input, shape index: {}]
  %s1 = inlined_call_operand.vmem [shape: f32[8], index: 1, kind: input, shape index: {}]
  %s2 = inlined_call_operand.vmem [shape: f32[8], index: 2, kind: input, shape index: {}]
  %s3 = inlined_call_operand.hbm [shape: f32[2,8,16,16], index: 3, kind: output, shape index: {}]
  %s4 = sld [smem:[#allocation0]]
  $region91: #{sepconv_forward.5} parent=0
    _
  %s6 = ssub.s32 1, %s4
  %s7 = scalar_select 0, %s6, %s4
  $region1: #{sepconv_forward.5} parent=0
    #allocation2 [shape = 'u8[65536]{0}', space=vmem, size = 0x10000, scoped, tag = 'input window, operand 0']
    #allocation3 [shape = 'u8[512]{0}', space=smem, size = 0x200, scoped, tag = 'input window, operand 1, single buffered']
    #allocation4 [shape = 's32[2]{0}', space=sflag, size = 0x8, scoped, tag = 'scoped memory for sepconv_forward.5']
    #allocation5 [shape = 's32[2]{0}', space=sflag, size = 0x8, scoped, tag = 'scoped memory for sepconv_forward.5']
    #allocation6 [shape = 'u8[512]{0}', space=smem, size = 0x200, scoped, tag = 'input window, operand 2, single buffered']
    #allocation7 [shape = 's32[1]{0}', space=sflag, size = 0x4, scoped, tag = 'scoped memory for sepconv_forward.5']
    #allocation8 [shape = 'u8[65536]{0}', space=vmem, size = 0x10000, scoped, tag = 'output window, operand 0']
    %8 = vsyncpa [#allocation5], 0
    %9 = vsyncpa [#allocation7], 0
    %10 = vsyncpa [#allocation4], 0
    %s11 = scalar_lea.sflag [#allocation4], 1
    %12 = vsyncpa %s11, 0
    loop: start=0, step=1, limit=6
    $region2: #{sepconv_forward.5} parent=1 // loop_pre_header
      _
    $region3: #{sepconv_forward.5} parent=1 // loop_header
      %s14 = sphi 0, %s18
      %p15 = scmp.ge.s32.totalorder %s14, 6
      %s21 = sphi 0, %s33
      %s22 = sphi 0, %s29
      %s23 = sphi 0, %s21
      %s24 = sphi 0, %s22
      %s25 = sphi 0, %s23
      %s26 = sphi 0, %s24
      %s38 = sphi 0, %s40
      %s41 = sphi 0, %s38
      %s42 = sphi 0, %s41
      %s58 = sphi 0, %s42
      %s62 = sphi 0, %s62
      %s64 = sphi 0, %s62
      %s65 = sphi 0, %s64
      %s79 = sphi 0, %s65
      %s83 = sphi 0, %s83
      %s85 = sphi 0, %s83
      %s86 = sphi 0, %s85
      %s100 = sphi 0, %s86
      %s108 = sphi 0, %s110
      %s111 = sphi 0, %s108
      %s112 = sphi 0, %s111
      %s128 = sphi 0, %s112
    $region4: #{sepconv_forward.5} parent=1 // loop_header_branch
      %17 = sbr.rel (%p15) target = $region8
    $region5: #{sepconv_forward.5} parent=1 // loop_body
      %s19 = ssub.s32 %s14, 1
      %s20 = ssub.s32 %s14, 2
      %s27 = sadd.s32 1, %s22
      %p28 = scmp.ge.s32.totalorder %s27, 2
      %s29 = scalar_select %p28, 0, %s27
      %s30 = sadd.s32 1, %s21
      %s31 = scalar_select %p28, %s30, %s21
      %p32 = scmp.ge.s32.totalorder %s31, 2
      %s33 = scalar_select %p32, 0, %s31
      %s34 = ssub.s32 %s21, %s33
      %s35 = ssub.s32 %s22, %s29
      %s36 = sor.u32 %s34, %s35
      %p37 = scmp.eq.s32.totalorder %s36, 0
      %s39 = sadd.s32 %s38, 1
      %s40 = scalar_select %p37, %s38, %s39
      %p43 = pneg %p37
      %p44 = scmp.eq.s32.totalorder %s14, 3
      %p45 = por %p43, %p44
      %p46 = scmp.ne.s32.totalorder %s38, %s41
      %p47 = scmp.eq.s32.totalorder %s14, 0
      %p48 = por %p46, %p47
      %p49 = scmp.ne.s32.totalorder %s38, %s41
      %p50 = scmp.eq.s32.totalorder %s19, 3
      %p51 = por %p49, %p50
      %p52 = scmp.ne.s32.totalorder %s41, %s42
      %p53 = scmp.eq.s32.totalorder %s19, 0
      %p54 = por %p52, %p53
      %p55 = scmp.ne.s32.totalorder %s41, %s42
      %p56 = scmp.eq.s32.totalorder %s20, 3
      %p57 = por %p55, %p56
      %p59 = scmp.ne.s32.totalorder %s42, %s58
      %p60 = scmp.eq.s32.totalorder %s20, 0
      %p61 = por %p59, %p60
      %s63 = sadd.s32 %s62, 1
      %p66 = scmp.eq.s32.totalorder %s14, 3
      %p67 = scmp.ne.s32.totalorder %s62, %s64
      %p68 = scmp.eq.s32.totalorder %s14, 0
      %p69 = por %p67, %p68
      %p70 = scmp.ne.s32.totalorder %s62, %s64
      %p71 = scmp.eq.s32.totalorder %s19, 3
      %p72 = por %p70, %p71
      %p73 = scmp.ne.s32.totalorder %s64, %s65
      %p74 = scmp.eq.s32.totalorder %s19, 0
      %p75 = por %p73, %p74
      %p76 = scmp.ne.s32.totalorder %s64, %s65
      %p77 = scmp.eq.s32.totalorder %s20, 3
      %p78 = por %p76, %p77
      %p80 = scmp.ne.s32.totalorder %s65, %s79
      %p81 = scmp.eq.s32.totalorder %s20, 0
      %p82 = por %p80, %p81
      %s84 = sadd.s32 %s83, 1
      %p87 = scmp.eq.s32.totalorder %s14, 3
      %p88 = scmp.ne.s32.totalorder %s83, %s85
      %p89 = scmp.eq.s32.totalorder %s14, 0
      %p90 = por %p88, %p89
      %p91 = scmp.ne.s32.totalorder %s83, %s85
      %p92 = scmp.eq.s32.totalorder %s19, 3
      %p93 = por %p91, %p92
      %p94 = scmp.ne.s32.totalorder %s85, %s86
      %p95 = scmp.eq.s32.totalorder %s19, 0
      %p96 = por %p94, %p95
      %p97 = scmp.ne.s32.totalorder %s85, %s86
      %p98 = scmp.eq.s32.totalorder %s20, 3
      %p99 = por %p97, %p98
      %p101 = scmp.ne.s32.totalorder %s86, %s100
      %p102 = scmp.eq.s32.totalorder %s20, 0
      %p103 = por %p101, %p102
      %s104 = ssub.s32 %s21, %s33
      %s105 = ssub.s32 %s22, %s29
      %s106 = sor.u32 %s104, %s105
      %p107 = scmp.eq.s32.totalorder %s106, 0
      %s109 = sadd.s32 %s108, 1
      %s110 = scalar_select %p107, %s108, %s109
      %p113 = pneg %p107
      %p114 = scmp.eq.s32.totalorder %s14, 3
      %p115 = por %p113, %p114
      %p116 = scmp.ne.s32.totalorder %s108, %s111
      %p117 = scmp.eq.s32.totalorder %s14, 0
      %p118 = por %p116, %p117
      %p119 = scmp.ne.s32.totalorder %s108, %s111
      %p120 = scmp.eq.s32.totalorder %s19, 3
      %p121 = por %p119, %p120
      %p122 = scmp.ne.s32.totalorder %s111, %s112
      %p123 = scmp.eq.s32.totalorder %s19, 0
      %p124 = por %p122, %p123
      %p125 = scmp.ne.s32.totalorder %s111, %s112
      %p126 = scmp.eq.s32.totalorder %s20, 3
      %p127 = por %p125, %p126
      %p129 = scmp.ne.s32.totalorder %s112, %s128
      %p130 = scmp.eq.s32.totalorder %s20, 0
      %p131 = por %p129, %p130
      %p132 = scmp.le.s32.totalorder 1, %s14
      %p133 = scmp.lt.s32.totalorder %s14, 5
      %p134 = pnand %p132, %p133
      %p135 = pneg %p134
      // Predicated region
      $region9: #{sepconv_forward.5} parent=5 // pred_check
        _
      $region10: #{sepconv_forward.5} parent=5 // pred_check_branch
        %137 = sbr.rel (%p134) target = $region12
      $region11: #{sepconv_forward.5} parent=5 // pred_region
        %s138 = ssub.s32 %s14, 1
        // Predicated region
        $region13: #{sepconv_forward.5} parent=11 // pred_check
          %p139 = pneg %p75
        $region14: #{sepconv_forward.5} parent=11 // pred_check_branch
          %141 = sbr.rel (%p139) target = $region16
        $region15: #{sepconv_forward.5} parent=11 // pred_region
          %s143 = ssub.s32 16, 16
          %144 = vsyncadd [#allocation5], %s143
          %s146 = sshll.u32 %s1, 4
          %s147 = int_to_ptr.vmem [resolvable:$true] %s146
          %149 = dma.vmem_to_smem %s147, 16, [#allocation3], [#allocation5]
        $region16: #{sepconv_forward.5} parent=11 // pred_fallthru
          _
        // Predicated region
        $region17: #{sepconv_forward.5} parent=11 // pred_check
          %p150 = pneg %p96
        $region18: #{sepconv_forward.5} parent=11 // pred_check_branch
          %152 = sbr.rel (%p150) target = $region20
        $region19: #{sepconv_forward.5} parent=11 // pred_region
          %s154 = ssub.s32 16, 16
          %155 = vsyncadd [#allocation7], %s154
          %s157 = sshll.u32 %s2, 4
          %s158 = int_to_ptr.vmem [resolvable:$true] %s157
          %160 = dma.vmem_to_smem %s158, 16, [#allocation6], [#allocation7]
        $region20: #{sepconv_forward.5} parent=11 // pred_fallthru
          _
      $region12: #{sepconv_forward.5} parent=5 // pred_fallthru
        _
      %p161 = scmp.lt.s32.totalorder %s14, 4
      // Predicated region
      $region21: #{sepconv_forward.5} parent=5 // pred_check
        %p162 = pneg %p161
      $region22: #{sepconv_forward.5} parent=5 // pred_check_branch
        %164 = sbr.rel (%p162) target = $region24
      $region23: #{sepconv_forward.5} parent=5 // pred_region
        // Predicated region
        $region25: #{sepconv_forward.5} parent=23 // pred_check
          %p165 = pneg %p48
        $region26: #{sepconv_forward.5} parent=23 // pred_check_branch
          %167 = sbr.rel (%p165) target = $region28
        $region27: #{sepconv_forward.5} parent=23 // pred_region
          %s168 = sand.u32 %s38, 1
          %s169 = sand.u32 %s38, 1
          %s170 = smul.addr %s169, 64
          %s171 = scalar_lea.vmem [#allocation2], %s170
          %s172 = smul.addr %s21, 16
          %s173 = sadd.s32 %s22, %s172
          %s174 = smul.addr %s173, 8
          %s175 = scalar_lea.vmem %s0, %s174
          // Predicated region
          $region29: #{sepconv_forward.5} parent=27 // pred_check
            _
          $region30: #{sepconv_forward.5} parent=27 // pred_check_branch
            %177 = sbr.rel (0) target = $region32
          $region31: #{sepconv_forward.5} parent=27 // pred_region
            // Predicated region
            $region33: #{sepconv_forward.5} parent=31 // pred_check
              _
            $region34: #{sepconv_forward.5} parent=31 // pred_check_branch
              %179 = sbr.rel (0) target = $region36
            $region35: #{sepconv_forward.5} parent=31 // pred_region
              // Predicated region
              $region48: #{sepconv_forward.5} parent=35 // pred_check
                _
              $region49: #{sepconv_forward.5} parent=35 // pred_check_branch
                %209 = sbr.rel (0) target = $region51
              $region50: #{sepconv_forward.5} parent=35 // pred_region
                loop: start=0, step=1, limit=1
                $region52: #{sepconv_forward.5} parent=50 // loop_pre_header
                  _
                $region53: #{sepconv_forward.5} parent=50 // loop_header
                  %s211 = sphi 0, %s215
                  %p212 = scmp.ge.s32.totalorder %s211, 1
                  %s216 = sphi %s175, %s175
                  %s217 = sphi %s171, %s171
                $region54: #{sepconv_forward.5} parent=50 // loop_header_branch
                  %214 = sbr.rel (%p212) target = $region58
                $region55: #{sepconv_forward.5} parent=50 // loop_body
                  %v218 = vld [vmem:[%s216] sm:$0xff]
                  %219 = vst [vmem:[%s217] sm:$0xff] %v218
                  %v220 = vld [vmem:[%s216 + $0x10] sm:$0xff]
                  %221 = vst [vmem:[%s217 + $0x8] sm:$0xff] %v220
                  %v222 = vld [vmem:[%s216 + $0x20] sm:$0xff]
                  %223 = vst [vmem:[%s217 + $0x10] sm:$0xff] %v222
                  %v224 = vld [vmem:[%s216 + $0x30] sm:$0xff]
                  %225 = vst [vmem:[%s217 + $0x18] sm:$0xff] %v224
                  %v226 = vld [vmem:[%s216 + $0x40] sm:$0xff]
                  %227 = vst [vmem:[%s217 + $0x20] sm:$0xff] %v226
                  %v228 = vld [vmem:[%s216 + $0x50] sm:$0xff]
                  %229 = vst [vmem:[%s217 + $0x28] sm:$0xff] %v228
                  %v230 = vld [vmem:[%s216 + $0x60] sm:$0xff]
                  %231 = vst [vmem:[%s217 + $0x30] sm:$0xff] %v230
                  %v232 = vld [vmem:[%s216 + $0x70] sm:$0xff]
                  %233 = vst [vmem:[%s217 + $0x38] sm:$0xff] %v232
                $region56: #{sepconv_forward.5} parent=50 // loop_footer
                  %s215 = sadd.s32 1, %s211
                $region57: #{sepconv_forward.5} parent=50 // loop_footer_branch
                  %210 = sbr.rel target = $region53
                $region58: #{sepconv_forward.5} parent=50 // loop_exit
                  _
              $region51: #{sepconv_forward.5} parent=35 // pred_fallthru
                _
              // Predicated region
              $region59: #{sepconv_forward.5} parent=35 // pred_check
                _
              $region60: #{sepconv_forward.5} parent=35 // pred_check_branch
                %235 = sbr.rel target = $region62
              $region61: #{sepconv_forward.5} parent=35 // pred_region
                _
              $region62: #{sepconv_forward.5} parent=35 // pred_fallthru
                _
            $region36: #{sepconv_forward.5} parent=31 // pred_fallthru
              _
            // Predicated region
            $region37: #{sepconv_forward.5} parent=31 // pred_check
              _
            $region38: #{sepconv_forward.5} parent=31 // pred_check_branch
              %181 = sbr.rel target = $region40
            $region39: #{sepconv_forward.5} parent=31 // pred_region
              %s183 = ssub.s32 256, 1
              loop: start=0, step=1, limit=1
              $region41: #{sepconv_forward.5} parent=39 // loop_pre_header
                _
              $region42: #{sepconv_forward.5} parent=39 // loop_header
                %s185 = sphi 0, %s189
                %p186 = scmp.ge.s32.totalorder %s185, 1
                %s190 = sphi %s175, %s175
                %s191 = sphi %s171, %s171
              $region43: #{sepconv_forward.5} parent=39 // loop_header_branch
                %188 = sbr.rel (%p186) target = $region47
              $region44: #{sepconv_forward.5} parent=39 // loop_body
                %v192 = vld [vmem:[%s190] sm:%s183]
                %193 = vst [vmem:[%s191] sm:%s183] %v192
                %v194 = vld [vmem:[%s190 + $0x10] sm:%s183]
                %195 = vst [vmem:[%s191 + $0x8] sm:%s183] %v194
                %v196 = vld [vmem:[%s190 + $0x20] sm:%s183]
                %197 = vst [vmem:[%s191 + $0x10] sm:%s183] %v196
                %v198 = vld [vmem:[%s190 + $0x30] sm:%s183]
                %199 = vst [vmem:[%s191 + $0x18] sm:%s183] %v198
                %v200 = vld [vmem:[%s190 + $0x40] sm:%s183]
                %201 = vst [vmem:[%s191 + $0x20] sm:%s183] %v200
                %v202 = vld [vmem:[%s190 + $0x50] sm:%s183]
                %203 = vst [vmem:[%s191 + $0x28] sm:%s183] %v202
                %v204 = vld [vmem:[%s190 + $0x60] sm:%s183]
                %205 = vst [vmem:[%s191 + $0x30] sm:%s183] %v204
                %v206 = vld [vmem:[%s190 + $0x70] sm:%s183]
                %207 = vst [vmem:[%s191 + $0x38] sm:%s183] %v206
              $region45: #{sepconv_forward.5} parent=39 // loop_footer
                %s189 = sadd.s32 1, %s185
              $region46: #{sepconv_forward.5} parent=39 // loop_footer_branch
                %184 = sbr.rel target = $region42
              $region47: #{sepconv_forward.5} parent=39 // loop_exit
                _
            $region40: #{sepconv_forward.5} parent=31 // pred_fallthru
              _
          $region32: #{sepconv_forward.5} parent=27 // pred_fallthru
            _
          %236 = vnop
        $region28: #{sepconv_forward.5} parent=23 // pred_fallthru
          _
      $region24: #{sepconv_forward.5} parent=5 // pred_fallthru
        _
      %p237 = scmp.le.s32.totalorder 1, %s14
      %p238 = scmp.lt.s32.totalorder %s14, 5
      %p239 = pnand %p237, %p238
      %p240 = pneg %p239
      // Predicated region
      $region63: #{sepconv_forward.5} parent=5 // pred_check
        _
      $region64: #{sepconv_forward.5} parent=5 // pred_check_branch
        %242 = sbr.rel (%p239) target = $region66
      $region65: #{sepconv_forward.5} parent=5 // pred_region
        %s243 = ssub.s32 %s14, 1
        %s244 = sand.u32 %s41, 1
        %s245 = sand.u32 %s41, 1
        %s246 = smul.addr %s245, 64
        %s247 = scalar_lea.vmem [#allocation2], %s246
        // Predicated region
        $region67: #{sepconv_forward.5} parent=65 // pred_check
          %p248 = pneg %p54
        $region68: #{sepconv_forward.5} parent=65 // pred_check_branch
          %250 = sbr.rel (%p248) target = $region70
        $region69: #{sepconv_forward.5} parent=65 // pred_region
          _
        $region70: #{sepconv_forward.5} parent=65 // pred_fallthru
          _
        // Predicated region
        $region71: #{sepconv_forward.5} parent=65 // pred_check
          %p251 = pneg %p75
        $region72: #{sepconv_forward.5} parent=65 // pred_check_branch
          %253 = sbr.rel (%p251) target = $region74
        $region73: #{sepconv_forward.5} parent=65 // pred_region
          %254 = dma.done [#allocation5], 16
        $region74: #{sepconv_forward.5} parent=65 // pred_fallthru
          _
        // Predicated region
        $region75: #{sepconv_forward.5} parent=65 // pred_check
          %p255 = pneg %p96
        $region76: #{sepconv_forward.5} parent=65 // pred_check_branch
          %257 = sbr.rel (%p255) target = $region78
        $region77: #{sepconv_forward.5} parent=65 // pred_region
          %258 = dma.done [#allocation7], 16
        $region78: #{sepconv_forward.5} parent=65 // pred_fallthru
          _
        %259 = sfence
        %s260 = sand.u32 %s41, 1
        %s261 = sand.u32 %s41, 1
        %s262 = smul.addr %s261, 64
        %s263 = scalar_lea.vmem [#allocation2], %s262
        %p264 = pneg %p54
        %p265 = pneg %p51
        %p266 = pneg %p75
        %p267 = pneg %p72
        %p268 = pneg %p96
        %p269 = pneg %p93
        %p270 = pneg %p124
        %p271 = pneg %p121
        %s272 = sand.u32 %s111, 1
        %s273 = scalar_lea.sflag [#allocation4], %s272
        %s274 = sand.u32 %s111, 1
        %s275 = smul.addr %s274, 64
        %s276 = scalar_lea.vmem [#allocation8], %s275
        %v277 = vld [vmem:[%s247] sm:$0xff]
        %s278 = sld [smem:[#allocation3]]
        %v279 = vstv %s278
        %v280 = vmul.f32 %v277, %v279
        %s281 = sld [smem:[#allocation6]]
        %v282 = vstv %s281
        %v283 = vadd.f32 %v280, %v282
        %v284 = vmax.f32 %v283, 0.0
        %vm285 = vcmask 130048
        %286 = vst.msk [vmem:[%s276] sm:$0xff] %vm285, %v284
        %s287 = scalar_lea.vmem %s247, 8 [#allocation2]
        %v288 = vld [vmem:[%s287] sm:$0xff]
        %s289 = sld [smem:[#allocation3 + $0x1]]
        %v290 = vstv %s289
        %v291 = vmul.f32 %v288, %v290
        %s292 = sld [smem:[#allocation6 + $0x1]]
        %v293 = vstv %s292
        %v294 = vadd.f32 %v291, %v293
        %v295 = vmax.f32 %v294, 0.0
        %s296 = scalar_lea.vmem %s276, 8 [#allocation8]
        %297 = vst.msk [vmem:[%s296] sm:$0xff] %vm285, %v295
        %s298 = scalar_lea.vmem %s247, 16 [#allocation2]
        %v299 = vld [vmem:[%s298] sm:$0xff]
        %s300 = sld [smem:[#allocation3 + $0x2]]
        %v301 = vstv %s300
        %v302 = vmul.f32 %v299, %v301
        %s303 = sld [smem:[#allocation6 + $0x2]]
        %v304 = vstv %s303
        %v305 = vadd.f32 %v302, %v304
        %v306 = vmax.f32 %v305, 0.0
        %s307 = scalar_lea.vmem %s276, 16 [#allocation8]
        %308 = vst.msk [vmem:[%s307] sm:$0xff] %vm285, %v306
        %s309 = scalar_lea.vmem %s247, 24 [#allocation2]
        %v310 = vld [vmem:[%s309] sm:$0xff]
        %s311 = sld [smem:[#allocation3 + $0x3]]
        %v312 = vstv %s311
        %v313 = vmul.f32 %v310, %v312
        %s314 = sld [smem:[#allocation6 + $0x3]]
        %v315 = vstv %s314
        %v316 = vadd.f32 %v313, %v315
        %v317 = vmax.f32 %v316, 0.0
        %s318 = scalar_lea.vmem %s276, 24 [#allocation8]
        %319 = vst.msk [vmem:[%s318] sm:$0xff] %vm285, %v317
        %s320 = scalar_lea.vmem %s247, 32 [#allocation2]
        %v321 = vld [vmem:[%s320] sm:$0xff]
        %s322 = sld [smem:[#allocation3 + $0x4]]
        %v323 = vstv %s322
        %v324 = vmul.f32 %v321, %v323
        %s325 = sld [smem:[#allocation6 + $0x4]]
        %v326 = vstv %s325
        %v327 = vadd.f32 %v324, %v326
        %v328 = vmax.f32 %v327, 0.0
        %s329 = scalar_lea.vmem %s276, 32 [#allocation8]
        %330 = vst.msk [vmem:[%s329] sm:$0xff] %vm285, %v328
        %s331 = scalar_lea.vmem %s247, 40 [#allocation2]
        %v332 = vld [vmem:[%s331] sm:$0xff]
        %s333 = sld [smem:[#allocation3 + $0x5]]
        %v334 = vstv %s333
        %v335 = vmul.f32 %v332, %v334
        %s336 = sld [smem:[#allocation6 + $0x5]]
        %v337 = vstv %s336
        %v338 = vadd.f32 %v335, %v337
        %v339 = vmax.f32 %v338, 0.0
        %s340 = scalar_lea.vmem %s276, 40 [#allocation8]
        %341 = vst.msk [vmem:[%s340] sm:$0xff] %vm285, %v339
        %s342 = scalar_lea.vmem %s247, 48 [#allocation2]
        %v343 = vld [vmem:[%s342] sm:$0xff]
        %s344 = sld [smem:[#allocation3 + $0x6]]
        %v345 = vstv %s344
        %v346 = vmul.f32 %v343, %v345
        %s347 = sld [smem:[#allocation6 + $0x6]]
        %v348 = vstv %s347
        %v349 = vadd.f32 %v346, %v348
        %v350 = vmax.f32 %v349, 0.0
        %s351 = scalar_lea.vmem %s276, 48 [#allocation8]
        %352 = vst.msk [vmem:[%s351] sm:$0xff] %vm285, %v350
        %s353 = scalar_lea.vmem %s247, 56 [#allocation2]
        %v354 = vld [vmem:[%s353] sm:$0xff]
        %s355 = sld [smem:[#allocation3 + $0x7]]
        %v356 = vstv %s355
        %v357 = vmul.f32 %v354, %v356
        %s358 = sld [smem:[#allocation6 + $0x7]]
        %v359 = vstv %s358
        %v360 = vadd.f32 %v357, %v359
        %v361 = vmax.f32 %v360, 0.0
        %s362 = scalar_lea.vmem %s276, 56 [#allocation8]
        %363 = vst.msk [vmem:[%s362] sm:$0xff] %vm285, %v361
        %s364 = sand.u32 %s111, 1
        %s365 = scalar_lea.sflag [#allocation4], %s364
        %s366 = sand.u32 %s111, 1
        %s367 = smul.addr %s366, 64
        %s368 = scalar_lea.vmem [#allocation8], %s367
        // Predicated region
        $region79: #{sepconv_forward.5} parent=65 // pred_check
          %p369 = pneg %p121
        $region80: #{sepconv_forward.5} parent=65 // pred_check_branch
          %371 = sbr.rel (%p369) target = $region82
        $region81: #{sepconv_forward.5} parent=65 // pred_region
          %s373 = ssub.s32 1024, 1024
          %374 = vsyncadd %s365, %s373
          %s375 = smul.addr %s23, 16
          %s376 = sadd.s32 %s24, %s375
          %s377 = smul.addr %s376, 128
          %s378 = scalar_lea.hbm %s3, %s377
          %s379 = sshll.u32 %s368, 4
          %s380 = int_to_ptr.vmem [resolvable:$true] %s379
          %385 = dma.vmem_to_hbm [thread:$0]  %s380, 1024, %s378, %s365, 128, 256, 8
        $region82: #{sepconv_forward.5} parent=65 // pred_fallthru
          _
      $region66: #{sepconv_forward.5} parent=5 // pred_fallthru
        _
      %p386 = scmp.le.s32.totalorder 2, %s14
      // Predicated region
      $region83: #{sepconv_forward.5} parent=5 // pred_check
        %p387 = pneg %p386
      $region84: #{sepconv_forward.5} parent=5 // pred_check_branch
        %389 = sbr.rel (%p387) target = $region86
      $region85: #{sepconv_forward.5} parent=5 // pred_region
        %s390 = ssub.s32 %s14, 2
        // Predicated region
        $region87: #{sepconv_forward.5} parent=85 // pred_check
          %p391 = pneg %p127
        $region88: #{sepconv_forward.5} parent=85 // pred_check_branch
          %393 = sbr.rel (%p391) target = $region90
        $region89: #{sepconv_forward.5} parent=85 // pred_region
          %s394 = sand.u32 %s112, 1
          %s395 = scalar_lea.sflag [#allocation4], %s394
          %s396 = sand.u32 %s112, 1
          %s397 = smul.addr %s396, 64
          %s398 = scalar_lea.vmem [#allocation8], %s397
          %399 = dma.done %s395, 1024
        $region90: #{sepconv_forward.5} parent=85 // pred_fallthru
          _
      $region86: #{sepconv_forward.5} parent=5 // pred_fallthru
        _
    $region6: #{sepconv_forward.5} parent=1 // loop_footer
      %s18 = sadd.s32 1, %s14
    $region7: #{sepconv_forward.5} parent=1 // loop_footer_branch
      %13 = sbr.rel target = $region3
    $region8: #{sepconv_forward.5} parent=1 // loop_exit
      _
    %400 = vsyncpa [#allocation4], 1
    %s401 = scalar_lea.sflag [#allocation4], 1
    %402 = vsyncpa %s401, 1
    %403 = vsyncpa [#allocation5], 1
    %s404 = scalar_lea.sflag [#allocation5], 1
    %405 = vsyncpa %s404, 1
    %406 = vsyncpa [#allocation7], 1

// kernel: sepconv_forward.3
$region0: #{sepconv_forward.3}
  #allocation0 [shape = 'u32[]', space=smem, size = 0x4, offset = 0x4, fixed_abs, tag = 'smem constant byte address 0x4 - core index']
  #allocation1 [shape = 'u32[144,128]{1,0:T(1,128)}', space=vmem, size = 0x12000, scoped, tag = 'internal scratch']
  #allocation2 [shape = 'f32[4,18,18]{2,1,0:T(8,128)}', space=vmem, size = 0xc000, scoped, tag = 'scratch operand']
  %s0 = inlined_call_operand.hbm [shape: f32[2,4,16,16], index: 0, kind: input, shape index: {}]
  %s1 = inlined_call_operand.vmem [shape: f32[36], index: 1, kind: input, shape index: {}]
  %s2 = inlined_call_operand.vmem [shape: f32[16], index: 2, kind: input, shape index: {}]
  %s3 = inlined_call_operand.vmem [shape: f32[2,4,16,16], index: 3, kind: output, shape index: {0}]
  %s4 = inlined_call_operand.vmem [shape: f32[2,4,16], index: 4, kind: output, shape index: {1}]
  %s5 = inlined_call_operand.vmem [shape: f32[2,4,16], index: 5, kind: output, shape index: {2}]
  %6 = xla_tuple %s3, %s4, %s5
  %s7 = sld [smem:[#allocation0]]
  $region115: #{sepconv_forward.3} parent=0
    _
  %s9 = ssub.s32 1, %s7
  %s10 = scalar_select 0, %s9, %s7
  $region1: #{sepconv_forward.3} parent=0
    #allocation3 [shape = 'u8[65536]{0}', space=vmem, size = 0x10000, scoped, tag = 'input window, operand 0']
    #allocation4 [shape = 's32[2]{0}', space=sflag, size = 0x8, scoped, tag = 'scoped memory for sepconv_forward.3']
    #allocation5 [shape = 's32[2]{0}', space=sflag, size = 0x8, scoped, tag = 'scoped memory for sepconv_forward.3']
    #allocation6 [shape = 'u8[512]{0}', space=smem, size = 0x200, scoped, tag = 'input window, operand 1, single buffered']
    #allocation7 [shape = 'u8[512]{0}', space=smem, size = 0x200, scoped, tag = 'input window, operand 2, single buffered']
    #allocation8 [shape = 's32[1]{0}', space=sflag, size = 0x4, scoped, tag = 'scoped memory for sepconv_forward.3']
    #allocation9 [shape = 'u8[32768]{0}', space=vmem, size = 0x8000, scoped, tag = 'output window, operand 0']
    %11 = vsyncpa [#allocation4], 0
    %s12 = scalar_lea.sflag [#allocation4], 1
    %13 = vsyncpa %s12, 0
    %14 = vsyncpa [#allocation5], 0
    %15 = vsyncpa [#allocation8], 0
    loop: start=0, step=1, limit=6
    $region2: #{sepconv_forward.3} parent=1 // loop_pre_header
      _
    $region3: #{sepconv_forward.3} parent=1 // loop_header
      %s17 = sphi 0, %s21
      %p18 = scmp.ge.s32.totalorder %s17, 6
      %s24 = sphi 0, %s36
      %s25 = sphi 0, %s32
      %s26 = sphi 0, %s24
      %s27 = sphi 0, %s25
      %s28 = sphi 0, %s26
      %s29 = sphi 0, %s27
      %s39 = sphi 0, %s41
      %s42 = sphi 0, %s39
      %s43 = sphi 0, %s42
      %s59 = sphi 0, %s43
      %s63 = sphi 0, %s63
      %s65 = sphi 0, %s63
      %s66 = sphi 0, %s65
      %s80 = sphi 0, %s66
      %s84 = sphi 0, %s84
      %s86 = sphi 0, %s84
      %s87 = sphi 0, %s86
      %s101 = sphi 0, %s87
      %s109 = sphi 0, %s111
      %s112 = sphi 0, %s109
      %s113 = sphi 0, %s112
      %s129 = sphi 0, %s113
      %s135 = sphi 0, %s137
      %s138 = sphi 0, %s135
      %s139 = sphi 0, %s138
      %s155 = sphi 0, %s139
      %s161 = sphi 0, %s163
      %s164 = sphi 0, %s161
      %s165 = sphi 0, %s164
      %s181 = sphi 0, %s165
    $region4: #{sepconv_forward.3} parent=1 // loop_header_branch
      %20 = sbr.rel (%p18) target = $region8
    $region5: #{sepconv_forward.3} parent=1 // loop_body
      %s22 = ssub.s32 %s17, 1
      %s23 = ssub.s32 %s17, 2
      %s30 = sadd.s32 1, %s25
      %p31 = scmp.ge.s32.totalorder %s30, 2
      %s32 = scalar_select %p31, 0, %s30
      %s33 = sadd.s32 1, %s24
      %s34 = scalar_select %p31, %s33, %s24
      %p35 = scmp.ge.s32.totalorder %s34, 2
      %s36 = scalar_select %p35, 0, %s34
      %s37 = ssub.s32 %s24, %s36
      %p38 = scmp.eq.s32.totalorder %s37, 0
      %s40 = sadd.s32 %s39, 1
      %s41 = scalar_select %p38, %s39, %s40
      %p44 = pneg %p38
      %p45 = scmp.eq.s32.totalorder %s17, 3
      %p46 = por %p44, %p45
      %p47 = scmp.ne.s32.totalorder %s39, %s42
      %p48 = scmp.eq.s32.totalorder %s17, 0
      %p49 = por %p47, %p48
      %p50 = scmp.ne.s32.totalorder %s39, %s42
      %p51 = scmp.eq.s32.totalorder %s22, 3
      %p52 = por %p50, %p51
      %p53 = scmp.ne.s32.totalorder %s42, %s43
      %p54 = scmp.eq.s32.totalorder %s22, 0
      %p55 = por %p53, %p54
      %p56 = scmp.ne.s32.totalorder %s42, %s43
      %p57 = scmp.eq.s32.totalorder %s23, 3
      %p58 = por %p56, %p57
      %p60 = scmp.ne.s32.totalorder %s43, %s59
      %p61 = scmp.eq.s32.totalorder %s23, 0
      %p62 = por %p60, %p61
      %s64 = sadd.s32 %s63, 1
      %p67 = scmp.eq.s32.totalorder %s17, 3
      %p68 = scmp.ne.s32.totalorder %s63, %s65
      %p69 = scmp.eq.s32.totalorder %s17, 0
      %p70 = por %p68, %p69
      %p71 = scmp.ne.s32.totalorder %s63, %s65
      %p72 = scmp.eq.s32.totalorder %s22, 3
      %p73 = por %p71, %p72
      %p74 = scmp.ne.s32.totalorder %s65, %s66
      %p75 = scmp.eq.s32.totalorder %s22, 0
      %p76 = por %p74, %p75
      %p77 = scmp.ne.s32.totalorder %s65, %s66
      %p78 = scmp.eq.s32.totalorder %s23, 3
      %p79 = por %p77, %p78
      %p81 = scmp.ne.s32.totalorder %s66, %s80
      %p82 = scmp.eq.s32.totalorder %s23, 0
      %p83 = por %p81, %p82
      %s85 = sadd.s32 %s84, 1
      %p88 = scmp.eq.s32.totalorder %s17, 3
      %p89 = scmp.ne.s32.totalorder %s84, %s86
      %p90 = scmp.eq.s32.totalorder %s17, 0
      %p91 = por %p89, %p90
      %p92 = scmp.ne.s32.totalorder %s84, %s86
      %p93 = scmp.eq.s32.totalorder %s22, 3
      %p94 = por %p92, %p93
      %p95 = scmp.ne.s32.totalorder %s86, %s87
      %p96 = scmp.eq.s32.totalorder %s22, 0
      %p97 = por %p95, %p96
      %p98 = scmp.ne.s32.totalorder %s86, %s87
      %p99 = scmp.eq.s32.totalorder %s23, 3
      %p100 = por %p98, %p99
      %p102 = scmp.ne.s32.totalorder %s87, %s101
      %p103 = scmp.eq.s32.totalorder %s23, 0
      %p104 = por %p102, %p103
      %s105 = ssub.s32 %s24, %s36
      %s106 = ssub.s32 %s25, %s32
      %s107 = sor.u32 %s105, %s106
      %p108 = scmp.eq.s32.totalorder %s107, 0
      %s110 = sadd.s32 %s109, 1
      %s111 = scalar_select %p108, %s109, %s110
      %p114 = pneg %p108
      %p115 = scmp.eq.s32.totalorder %s17, 3
      %p116 = por %p114, %p115
      %p117 = scmp.ne.s32.totalorder %s109, %s112
      %p118 = scmp.eq.s32.totalorder %s17, 0
      %p119 = por %p117, %p118
      %p120 = scmp.ne.s32.totalorder %s109, %s112
      %p121 = scmp.eq.s32.totalorder %s22, 3
      %p122 = por %p120, %p121
      %p123 = scmp.ne.s32.totalorder %s112, %s113
      %p124 = scmp.eq.s32.totalorder %s22, 0
      %p125 = por %p123, %p124
      %p126 = scmp.ne.s32.totalorder %s112, %s113
      %p127 = scmp.eq.s32.totalorder %s23, 3
      %p128 = por %p126, %p127
      %p130 = scmp.ne.s32.totalorder %s113, %s129
      %p131 = scmp.eq.s32.totalorder %s23, 0
      %p132 = por %p130, %p131
      %s133 = ssub.s32 %s24, %s36
      %p134 = scmp.eq.s32.totalorder %s133, 0
      %s136 = sadd.s32 %s135, 1
      %s137 = scalar_select %p134, %s135, %s136
      %p140 = pneg %p134
      %p141 = scmp.eq.s32.totalorder %s17, 3
      %p142 = por %p140, %p141
      %p143 = scmp.ne.s32.totalorder %s135, %s138
      %p144 = scmp.eq.s32.totalorder %s17, 0
      %p145 = por %p143, %p144
      %p146 = scmp.ne.s32.totalorder %s135, %s138
      %p147 = scmp.eq.s32.totalorder %s22, 3
      %p148 = por %p146, %p147
      %p149 = scmp.ne.s32.totalorder %s138, %s139
      %p150 = scmp.eq.s32.totalorder %s22, 0
      %p151 = por %p149, %p150
      %p152 = scmp.ne.s32.totalorder %s138, %s139
      %p153 = scmp.eq.s32.totalorder %s23, 3
      %p154 = por %p152, %p153
      %p156 = scmp.ne.s32.totalorder %s139, %s155
      %p157 = scmp.eq.s32.totalorder %s23, 0
      %p158 = por %p156, %p157
      %s159 = ssub.s32 %s24, %s36
      %p160 = scmp.eq.s32.totalorder %s159, 0
      %s162 = sadd.s32 %s161, 1
      %s163 = scalar_select %p160, %s161, %s162
      %p166 = pneg %p160
      %p167 = scmp.eq.s32.totalorder %s17, 3
      %p168 = por %p166, %p167
      %p169 = scmp.ne.s32.totalorder %s161, %s164
      %p170 = scmp.eq.s32.totalorder %s17, 0
      %p171 = por %p169, %p170
      %p172 = scmp.ne.s32.totalorder %s161, %s164
      %p173 = scmp.eq.s32.totalorder %s22, 3
      %p174 = por %p172, %p173
      %p175 = scmp.ne.s32.totalorder %s164, %s165
      %p176 = scmp.eq.s32.totalorder %s22, 0
      %p177 = por %p175, %p176
      %p178 = scmp.ne.s32.totalorder %s164, %s165
      %p179 = scmp.eq.s32.totalorder %s23, 3
      %p180 = por %p178, %p179
      %p182 = scmp.ne.s32.totalorder %s165, %s181
      %p183 = scmp.eq.s32.totalorder %s23, 0
      %p184 = por %p182, %p183
      %p185 = scmp.le.s32.totalorder 1, %s17
      %p186 = scmp.lt.s32.totalorder %s17, 5
      %p187 = pnand %p185, %p186
      %p188 = pneg %p187
      // Predicated region
      $region9: #{sepconv_forward.3} parent=5 // pred_check
        _
      $region10: #{sepconv_forward.3} parent=5 // pred_check_branch
        %190 = sbr.rel (%p187) target = $region12
      $region11: #{sepconv_forward.3} parent=5 // pred_region
        %s191 = ssub.s32 %s17, 1
        // Predicated region
        $region13: #{sepconv_forward.3} parent=11 // pred_check
          %p192 = pneg %p76
        $region14: #{sepconv_forward.3} parent=11 // pred_check_branch
          %194 = sbr.rel (%p192) target = $region16
        $region15: #{sepconv_forward.3} parent=11 // pred_region
          %s196 = ssub.s32 16, 16
          %197 = vsyncadd [#allocation5], %s196
          %s199 = sshll.u32 %s1, 4
          %s200 = int_to_ptr.vmem [resolvable:$true] %s199
          %202 = dma.vmem_to_smem %s200, 16, [#allocation6], [#allocation5]
        $region16: #{sepconv_forward.3} parent=11 // pred_fallthru
          _
        // Predicated region
        $region17: #{sepconv_forward.3} parent=11 // pred_check
          %p203 = pneg %p97
        $region18: #{sepconv_forward.3} parent=11 // pred_check_branch
          %205 = sbr.rel (%p203) target = $region20
        $region19: #{sepconv_forward.3} parent=11 // pred_region
          %s207 = ssub.s32 16, 16
          %208 = vsyncadd [#allocation8], %s207
          %s210 = sshll.u32 %s2, 4
          %s211 = int_to_ptr.vmem [resolvable:$true] %s210
          %213 = dma.vmem_to_smem %s211, 16, [#allocation7], [#allocation8]
        $region20: #{sepconv_forward.3} parent=11 // pred_fallthru
          _
      $region12: #{sepconv_forward.3} parent=5 // pred_fallthru
        _
      %p214 = scmp.lt.s32.totalorder %s17, 4
      // Predicated region
      $region21: #{sepconv_forward.3} parent=5 // pred_check
        %p215 = pneg %p214
      $region22: #{sepconv_forward.3} parent=5 // pred_check_branch
        %217 = sbr.rel (%p215) target = $region24
      $region23: #{sepconv_forward.3} parent=5 // pred_region
        // Predicated region
        $region25: #{sepconv_forward.3} parent=23 // pred_check
          %p218 = pneg %p49
        $region26: #{sepconv_forward.3} parent=23 // pred_check_branch
          %220 = sbr.rel (%p218) target = $region28
        $region27: #{sepconv_forward.3} parent=23 // pred_region
          %s221 = sand.u32 %s39, 1
          %s222 = scalar_lea.sflag [#allocation4], %s221
          %s223 = sand.u32 %s39, 1
          %s224 = smul.addr %s223, 64
          %s225 = scalar_lea.vmem [#allocation3], %s224
          %s227 = ssub.s32 1024, 1024
          %228 = vsyncadd %s222, %s227
          %s229 = smul.addr %s24, 8
          %s230 = smul.addr %s229, 128
          %s231 = scalar_lea.hbm %s0, %s230
          %s232 = sshll.u32 %s225, 4
          %s233 = int_to_ptr.vmem [resolvable:$true] %s232
          %238 = dma.hbm_to_vmem [thread:$0]  %s231, 1024, %s233, %s222, 128, 128, 8
        $region28: #{sepconv_forward.3} parent=23 // pred_fallthru
          _
      $region24: #{sepconv_forward.3} parent=5 // pred_fallthru
        _
      %p239 = scmp.le.s32.totalorder 1, %s17
      %p240 = scmp.lt.s32.totalorder %s17, 5
      %p241 = pnand %p239, %p240
      %p242 = pneg %p241
      // Predicated region
      $region29: #{sepconv_forward.3} parent=5 // pred_check
        _
      $region30: #{sepconv_forward.3} parent=5 // pred_check_branch
        %244 = sbr.rel (%p241) target = $region32
      $region31: #{sepconv_forward.3} parent=5 // pred_region
        %s245 = ssub.s32 %s17, 1
        %s246 = sand.u32 %s42, 1
        %s247 = scalar_lea.sflag [#allocation4], %s246
        %s248 = sand.u32 %s42, 1
        %s249 = smul.addr %s248, 64
        %s250 = scalar_lea.vmem [#allocation3], %s249
        // Predicated region
        $region33: #{sepconv_forward.3} parent=31 // pred_check
          %p251 = pneg %p55
        $region34: #{sepconv_forward.3} parent=31 // pred_check_branch
          %253 = sbr.rel (%p251) target = $region36
        $region35: #{sepconv_forward.3} parent=31 // pred_region
          %254 = dma.done %s247, 1024
        $region36: #{sepconv_forward.3} parent=31 // pred_fallthru
          _
        // Predicated region
        $region37: #{sepconv_forward.3} parent=31 // pred_check
          %p255 = pneg %p76
        $region38: #{sepconv_forward.3} parent=31 // pred_check_branch
          %257 = sbr.rel (%p255) target = $region40
        $region39: #{sepconv_forward.3} parent=31 // pred_region
          %258 = dma.done [#allocation5], 16
        $region40: #{sepconv_forward.3} parent=31 // pred_fallthru
          _
        // Predicated region
        $region41: #{sepconv_forward.3} parent=31 // pred_check
          %p259 = pneg %p97
        $region42: #{sepconv_forward.3} parent=31 // pred_check_branch
          %261 = sbr.rel (%p259) target = $region44
        $region43: #{sepconv_forward.3} parent=31 // pred_region
          %262 = dma.done [#allocation8], 16
        $region44: #{sepconv_forward.3} parent=31 // pred_fallthru
          _
        %263 = sfence
        %s264 = sand.u32 %s42, 1
        %s265 = scalar_lea.sflag [#allocation4], %s264
        %s266 = sand.u32 %s42, 1
        %s267 = smul.addr %s266, 64
        %s268 = scalar_lea.vmem [#allocation3], %s267
        %p269 = pneg %p55
        %p270 = pneg %p52
        %p271 = pneg %p76
        %p272 = pneg %p73
        %p273 = pneg %p97
        %p274 = pneg %p94
        %p275 = pneg %p125
        %p276 = pneg %p122
        %s277 = sand.u32 %s112, 1
        %s278 = sand.u32 %s112, 1
        %s279 = smul.addr %s278, 32
        %s280 = scalar_lea.vmem [#allocation9], %s279
        %p281 = pneg %p151
        %p282 = pneg %p148
        %p283 = scmp.lt.s32.totalorder %s26, 1
        %s284 = scalar_select %p283, %s26, 1
        %s285 = smul.addr %s284, 4
        %s286 = scalar_lea.vmem %s4, %s285
        %p287 = pneg %p177
        %p288 = pneg %p174
        %p289 = scmp.lt.s32.totalorder %s26, 1
        %s290 = scalar_select %p289, %s26, 1
        %s291 = smul.addr %s290, 4
        %s292 = scalar_lea.vmem %s5, %s291
        %p293 = scmp.lt.s32.totalorder %s26, 1
        %s294 = scalar_select %p293, %s26, 1
        %s295 = smul.addr %s294, 4
        %s296 = scalar_lea.vmem %s4, %s295
        %p297 = scmp.lt.s32.totalorder %s26, 1
        %s298 = scalar_select %p297, %s26, 1
        %s299 = smul.addr %s298, 4
        %s300 = scalar_lea.vmem %s5, %s299
        %p301 = scmp.eq.s32.totalorder %s27, 0
        // Predicated region
        $region45: #{sepconv_forward.3} parent=31 // pred_check
          %p302 = pneg %p301
        $region46: #{sepconv_forward.3} parent=31 // pred_check_branch
          %304 = sbr.rel (%p302) target = $region48
        $region47: #{sepconv_forward.3} parent=31 // pred_region
          %vm305 = vcmask 146432
          %306 = vst.msk [vmem:[#allocation2] sm:$0xff] %vm305, 0.0
          %307 = vst.msk [vmem:[#allocation2 + $0x8] sm:$0xff] %vm305, 0.0
          %vm308 = vcmask 140288
          %309 = vst.msk [vmem:[#allocation2 + $0x10] sm:$0x3] %vm308, 0.0
          %310 = vst.msk [vmem:[#allocation2 + $0x18] sm:$0xff] %vm305, 0.0
          %311 = vst.msk [vmem:[#allocation2 + $0x20] sm:$0xff] %vm305, 0.0
          %312 = vst.msk [vmem:[#allocation2 + $0x28] sm:$0x3] %vm308, 0.0
          %313 = vst.msk [vmem:[#allocation2 + $0x30] sm:$0xff] %vm305, 0.0
          %314 = vst.msk [vmem:[#allocation2 + $0x38] sm:$0xff] %vm305, 0.0
          %315 = vst.msk [vmem:[#allocation2 + $0x40] sm:$0x3] %vm308, 0.0
          %316 = vst.msk [vmem:[#allocation2 + $0x48] sm:$0xff] %vm305, 0.0
          %317 = vst.msk [vmem:[#allocation2 + $0x50] sm:$0xff] %vm305, 0.0
          %318 = vst.msk [vmem:[#allocation2 + $0x58] sm:$0x3] %vm308, 0.0
          %v319 = vld [vmem:[%s250] sm:$0xff]
          %v320 = vld [vmem:[%s250 + $0x8] sm:$0xff]
          %323 = vrot.lane.b32.xlu0 %v319, 1
          %v324 = vpop.permute.xlu0 %323
          %325 = vrot.lane.b32.xlu0 %v320, 1
          %v326 = vpop.permute.xlu0 %325
          %vm329 = vcmask 138248
          %330 = vst.msk [vmem:[#allocation2 + $0x1] sm:$0xff] %vm329, %v324
          %331 = vst.msk [vmem:[#allocation2 + $0x9] sm:$0xff] %vm329, %v326
          %s332 = scalar_lea.vmem %s250, 16 [#allocation3]
          %v333 = vld [vmem:[%s332] sm:$0xff]
          %v334 = vld [vmem:[%s332 + $0x8] sm:$0xff]
          %337 = vrot.lane.b32.xlu0 %v333, 1
          %v338 = vpop.permute.xlu0 %337
          %339 = vrot.lane.b32.xlu0 %v334, 1
          %v340 = vpop.permute.xlu0 %339
          %s343 = scalar_lea.vmem [#allocation2], 24
          %344 = vst.msk [vmem:[%s343 + $0x1] sm:$0xff] %vm329, %v338
          %345 = vst.msk [vmem:[%s343 + $0x9] sm:$0xff] %vm329, %v340
          %s346 = scalar_lea.vmem %s250, 32 [#allocation3]
          %v347 = vld [vmem:[%s346] sm:$0xff]
          %v348 = vld [vmem:[%s346 + $0x8] sm:$0xff]
          %351 = vrot.lane.b32.xlu0 %v347, 1
          %v352 = vpop.permute.xlu0 %351
          %353 = vrot.lane.b32.xlu0 %v348, 1
          %v354 = vpop.permute.xlu0 %353
          %s357 = scalar_lea.vmem [#allocation2], 48
          %358 = vst.msk [vmem:[%s357 + $0x1] sm:$0xff] %vm329, %v352
          %359 = vst.msk [vmem:[%s357 + $0x9] sm:$0xff] %vm329, %v354
          %s360 = scalar_lea.vmem %s250, 48 [#allocation3]
          %v361 = vld [vmem:[%s360] sm:$0xff]
          %v362 = vld [vmem:[%s360 + $0x8] sm:$0xff]
          %365 = vrot.lane.b32.xlu0 %v361, 1
          %v366 = vpop.permute.xlu0 %365
          %367 = vrot.lane.b32.xlu0 %v362, 1
          %v368 = vpop.permute.xlu0 %367
          %s371 = scalar_lea.vmem [#allocation2], 72
          %372 = vst.msk [vmem:[%s371 + $0x1] sm:$0xff] %vm329, %v366
          %373 = vst.msk [vmem:[%s371 + $0x9] sm:$0xff] %vm329, %v368
        $region48: #{sepconv_forward.3} parent=31 // pred_fallthru
          _
        %s374 = smul.u32 %s27, 8
        %s375 = scalar_lea.vmem [#allocation2], %s374
        %v376 = vld [vmem:[%s375] sm:$0xff]
        %s377 = sld [smem:[#allocation6]]
        %v378 = vstv %s377
        %v379 = vmul.f32 %v376, %v378
        %v380 = vadd.f32 %v379, 0.0
        %s381 = sld [smem:[#allocation6 + $0x4]]
        %v382 = vstv %s381
        %v383 = vmul.f32 %v376, %v382
        %385 = vrot.lane.b32.xlu0 %v383, 127
        %v386 = vpop.permute.xlu0 %385
        %v388 = vadd.f32 %v380, %v386
        %s389 = sld [smem:[#allocation6 + $0x8]]
        %v390 = vstv %s389
        %v391 = vmul.f32 %v376, %v390
        %393 = vrot.lane.b32.xlu0 %v391, 126
        %v394 = vpop.permute.xlu0 %393
        %v396 = vadd.f32 %v388, %v394
        %s397 = sadd.s32 %s374, 1
        %s398 = scalar_lea.vmem [#allocation2], %s397
        %v399 = vld [vmem:[%s398] sm:$0xff]
        %s400 = sld [smem:[#allocation6 + $0xc]]
        %v401 = vstv %s400
        %v402 = vmul.f32 %v399, %v401
        %v403 = vadd.f32 %v396, %v402
        %s404 = sld [smem:[#allocation6 + $0x10]]
        %v405 = vstv %s404
        %v406 = vmul.f32 %v399, %v405
        %408 = vrot.lane.b32.xlu0 %v406, 127
        %v409 = vpop.permute.xlu0 %408
        %v411 = vadd.f32 %v403, %v409
        %s412 = sld [smem:[#allocation6 + $0x14]]
        %v413 = vstv %s412
        %v414 = vmul.f32 %v399, %v413
        %416 = vrot.lane.b32.xlu0 %v414, 126
        %v417 = vpop.permute.xlu0 %416
        %v419 = vadd.f32 %v411, %v417
        %s420 = sadd.s32 %s374, 2
        %s421 = scalar_lea.vmem [#allocation2], %s420
        %v422 = vld [vmem:[%s421] sm:$0xff]
        %s423 = sld [smem:[#allocation6 + $0x18]]
        %v424 = vstv %s423
        %v425 = vmul.f32 %v422, %v424
        %v426 = vadd.f32 %v419, %v425
        %s427 = sld [smem:[#allocation6 + $0x1c]]
        %v428 = vstv %s427
        %v429 = vmul.f32 %v422, %v428
        %431 = vrot.lane.b32.xlu0 %v429, 127
        %v432 = vpop.permute.xlu0 %431
        %v434 = vadd.f32 %v426, %v432
        %s435 = sld [smem:[#allocation6 + $0x20]]
        %v436 = vstv %s435
        %v437 = vmul.f32 %v422, %v436
        %439 = vrot.lane.b32.xlu0 %v437, 126
        %v440 = vpop.permute.xlu0 %439
        %v442 = vadd.f32 %v434, %v440
        %s443 = sadd.s32 %s374, 24
        %s444 = scalar_lea.vmem [#allocation2], %s443
        %v445 = vld [vmem:[%s444] sm:$0xff]
        %s446 = sld [smem:[#allocation6 + $0x1]]
        %v447 = vstv %s446
        %v448 = vmul.f32 %v445, %v447
        %v449 = vadd.f32 %v448, 0.0
        %s450 = sld [smem:[#allocation6 + $0x5]]
        %v451 = vstv %s450
        %v452 = vmul.f32 %v445, %v451
        %454 = vrot.lane.b32.xlu0 %v452, 127
        %v455 = vpop.permute.xlu0 %454
        %v457 = vadd.f32 %v449, %v455
        %s458 = sld [smem:[#allocation6 + $0x9]]
        %v459 = vstv %s458
        %v460 = vmul.f32 %v445, %v459
        %462 = vrot.lane.b32.xlu0 %v460, 126
        %v463 = vpop.permute.xlu0 %462
        %v465 = vadd.f32 %v457, %v463
        %s466 = sadd.s32 %s397, 24
        %s467 = scalar_lea.vmem [#allocation2], %s466
        %v468 = vld [vmem:[%s467] sm:$0xff]
        %s469 = sld [smem:[#allocation6 + $0xd]]
        %v470 = vstv %s469
        %v471 = vmul.f32 %v468, %v470
        %v472 = vadd.f32 %v465, %v471
        %s473 = sld [smem:[#allocation6 + $0x11]]
        %v474 = vstv %s473
        %v475 = vmul.f32 %v468, %v474
        %477 = vrot.lane.b32.xlu0 %v475, 127
        %v478 = vpop.permute.xlu0 %477
        %v480 = vadd.f32 %v472, %v478
        %s481 = sld [smem:[#allocation6 + $0x15]]
        %v482 = vstv %s481
        %v483 = vmul.f32 %v468, %v482
        %485 = vrot.lane.b32.xlu0 %v483, 126
        %v486 = vpop.permute.xlu0 %485
        %v488 = vadd.f32 %v480, %v486
        %s489 = sadd.s32 %s420, 24
        %s490 = scalar_lea.vmem [#allocation2], %s489
        %v491 = vld [vmem:[%s490] sm:$0xff]
        %s492 = sld [smem:[#allocation6 + $0x19]]
        %v493 = vstv %s492
        %v494 = vmul.f32 %v491, %v493
        %v495 = vadd.f32 %v488, %v494
        %s496 = sld [smem:[#allocation6 + $0x1d]]
        %v497 = vstv %s496
        %v498 = vmul.f32 %v491, %v497
        %500 = vrot.lane.b32.xlu0 %v498, 127
        %v501 = vpop.permute.xlu0 %500
        %v503 = vadd.f32 %v495, %v501
        %s504 = sld [smem:[#allocation6 + $0x21]]
        %v505 = vstv %s504
        %v506 = vmul.f32 %v491, %v505
        %508 = vrot.lane.b32.xlu0 %v506, 126
        %v509 = vpop.permute.xlu0 %508
        %v511 = vadd.f32 %v503, %v509
        %s512 = sadd.s32 %s374, 48
        %s513 = scalar_lea.vmem [#allocation2], %s512
        %v514 = vld [vmem:[%s513] sm:$0xff]
        %s515 = sld [smem:[#allocation6 + $0x2]]
        %v516 = vstv %s515
        %v517 = vmul.f32 %v514, %v516
        %v518 = vadd.f32 %v517, 0.0
        %s519 = sld [smem:[#allocation6 + $0x6]]
        %v520 = vstv %s519
        %v521 = vmul.f32 %v514, %v520
        %523 = vrot.lane.b32.xlu0 %v521, 127
        %v524 = vpop.permute.xlu0 %523
        %v526 = vadd.f32 %v518, %v524
        %s527 = sld [smem:[#allocation6 + $0xa]]
        %v528 = vstv %s527
        %v529 = vmul.f32 %v514, %v528
        %531 = vrot.lane.b32.xlu0 %v529, 126
        %v532 = vpop.permute.xlu0 %531
        %v534 = vadd.f32 %v526, %v532
        %s535 = sadd.s32 %s397, 48
        %s536 = scalar_lea.vmem [#allocation2], %s535
        %v537 = vld [vmem:[%s536] sm:$0xff]
        %s538 = sld [smem:[#allocation6 + $0xe]]
        %v539 = vstv %s538
        %v540 = vmul.f32 %v537, %v539
        %v541 = vadd.f32 %v534, %v540
        %s542 = sld [smem:[#allocation6 + $0x12]]
        %v543 = vstv %s542
        %v544 = vmul.f32 %v537, %v543
        %546 = vrot.lane.b32.xlu0 %v544, 127
        %v547 = vpop.permute.xlu0 %546
        %v549 = vadd.f32 %v541, %v547
        %s550 = sld [smem:[#allocation6 + $0x16]]
        %v551 = vstv %s550
        %v552 = vmul.f32 %v537, %v551
        %554 = vrot.lane.b32.xlu0 %v552, 126
        %v555 = vpop.permute.xlu0 %554
        %v557 = vadd.f32 %v549, %v555
        %s558 = sadd.s32 %s420, 48
        %s559 = scalar_lea.vmem [#allocation2], %s558
        %v560 = vld [vmem:[%s559] sm:$0xff]
        %s561 = sld [smem:[#allocation6 + $0x1a]]
        %v562 = vstv %s561
        %v563 = vmul.f32 %v560, %v562
        %v564 = vadd.f32 %v557, %v563
        %s565 = sld [smem:[#allocation6 + $0x1e]]
        %v566 = vstv %s565
        %v567 = vmul.f32 %v560, %v566
        %569 = vrot.lane.b32.xlu0 %v567, 127
        %v570 = vpop.permute.xlu0 %569
        %v572 = vadd.f32 %v564, %v570
        %s573 = sld [smem:[#allocation6 + $0x22]]
        %v574 = vstv %s573
        %v575 = vmul.f32 %v560, %v574
        %577 = vrot.lane.b32.xlu0 %v575, 126
        %v578 = vpop.permute.xlu0 %577
        %v580 = vadd.f32 %v572, %v578
        %s581 = sadd.s32 %s374, 72
        %s582 = scalar_lea.vmem [#allocation2], %s581
        %v583 = vld [vmem:[%s582] sm:$0xff]
        %s584 = sld [smem:[#allocation6 + $0x3]]
        %v585 = vstv %s584
        %v586 = vmul.f32 %v583, %v585
        %v587 = vadd.f32 %v586, 0.0
        %s588 = sld [smem:[#allocation6 + $0x7]]
        %v589 = vstv %s588
        %v590 = vmul.f32 %v583, %v589
        %592 = vrot.lane.b32.xlu0 %v590, 127
        %v593 = vpop.permute.xlu0 %592
        %v595 = vadd.f32 %v587, %v593
        %s596 = sld [smem:[#allocation6 + $0xb]]
        %v597 = vstv %s596
        %v598 = vmul.f32 %v583, %v597
        %600 = vrot.lane.b32.xlu0 %v598, 126
        %v601 = vpop.permute.xlu0 %600
        %v603 = vadd.f32 %v595, %v601
        %s604 = sadd.s32 %s397, 72
        %s605 = scalar_lea.vmem [#allocation2], %s604
        %v606 = vld [vmem:[%s605] sm:$0xff]
        %s607 = sld [smem:[#allocation6 + $0xf]]
        %v608 = vstv %s607
        %v609 = vmul.f32 %v606, %v608
        %v610 = vadd.f32 %v603, %v609
        %s611 = sld [smem:[#allocation6 + $0x13]]
        %v612 = vstv %s611
        %v613 = vmul.f32 %v606, %v612
        %615 = vrot.lane.b32.xlu0 %v613, 127
        %v616 = vpop.permute.xlu0 %615
        %v618 = vadd.f32 %v610, %v616
        %s619 = sld [smem:[#allocation6 + $0x17]]
        %v620 = vstv %s619
        %v621 = vmul.f32 %v606, %v620
        %623 = vrot.lane.b32.xlu0 %v621, 126
        %v624 = vpop.permute.xlu0 %623
        %v626 = vadd.f32 %v618, %v624
        %s627 = sadd.s32 %s420, 72
        %s628 = scalar_lea.vmem [#allocation2], %s627
        %v629 = vld [vmem:[%s628] sm:$0xff]
        %s630 = sld [smem:[#allocation6 + $0x1b]]
        %v631 = vstv %s630
        %v632 = vmul.f32 %v629, %v631
        %v633 = vadd.f32 %v626, %v632
        %s634 = sld [smem:[#allocation6 + $0x1f]]
        %v635 = vstv %s634
        %v636 = vmul.f32 %v629, %v635
        %638 = vrot.lane.b32.xlu0 %v636, 127
        %v639 = vpop.permute.xlu0 %638
        %v641 = vadd.f32 %v633, %v639
        %s642 = sld [smem:[#allocation6 + $0x23]]
        %v643 = vstv %s642
        %v644 = vmul.f32 %v629, %v643
        %646 = vrot.lane.b32.xlu0 %v644, 126
        %v647 = vpop.permute.xlu0 %646
        %v649 = vadd.f32 %v641, %v647
        // Predicated region
        $region49: #{sepconv_forward.3} parent=31 // pred_check
          %p650 = pneg %p301
        $region50: #{sepconv_forward.3} parent=31 // pred_check_branch
          %652 = sbr.rel (%p650) target = $region52
        $region51: #{sepconv_forward.3} parent=31 // pred_region
          %vm653 = vcmask 125952
          %654 = vst.msk [vmem:[%s296] sm:$0xf] %vm653, 0.0
          %655 = vst.msk [vmem:[%s300] sm:$0xf] %vm653, 0.0
        $region52: #{sepconv_forward.3} parent=31 // pred_fallthru
          _
        %s656 = sld [smem:[#allocation7]]
        %v657 = vstv %s656
        %v658 = vmul.f32 %v442, %v657
        %s659 = sld [smem:[#allocation7 + $0x4]]
        %v660 = vstv %s659
        %v661 = vmul.f32 %v511, %v660
        %v662 = vadd.f32 %v658, %v661
        %s663 = sld [smem:[#allocation7 + $0x8]]
        %v664 = vstv %s663
        %v665 = vmul.f32 %v580, %v664
        %v666 = vadd.f32 %v662, %v665
        %s667 = sld [smem:[#allocation7 + $0xc]]
        %v668 = vstv %s667
        %v669 = vmul.f32 %v649, %v668
        %v670 = vadd.f32 %v666, %v669
        %vm671 = vcmask 130048
        %672 = vst.msk [vmem:[%s280] sm:$0xff] %vm671, %v670
        %v673 = vld [vmem:[%s296] sm:$0x1]
        %v674 = vsel %vm671, %v670, 0.0
        %v675 = vrot.slane %v674, 4
        %v676 = vadd.f32 %v674, %v675
        %v677 = vrot.slane %v676, 2
        %v678 = vadd.f32 %v676, %v677
        %v679 = vrot.slane %v678, 1
        %v680 = vadd.f32 %v678, %v679
        %v681 = vadd.f32 %v673, %v680
        %vm682 = vcmask 122880
        %683 = vst.msk [vmem:[%s296] sm:$0x1] %vm682, %v681
        %v684 = vld [vmem:[%s300] sm:$0x1]
        %v685 = vmul.f32 %v670, %v670
        %v686 = vsel %vm671, %v685, 0.0
        %v687 = vrot.slane %v686, 4
        %v688 = vadd.f32 %v686, %v687
        %v689 = vrot.slane %v688, 2
        %v690 = vadd.f32 %v688, %v689
        %v691 = vrot.slane %v690, 1
        %v692 = vadd.f32 %v690, %v691
        %v693 = vadd.f32 %v684, %v692
        %694 = vst.msk [vmem:[%s300] sm:$0x1] %vm682, %v693
        %s695 = sld [smem:[#allocation7 + $0x1]]
        %v696 = vstv %s695
        %v697 = vmul.f32 %v442, %v696
        %s698 = sld [smem:[#allocation7 + $0x5]]
        %v699 = vstv %s698
        %v700 = vmul.f32 %v511, %v699
        %v701 = vadd.f32 %v697, %v700
        %s702 = sld [smem:[#allocation7 + $0x9]]
        %v703 = vstv %s702
        %v704 = vmul.f32 %v580, %v703
        %v705 = vadd.f32 %v701, %v704
        %s706 = sld [smem:[#allocation7 + $0xd]]
        %v707 = vstv %s706
        %v708 = vmul.f32 %v649, %v707
        %v709 = vadd.f32 %v705, %v708
        %s710 = scalar_lea.vmem %s280, 8 [#allocation9]
        %711 = vst.msk [vmem:[%s710] sm:$0xff] %vm671, %v709
        %v712 = vld [vmem:[%s296 + $0x1] sm:$0x1]
        %v713 = vsel %vm671, %v709, 0.0
        %v714 = vrot.slane %v713, 4
        %v715 = vadd.f32 %v713, %v714
        %v716 = vrot.slane %v715, 2
        %v717 = vadd.f32 %v715, %v716
        %v718 = vrot.slane %v717, 1
        %v719 = vadd.f32 %v717, %v718
        %v720 = vadd.f32 %v712, %v719
        %721 = vst.msk [vmem:[%s296 + $0x1] sm:$0x1] %vm682, %v720
        %v722 = vld [vmem:[%s300 + $0x1] sm:$0x1]
        %v723 = vmul.f32 %v709, %v709
        %v724 = vsel %vm671, %v723, 0.0
        %v725 = vrot.slane %v724, 4
        %v726 = vadd.f32 %v724, %v725
        %v727 = vrot.slane %v726, 2
        %v728 = vadd.f32 %v726, %v727
        %v729 = vrot.slane %v728, 1
        %v730 = vadd.f32 %v728, %v729
        %v731 = vadd.f32 %v722, %v730
        %732 = vst.msk [vmem:[%s300 + $0x1] sm:$0x1] %vm682, %v731
        %s733 = sld [smem:[#allocation7 + $0x2]]
        %v734 = vstv %s733
        %v735 = vmul.f32 %v442, %v734
        %s736 = sld [smem:[#allocation7 + $0x6]]
        %v737 = vstv %s736
        %v738 = vmul.f32 %v511, %v737
        %v739 = vadd.f32 %v735, %v738
        %s740 = sld [smem:[#allocation7 + $0xa]]
        %v741 = vstv %s740
        %v742 = vmul.f32 %v580, %v741
        %v743 = vadd.f32 %v739, %v742
        %s744 = sld [smem:[#allocation7 + $0xe]]
        %v745 = vstv %s744
        %v746 = vmul.f32 %v649, %v745
        %v747 = vadd.f32 %v743, %v746
        %s748 = scalar_lea.vmem %s280, 16 [#allocation9]
        %749 = vst.msk [vmem:[%s748] sm:$0xff] %vm671, %v747
        %v750 = vld [vmem:[%s296 + $0x2] sm:$0x1]
        %v751 = vsel %vm671, %v747, 0.0
        %v752 = vrot.slane %v751, 4
        %v753 = vadd.f32 %v751, %v752
        %v754 = vrot.slane %v753, 2
        %v755 = vadd.f32 %v753, %v754
        %v756 = vrot.slane %v755, 1
        %v757 = vadd.f32 %v755, %v756
        %v758 = vadd.f32 %v750, %v757
        %759 = vst.msk [vmem:[%s296 + $0x2] sm:$0x1] %vm682, %v758
        %v760 = vld [vmem:[%s300 + $0x2] sm:$0x1]
        %v761 = vmul.f32 %v747, %v747
        %v762 = vsel %vm671, %v761, 0.0
        %v763 = vrot.slane %v762, 4
        %v764 = vadd.f32 %v762, %v763
        %v765 = vrot.slane %v764, 2
        %v766 = vadd.f32 %v764, %v765
        %v767 = vrot.slane %v766, 1
        %v768 = vadd.f32 %v766, %v767
        %v769 = vadd.f32 %v760, %v768
        %770 = vst.msk [vmem:[%s300 + $0x2] sm:$0x1] %vm682, %v769
        %s771 = sld [smem:[#allocation7 + $0x3]]
        %v772 = vstv %s771
        %v773 = vmul.f32 %v442, %v772
        %s774 = sld [smem:[#allocation7 + $0x7]]
        %v775 = vstv %s774
        %v776 = vmul.f32 %v511, %v775
        %v777 = vadd.f32 %v773, %v776
        %s778 = sld [smem:[#allocation7 + $0xb]]
        %v779 = vstv %s778
        %v780 = vmul.f32 %v580, %v779
        %v781 = vadd.f32 %v777, %v780
        %s782 = sld [smem:[#allocation7 + $0xf]]
        %v783 = vstv %s782
        %v784 = vmul.f32 %v649, %v783
        %v785 = vadd.f32 %v781, %v784
        %s786 = scalar_lea.vmem %s280, 24 [#allocation9]
        %787 = vst.msk [vmem:[%s786] sm:$0xff] %vm671, %v785
        %v788 = vld [vmem:[%s296 + $0x3] sm:$0x1]
        %v789 = vsel %vm671, %v785, 0.0
        %v790 = vrot.slane %v789, 4
        %v791 = vadd.f32 %v789, %v790
        %v792 = vrot.slane %v791, 2
        %v793 = vadd.f32 %v791, %v792
        %v794 = vrot.slane %v793, 1
        %v795 = vadd.f32 %v793, %v794
        %v796 = vadd.f32 %v788, %v795
        %797 = vst.msk [vmem:[%s296 + $0x3] sm:$0x1] %vm682, %v796
        %v798 = vld [vmem:[%s300 + $0x3] sm:$0x1]
        %v799 = vmul.f32 %v785, %v785
        %v800 = vsel %vm671, %v799, 0.0
        %v801 = vrot.slane %v800, 4
        %v802 = vadd.f32 %v800, %v801
        %v803 = vrot.slane %v802, 2
        %v804 = vadd.f32 %v802, %v803
        %v805 = vrot.slane %v804, 1
        %v806 = vadd.f32 %v804, %v805
        %v807 = vadd.f32 %v798, %v806
        %808 = vst.msk [vmem:[%s300 + $0x3] sm:$0x1] %vm682, %v807
        %s809 = sand.u32 %s112, 1
        %s810 = sand.u32 %s112, 1
        %s811 = smul.addr %s810, 32
        %s812 = scalar_lea.vmem [#allocation9], %s811
        %p813 = scmp.lt.s32.totalorder %s26, 1
        %s814 = scalar_select %p813, %s26, 1
        %s815 = smul.addr %s814, 4
        %s816 = scalar_lea.vmem %s4, %s815
        %p817 = scmp.lt.s32.totalorder %s26, 1
        %s818 = scalar_select %p817, %s26, 1
        %s819 = smul.addr %s818, 4
        %s820 = scalar_lea.vmem %s5, %s819
        // Predicated region
        $region53: #{sepconv_forward.3} parent=31 // pred_check
          %p821 = pneg %p122
        $region54: #{sepconv_forward.3} parent=31 // pred_check_branch
          %823 = sbr.rel (%p821) target = $region56
        $region55: #{sepconv_forward.3} parent=31 // pred_region
          %s824 = smul.addr %s26, 8
          %s825 = sadd.s32 %s27, %s824
          %s826 = smul.addr %s825, 8
          %s827 = scalar_lea.vmem %s3, %s826
          // Predicated region
          $region57: #{sepconv_forward.3} parent=55 // pred_check
            _
          $region58: #{sepconv_forward.3} parent=55 // pred_check_branch
            %829 = sbr.rel (0) target = $region60
          $region59: #{sepconv_forward.3} parent=55 // pred_region
            // Predicated region
            $region61: #{sepconv_forward.3} parent=59 // pred_check
              _
            $region62: #{sepconv_forward.3} parent=59 // pred_check_branch
              %831 = sbr.rel (0) target = $region64
            $region63: #{sepconv_forward.3} parent=59 // pred_region
              // Predicated region
              $region76: #{sepconv_forward.3} parent=63 // pred_check
                _
              $region77: #{sepconv_forward.3} parent=63 // pred_check_branch
                %853 = sbr.rel (0) target = $region79
              $region78: #{sepconv_forward.3} parent=63 // pred_region
                loop: start=0, step=1, limit=1
                $region80: #{sepconv_forward.3} parent=78 // loop_pre_header
                  _
                $region81: #{sepconv_forward.3} parent=78 // loop_header
                  %s855 = sphi 0, %s859
                  %p856 = scmp.ge.s32.totalorder %s855, 1
                  %s860 = sphi %s812, %s812
                  %s861 = sphi %s827, %s827
                $region82: #{sepconv_forward.3} parent=78 // loop_header_branch
                  %858 = sbr.rel (%p856) target = $region86
                $region83: #{sepconv_forward.3} parent=78 // loop_body
                  %v862 = vld [vmem:[%s860] sm:$0xff]
                  %863 = vst [vmem:[%s861] sm:$0xff] %v862
                  %v864 = vld [vmem:[%s860 + $0x8] sm:$0xff]
                  %865 = vst [vmem:[%s861 + $0x10] sm:$0xff] %v864
                  %v866 = vld [vmem:[%s860 + $0x10] sm:$0xff]
                  %867 = vst [vmem:[%s861 + $0x20] sm:$0xff] %v866
                  %v868 = vld [vmem:[%s860 + $0x18] sm:$0xff]
                  %869 = vst [vmem:[%s861 + $0x30] sm:$0xff] %v868
                $region84: #{sepconv_forward.3} parent=78 // loop_footer
                  %s859 = sadd.s32 1, %s855
                $region85: #{sepconv_forward.3} parent=78 // loop_footer_branch
                  %854 = sbr.rel target = $region81
                $region86: #{sepconv_forward.3} parent=78 // loop_exit
                  _
              $region79: #{sepconv_forward.3} parent=63 // pred_fallthru
                _
              // Predicated region
              $region87: #{sepconv_forward.3} parent=63 // pred_check
                _
              $region88: #{sepconv_forward.3} parent=63 // pred_check_branch
                %871 = sbr.rel target = $region90
              $region89: #{sepconv_forward.3} parent=63 // pred_region
                _
              $region90: #{sepconv_forward.3} parent=63 // pred_fallthru
                _
            $region64: #{sepconv_forward.3} parent=59 // pred_fallthru
              _
            // Predicated region
            $region65: #{sepconv_forward.3} parent=59 // pred_check
              _
            $region66: #{sepconv_forward.3} parent=59 // pred_check_branch
              %833 = sbr.rel target = $region68
            $region67: #{sepconv_forward.3} parent=59 // pred_region
              %s835 = ssub.s32 256, 1
              loop: start=0, step=1, limit=1
              $region69: #{sepconv_forward.3} parent=67 // loop_pre_header
                _
              $region70: #{sepconv_forward.3} parent=67 // loop_header
                %s837 = sphi 0, %s841
                %p838 = scmp.ge.s32.totalorder %s837, 1
                %s842 = sphi %s812, %s812
                %s843 = sphi %s827, %s827
              $region71: #{sepconv_forward.3} parent=67 // loop_header_branch
                %840 = sbr.rel (%p838) target = $region75
              $region72: #{sepconv_forward.3} parent=67 // loop_body
                %v844 = vld [vmem:[%s842] sm:%s835]
                %845 = vst [vmem:[%s843] sm:%s835] %v844
                %v846 = vld [vmem:[%s842 + $0x8] sm:%s835]
                %847 = vst [vmem:[%s843 + $0x10] sm:%s835] %v846
                %v848 = vld [vmem:[%s842 + $0x10] sm:%s835]
                %849 = vst [vmem:[%s843 + $0x20] sm:%s835] %v848
                %v850 = vld [vmem:[%s842 + $0x18] sm:%s835]
                %851 = vst [vmem:[%s843 + $0x30] sm:%s835] %v850
              $region73: #{sepconv_forward.3} parent=67 // loop_footer
                %s841 = sadd.s32 1, %s837
              $region74: #{sepconv_forward.3} parent=67 // loop_footer_branch
                %836 = sbr.rel target = $region70
              $region75: #{sepconv_forward.3} parent=67 // loop_exit
                _
            $region68: #{sepconv_forward.3} parent=59 // pred_fallthru
              _
          $region60: #{sepconv_forward.3} parent=55 // pred_fallthru
            _
          %872 = vnop
        $region56: #{sepconv_forward.3} parent=31 // pred_fallthru
          _
        // Predicated region
        $region91: #{sepconv_forward.3} parent=31 // pred_check
          %p873 = pneg %p148
        $region92: #{sepconv_forward.3} parent=31 // pred_check_branch
          %875 = sbr.rel (%p873) target = $region94
        $region93: #{sepconv_forward.3} parent=31 // pred_region
          _
        $region94: #{sepconv_forward.3} parent=31 // pred_fallthru
          _
        // Predicated region
        $region95: #{sepconv_forward.3} parent=31 // pred_check
          %p876 = pneg %p174
        $region96: #{sepconv_forward.3} parent=31 // pred_check_branch
          %878 = sbr.rel (%p876) target = $region98
        $region97: #{sepconv_forward.3} parent=31 // pred_region
          _
        $region98: #{sepconv_forward.3} parent=31 // pred_fallthru
          _
      $region32: #{sepconv_forward.3} parent=5 // pred_fallthru
        _
      %p879 = scmp.le.s32.totalorder 2, %s17
      // Predicated region
      $region99: #{sepconv_forward.3} parent=5 // pred_check
        %p880 = pneg %p879
      $region100: #{sepconv_forward.3} parent=5 // pred_check_branch
        %882 = sbr.rel (%p880) target = $region102
      $region101: #{sepconv_forward.3} parent=5 // pred_region
        %s883 = ssub.s32 %s17, 2
        // Predicated region
        $region103: #{sepconv_forward.3} parent=101 // pred_check
          %p884 = pneg %p128
        $region104: #{sepconv_forward.3} parent=101 // pred_check_branch
          %886 = sbr.rel (%p884) target = $region106
        $region105: #{sepconv_forward.3} parent=101 // pred_region
          %s887 = sand.u32 %s113, 1
          %s888 = sand.u32 %s113, 1
          %s889 = smul.addr %s888, 32
          %s890 = scalar_lea.vmem [#allocation9], %s889
        $region106: #{sepconv_forward.3} parent=101 // pred_fallthru
          _
        // Predicated region
        $region107: #{sepconv_forward.3} parent=101 // pred_check
          %p891 = pneg %p154
        $region108: #{sepconv_forward.3} parent=101 // pred_check_branch
          %893 = sbr.rel (%p891) target = $region110
        $region109: #{sepconv_forward.3} parent=101 // pred_region
          %p894 = scmp.lt.s32.totalorder %s28, 1
          %s895 = scalar_select %p894, %s28, 1
          %s896 = smul.addr %s895, 4
          %s897 = scalar_lea.vmem %s4, %s896
        $region110: #{sepconv_forward.3} parent=101 // pred_fallthru
          _
        // Predicated region
        $region111: #{sepconv_forward.3} parent=101 // pred_check
          %p898 = pneg %p180
        $region112: #{sepconv_forward.3} parent=101 // pred_check_branch
          %900 = sbr.rel (%p898) target = $region114
        $region113: #{sepconv_forward.3} parent=101 // pred_region
          %p901 = scmp.lt.s32.totalorder %s28, 1
          %s902 = scalar_select %p901, %s28, 1
          %s903 = smul.addr %s902, 4
          %s904 = scalar_lea.vmem %s5, %s903
        $region114: #{sepconv_forward.3} parent=101 // pred_fallthru
          _
      $region102: #{sepconv_forward.3} parent=5 // pred_fallthru
        _
    $region6: #{sepconv_forward.3} parent=1 // loop_footer
      %s21 = sadd.s32 1, %s17
    $region7: #{sepconv_forward.3} parent=1 // loop_footer_branch
      %16 = sbr.rel target = $region3
    $region8: #{sepconv_forward.3} parent=1 // loop_exit
      _
    %905 = vsyncpa [#allocation4], 1
    %s906 = scalar_lea.sflag [#allocation4], 1
    %907 = vsyncpa %s906, 1
    %908 = vsyncpa [#allocation5], 1
    %s909 = scalar_lea.sflag [#allocation5], 1
    %910 = vsyncpa %s909, 1
    %911 = vsyncpa [#allocation8], 1

// kernel: sepconv_forward.4
$region0: #{sepconv_forward.4}
  #allocation0 [shape = 'u32[]', space=smem, size = 0x4, offset = 0x4, fixed_abs, tag = 'smem constant byte address 0x4 - core index']
  #allocation1 [shape = 'u32[144,128]{1,0:T(1,128)}', space=vmem, size = 0x12000, scoped, tag = 'internal scratch']
  #allocation2 [shape = 'f32[4,18,18]{2,1,0:T(8,128)}', space=vmem, size = 0xc000, scoped, tag = 'scratch operand']
  %s0 = inlined_call_operand.vmem [shape: f32[2,4,16,16], index: 0, kind: input, shape index: {}]
  %s1 = inlined_call_operand.vmem [shape: f32[36], index: 1, kind: input, shape index: {}]
  %s2 = inlined_call_operand.vmem [shape: f32[32], index: 2, kind: input, shape index: {}]
  %s3 = inlined_call_operand.vmem [shape: f32[4], index: 3, kind: input, shape index: {}]
  %s4 = inlined_call_operand.vmem [shape: f32[4], index: 4, kind: input, shape index: {}]
  %s5 = inlined_call_operand.vmem [shape: f32[2,8,16,16], index: 5, kind: output, shape index: {0}]
  %s6 = inlined_call_operand.vmem [shape: f32[2,8,16], index: 6, kind: output, shape index: {1}]
  %s7 = inlined_call_operand.vmem [shape: f32[2,8,16], index: 7, kind: output, shape index: {2}]
  %8 = xla_tuple %s5, %s6, %s7
  %s9 = sld [smem:[#allocation0]]
  $region127: #{sepconv_forward.4} parent=0
    _
  %s11 = ssub.s32 1, %s9
  %s12 = scalar_select 0, %s11, %s9
  $region1: #{sepconv_forward.4} parent=0
    #allocation3 [shape = 'u8[512]{0}', space=smem, size = 0x200, scoped, tag = 'input window, operand 1, single buffered']
    #allocation4 [shape = 's32[2]{0}', space=sflag, size = 0x8, scoped, tag = 'scoped memory for sepconv_forward.4']
    #allocation5 [shape = 'u8[512]{0}', space=smem, size = 0x200, scoped, tag = 'input window, operand 2, single buffered']
    #allocation6 [shape = 's32[1]{0}', space=sflag, size = 0x4, scoped, tag = 'scoped memory for sepconv_forward.4']
    #allocation7 [shape = 'u8[512]{0}', space=smem, size = 0x200, scoped, tag = 'input window, operand 3, single buffered']
    #allocation8 [shape = 'u8[512]{0}', space=smem, size = 0x200, scoped, tag = 'input window, operand 4, single buffered']
    #allocation9 [shape = 's32[1]{0}', space=sflag, size = 0x4, scoped, tag = 'scoped memory for sepconv_forward.4']
    #allocation10 [shape = 'u8[65536]{0}', space=vmem, size = 0x10000, scoped, tag = 'output window, operand 0']
    %13 = vsyncpa [#allocation4], 0
    %14 = vsyncpa [#allocation6], 0
    %15 = vsyncpa [#allocation9], 0
    loop: start=0, step=1, limit=6
    $region2: #{sepconv_forward.4} parent=1 // loop_pre_header
      _
    $region3: #{sepconv_forward.4} parent=1 // loop_header
      %s17 = sphi 0, %s21
      %p18 = scmp.ge.s32.totalorder %s17, 6
      %s24 = sphi 0, %s36
      %s25 = sphi 0, %s32
      %s26 = sphi 0, %s24
      %s27 = sphi 0, %s25
      %s28 = sphi 0, %s26
      %s29 = sphi 0, %s27
      %s39 = sphi 0, %s41
      %s42 = sphi 0, %s39
      %s43 = sphi 0, %s42
      %s59 = sphi 0, %s43
      %s63 = sphi 0, %s63
      %s65 = sphi 0, %s63
      %s66 = sphi 0, %s65
      %s80 = sphi 0, %s66
      %s84 = sphi 0, %s84
      %s86 = sphi 0, %s84
      %s87 = sphi 0, %s86
      %s101 = sphi 0, %s87
      %s105 = sphi 0, %s105
      %s107 = sphi 0, %s105
      %s108 = sphi 0, %s107
      %s122 = sphi 0, %s108
      %s126 = sphi 0, %s126
      %s128 = sphi 0, %s126
      %s129 = sphi 0, %s128
      %s143 = sphi 0, %s129
      %s151 = sphi 0, %s153
      %s154 = sphi 0, %s151
      %s155 = sphi 0, %s154
      %s171 = sphi 0, %s155
      %s177 = sphi 0, %s179
      %s180 = sphi 0, %s177
      %s181 = sphi 0, %s180
      %s197 = sphi 0, %s181
      %s203 = sphi 0, %s205
      %s206 = sphi 0, %s203
      %s207 = sphi 0, %s206
      %s223 = sphi 0, %s207
    $region4: #{sepconv_forward.4} parent=1 // loop_header_branch
      %20 = sbr.rel (%p18) target = $region8
    $region5: #{sepconv_forward.4} parent=1 // loop_body
      %s22 = ssub.s32 %s17, 1
      %s23 = ssub.s32 %s17, 2
      %s30 = sadd.s32 1, %s25
      %p31 = scmp.ge.s32.totalorder %s30, 2
      %s32 = scalar_select %p31, 0, %s30
      %s33 = sadd.s32 1, %s24
      %s34 = scalar_select %p31, %s33, %s24
      %p35 = scmp.ge.s32.totalorder %s34, 2
      %s36 = scalar_select %p35, 0, %s34
      %s37 = ssub.s32 %s24, %s36
      %p38 = scmp.eq.s32.totalorder %s37, 0
      %s40 = sadd.s32 %s39, 1
      %s41 = scalar_select %p38, %s39, %s40
      %p44 = pneg %p38
      %p45 = scmp.eq.s32.totalorder %s17, 3
      %p46 = por %p44, %p45
      %p47 = scmp.ne.s32.totalorder %s39, %s42
      %p48 = scmp.eq.s32.totalorder %s17, 0
      %p49 = por %p47, %p48
      %p50 = scmp.ne.s32.totalorder %s39, %s42
      %p51 = scmp.eq.s32.totalorder %s22, 3
      %p52 = por %p50, %p51
      %p53 = scmp.ne.s32.totalorder %s42, %s43
      %p54 = scmp.eq.s32.totalorder %s22, 0
      %p55 = por %p53, %p54
      %p56 = scmp.ne.s32.totalorder %s42, %s43
      %p57 = scmp.eq.s32.totalorder %s23, 3
      %p58 = por %p56, %p57
      %p60 = scmp.ne.s32.totalorder %s43, %s59
      %p61 = scmp.eq.s32.totalorder %s23, 0
      %p62 = por %p60, %p61
      %s64 = sadd.s32 %s63, 1
      %p67 = scmp.eq.s32.totalorder %s17, 3
      %p68 = scmp.ne.s32.totalorder %s63, %s65
      %p69 = scmp.eq.s32.totalorder %s17, 0
      %p70 = por %p68, %p69
      %p71 = scmp.ne.s32.totalorder %s63, %s65
      %p72 = scmp.eq.s32.totalorder %s22, 3
      %p73 = por %p71, %p72
      %p74 = scmp.ne.s32.totalorder %s65, %s66
      %p75 = scmp.eq.s32.totalorder %s22, 0
      %p76 = por %p74, %p75
      %p77 = scmp.ne.s32.totalorder %s65, %s66
      %p78 = scmp.eq.s32.totalorder %s23, 3
      %p79 = por %p77, %p78
      %p81 = scmp.ne.s32.totalorder %s66, %s80
      %p82 = scmp.eq.s32.totalorder %s23, 0
      %p83 = por %p81, %p82
      %s85 = sadd.s32 %s84, 1
      %p88 = scmp.eq.s32.totalorder %s17, 3
      %p89 = scmp.ne.s32.totalorder %s84, %s86
      %p90 = scmp.eq.s32.totalorder %s17, 0
      %p91 = por %p89, %p90
      %p92 = scmp.ne.s32.totalorder %s84, %s86
      %p93 = scmp.eq.s32.totalorder %s22, 3
      %p94 = por %p92, %p93
      %p95 = scmp.ne.s32.totalorder %s86, %s87
      %p96 = scmp.eq.s32.totalorder %s22, 0
      %p97 = por %p95, %p96
      %p98 = scmp.ne.s32.totalorder %s86, %s87
      %p99 = scmp.eq.s32.totalorder %s23, 3
      %p100 = por %p98, %p99
      %p102 = scmp.ne.s32.totalorder %s87, %s101
      %p103 = scmp.eq.s32.totalorder %s23, 0
      %p104 = por %p102, %p103
      %s106 = sadd.s32 %s105, 1
      %p109 = scmp.eq.s32.totalorder %s17, 3
      %p110 = scmp.ne.s32.totalorder %s105, %s107
      %p111 = scmp.eq.s32.totalorder %s17, 0
      %p112 = por %p110, %p111
      %p113 = scmp.ne.s32.totalorder %s105, %s107
      %p114 = scmp.eq.s32.totalorder %s22, 3
      %p115 = por %p113, %p114
      %p116 = scmp.ne.s32.totalorder %s107, %s108
      %p117 = scmp.eq.s32.totalorder %s22, 0
      %p118 = por %p116, %p117
      %p119 = scmp.ne.s32.totalorder %s107, %s108
      %p120 = scmp.eq.s32.totalorder %s23, 3
      %p121 = por %p119, %p120
      %p123 = scmp.ne.s32.totalorder %s108, %s122
      %p124 = scmp.eq.s32.totalorder %s23, 0
      %p125 = por %p123, %p124
      %s127 = sadd.s32 %s126, 1
      %p130 = scmp.eq.s32.totalorder %s17, 3
      %p131 = scmp.ne.s32.totalorder %s126, %s128
      %p132 = scmp.eq.s32.totalorder %s17, 0
      %p133 = por %p131, %p132
      %p134 = scmp.ne.s32.totalorder %s126, %s128
      %p135 = scmp.eq.s32.totalorder %s22, 3
      %p136 = por %p134, %p135
      %p137 = scmp.ne.s32.totalorder %s128, %s129
      %p138 = scmp.eq.s32.totalorder %s22, 0
      %p139 = por %p137, %p138
      %p140 = scmp.ne.s32.totalorder %s128, %s129
      %p141 = scmp.eq.s32.totalorder %s23, 3
      %p142 = por %p140, %p141
      %p144 = scmp.ne.s32.totalorder %s129, %s143
      %p145 = scmp.eq.s32.totalorder %s23, 0
      %p146 = por %p144, %p145
      %s147 = ssub.s32 %s24, %s36
      %s148 = ssub.s32 %s25, %s32
      %s149 = sor.u32 %s147, %s148
      %p150 = scmp.eq.s32.totalorder %s149, 0
      %s152 = sadd.s32 %s151, 1
      %s153 = scalar_select %p150, %s151, %s152
      %p156 = pneg %p150
      %p157 = scmp.eq.s32.totalorder %s17, 3
      %p158 = por %p156, %p157
      %p159 = scmp.ne.s32.totalorder %s151, %s154
      %p160 = scmp.eq.s32.totalorder %s17, 0
      %p161 = por %p159, %p160
      %p162 = scmp.ne.s32.totalorder %s151, %s154
      %p163 = scmp.eq.s32.totalorder %s22, 3
      %p164 = por %p162, %p163
      %p165 = scmp.ne.s32.totalorder %s154, %s155
      %p166 = scmp.eq.s32.totalorder %s22, 0
      %p167 = por %p165, %p166
      %p168 = scmp.ne.s32.totalorder %s154, %s155
      %p169 = scmp.eq.s32.totalorder %s23, 3
      %p170 = por %p168, %p169
      %p172 = scmp.ne.s32.totalorder %s155, %s171
      %p173 = scmp.eq.s32.totalorder %s23, 0
      %p174 = por %p172, %p173
      %s175 = ssub.s32 %s24, %s36
      %p176 = scmp.eq.s32.totalorder %s175, 0
      %s178 = sadd.s32 %s177, 1
      %s179 = scalar_select %p176, %s177, %s178
      %p182 = pneg %p176
      %p183 = scmp.eq.s32.totalorder %s17, 3
      %p184 = por %p182, %p183
      %p185 = scmp.ne.s32.totalorder %s177, %s180
      %p186 = scmp.eq.s32.totalorder %s17, 0
      %p187 = por %p185, %p186
      %p188 = scmp.ne.s32.totalorder %s177, %s180
      %p189 = scmp.eq.s32.totalorder %s22, 3
      %p190 = por %p188, %p189
      %p191 = scmp.ne.s32.totalorder %s180, %s181
      %p192 = scmp.eq.s32.totalorder %s22, 0
      %p193 = por %p191, %p192
      %p194 = scmp.ne.s32.totalorder %s180, %s181
      %p195 = scmp.eq.s32.totalorder %s23, 3
      %p196 = por %p194, %p195
      %p198 = scmp.ne.s32.totalorder %s181, %s197
      %p199 = scmp.eq.s32.totalorder %s23, 0
      %p200 = por %p198, %p199
      %s201 = ssub.s32 %s24, %s36
      %p202 = scmp.eq.s32.totalorder %s201, 0
      %s204 = sadd.s32 %s203, 1
      %s205 = scalar_select %p202, %s203, %s204
      %p208 = pneg %p202
      %p209 = scmp.eq.s32.totalorder %s17, 3
      %p210 = por %p208, %p209
      %p211 = scmp.ne.s32.totalorder %s203, %s206
      %p212 = scmp.eq.s32.totalorder %s17, 0
      %p213 = por %p211, %p212
      %p214 = scmp.ne.s32.totalorder %s203, %s206
      %p215 = scmp.eq.s32.totalorder %s22, 3
      %p216 = por %p214, %p215
      %p217 = scmp.ne.s32.totalorder %s206, %s207
      %p218 = scmp.eq.s32.totalorder %s22, 0
      %p219 = por %p217, %p218
      %p220 = scmp.ne.s32.totalorder %s206, %s207
      %p221 = scmp.eq.s32.totalorder %s23, 3
      %p222 = por %p220, %p221
      %p224 = scmp.ne.s32.totalorder %s207, %s223
      %p225 = scmp.eq.s32.totalorder %s23, 0
      %p226 = por %p224, %p225
      %p227 = scmp.le.s32.totalorder 1, %s17
      %p228 = scmp.lt.s32.totalorder %s17, 5
      %p229 = pnand %p227, %p228
      %p230 = pneg %p229
      // Predicated region
      $region9: #{sepconv_forward.4} parent=5 // pred_check
        _
      $region10: #{sepconv_forward.4} parent=5 // pred_check_branch
        %232 = sbr.rel (%p229) target = $region12
      $region11: #{sepconv_forward.4} parent=5 // pred_region
        %s233 = ssub.s32 %s17, 1
        // Predicated region
        $region13: #{sepconv_forward.4} parent=11 // pred_check
          %p234 = pneg %p76
        $region14: #{sepconv_forward.4} parent=11 // pred_check_branch
          %236 = sbr.rel (%p234) target = $region16
        $region15: #{sepconv_forward.4} parent=11 // pred_region
          %s238 = ssub.s32 16, 16
          %239 = vsyncadd [#allocation4], %s238
          %s241 = sshll.u32 %s1, 4
          %s242 = int_to_ptr.vmem [resolvable:$true] %s241
          %244 = dma.vmem_to_smem %s242, 16, [#allocation3], [#allocation4]
        $region16: #{sepconv_forward.4} parent=11 // pred_fallthru
          _
        // Predicated region
        $region17: #{sepconv_forward.4} parent=11 // pred_check
          %p245 = pneg %p97
        $region18: #{sepconv_forward.4} parent=11 // pred_check_branch
          %247 = sbr.rel (%p245) target = $region20
        $region19: #{sepconv_forward.4} parent=11 // pred_region
          %s249 = ssub.s32 16, 16
          %250 = vsyncadd [#allocation6], %s249
          %s252 = sshll.u32 %s2, 4
          %s253 = int_to_ptr.vmem [resolvable:$true] %s252
          %255 = dma.vmem_to_smem %s253, 16, [#allocation5], [#allocation6]
        $region20: #{sepconv_forward.4} parent=11 // pred_fallthru
          _
        // Predicated region
        $region21: #{sepconv_forward.4} parent=11 // pred_check
          %p256 = pneg %p118
        $region22: #{sepconv_forward.4} parent=11 // pred_check_branch
          %258 = sbr.rel (%p256) target = $region24
        $region23: #{sepconv_forward.4} parent=11 // pred_region
          %s260 = ssub.s32 16, 16
          %261 = vsyncadd [#allocation6], %s260
          %s263 = sshll.u32 %s3, 4
          %s264 = int_to_ptr.vmem [resolvable:$true] %s263
          %266 = dma.vmem_to_smem %s264, 16, [#allocation7], [#allocation6]
        $region24: #{sepconv_forward.4} parent=11 // pred_fallthru
          _
        // Predicated region
        $region25: #{sepconv_forward.4} parent=11 // pred_check
          %p267 = pneg %p139
        $region26: #{sepconv_forward.4} parent=11 // pred_check_branch
          %269 = sbr.rel (%p267) target = $region28
        $region27: #{sepconv_forward.4} parent=11 // pred_region
          %s271 = ssub.s32 16, 16
          %272 = vsyncadd [#allocation9], %s271
          %s274 = sshll.u32 %s4, 4
          %s275 = int_to_ptr.vmem [resolvable:$true] %s274
          %277 = dma.vmem_to_smem %s275, 16, [#allocation8], [#allocation9]
        $region28: #{sepconv_forward.4} parent=11 // pred_fallthru
          _
      $region12: #{sepconv_forward.4} parent=5 // pred_fallthru
        _
      %p278 = scmp.lt.s32.totalorder %s17, 4
      // Predicated region
      $region29: #{sepconv_forward.4} parent=5 // pred_check
        %p279 = pneg %p278
      $region30: #{sepconv_forward.4} parent=5 // pred_check_branch
        %281 = sbr.rel (%p279) target = $region32
      $region31: #{sepconv_forward.4} parent=5 // pred_region
        // Predicated region
        $region33: #{sepconv_forward.4} parent=31 // pred_check
          %p282 = pneg %p49
        $region34: #{sepconv_forward.4} parent=31 // pred_check_branch
          %284 = sbr.rel (%p282) target = $region36
        $region35: #{sepconv_forward.4} parent=31 // pred_region
          %p285 = scmp.lt.s32.totalorder %s24, 1
          %s286 = scalar_select %p285, %s24, 1
          %s287 = smul.addr %s286, 8
          %s288 = smul.addr %s287, 8
          %s289 = scalar_lea.vmem %s0, %s288
        $region36: #{sepconv_forward.4} parent=31 // pred_fallthru
          _
      $region32: #{sepconv_forward.4} parent=5 // pred_fallthru
        _
      %p290 = scmp.le.s32.totalorder 1, %s17
      %p291 = scmp.lt.s32.totalorder %s17, 5
      %p292 = pnand %p290, %p291
      %p293 = pneg %p292
      // Predicated region
      $region37: #{sepconv_forward.4} parent=5 // pred_check
        _
      $region38: #{sepconv_forward.4} parent=5 // pred_check_branch
        %295 = sbr.rel (%p292) target = $region40
      $region39: #{sepconv_forward.4} parent=5 // pred_region
        %s296 = ssub.s32 %s17, 1
        // Predicated region
        $region41: #{sepconv_forward.4} parent=39 // pred_check
          %p297 = pneg %p76
        $region42: #{sepconv_forward.4} parent=39 // pred_check_branch
          %299 = sbr.rel (%p297) target = $region44
        $region43: #{sepconv_forward.4} parent=39 // pred_region
          %300 = dma.done [#allocation4], 16
        $region44: #{sepconv_forward.4} parent=39 // pred_fallthru
          _
        // Predicated region
        $region45: #{sepconv_forward.4} parent=39 // pred_check
          %p301 = pneg %p97
        $region46: #{sepconv_forward.4} parent=39 // pred_check_branch
          %303 = sbr.rel (%p301) target = $region48
        $region47: #{sepconv_forward.4} parent=39 // pred_region
          %304 = dma.done [#allocation6], 16
        $region48: #{sepconv_forward.4} parent=39 // pred_fallthru
          _
        // Predicated region
        $region49: #{sepconv_forward.4} parent=39 // pred_check
          %p305 = pneg %p118
        $region50: #{sepconv_forward.4} parent=39 // pred_check_branch
          %307 = sbr.rel (%p305) target = $region52
        $region51: #{sepconv_forward.4} parent=39 // pred_region
          %308 = dma.done [#allocation6], 16
        $region52: #{sepconv_forward.4} parent=39 // pred_fallthru
          _
        // Predicated region
        $region53: #{sepconv_forward.4} parent=39 // pred_check
          %p309 = pneg %p139
        $region54: #{sepconv_forward.4} parent=39 // pred_check_branch
          %311 = sbr.rel (%p309) target = $region56
        $region55: #{sepconv_forward.4} parent=39 // pred_region
          %312 = dma.done [#allocation9], 16
        $region56: #{sepconv_forward.4} parent=39 // pred_fallthru
          _
        %313 = sfence
        %p314 = scmp.lt.s32.totalorder %s26, 1
        %s315 = scalar_select %p314, %s26, 1
        %s316 = smul.addr %s315, 8
        %s317 = smul.addr %s316, 8
        %s318 = scalar_lea.vmem %s0, %s317
        %p319 = pneg %p55
        %p320 = pneg %p52
        %p321 = pneg %p76
        %p322 = pneg %p73
        %p323 = pneg %p97
        %p324 = pneg %p94
        %p325 = pneg %p118
        %p326 = pneg %p115
        %p327 = pneg %p139
        %p328 = pneg %p136
        %p329 = pneg %p167
        %p330 = pneg %p164
        %s331 = sand.u32 %s154, 1
        %s332 = sand.u32 %s154, 1
        %s333 = smul.addr %s332, 64
        %s334 = scalar_lea.vmem [#allocation10], %s333
        %p335 = pneg %p193
        %p336 = pneg %p190
        %p337 = scmp.lt.s32.totalorder %s26, 1
        %s338 = scalar_select %p337, %s26, 1
        %s339 = smul.addr %s338, 8
        %s340 = scalar_lea.vmem %s6, %s339
        %p341 = pneg %p219
        %p342 = pneg %p216
        %p343 = scmp.lt.s32.totalorder %s26, 1
        %s344 = scalar_select %p343, %s26, 1
        %s345 = smul.addr %s344, 8
        %s346 = scalar_lea.vmem %s7, %s345
        %p347 = scmp.lt.s32.totalorder %s26, 1
        %s348 = scalar_select %p347, %s26, 1
        %s349 = smul.addr %s348, 8
        %s350 = smul.addr %s349, 8
        %s351 = scalar_lea.vmem %s0, %s350
        %p352 = scmp.lt.s32.totalorder %s26, 1
        %s353 = scalar_select %p352, %s26, 1
        %s354 = smul.addr %s353, 8
        %s355 = scalar_lea.vmem %s6, %s354
        %p356 = scmp.lt.s32.totalorder %s26, 1
        %s357 = scalar_select %p356, %s26, 1
        %s358 = smul.addr %s357, 8
        %s359 = scalar_lea.vmem %s7, %s358
        %p360 = scmp.eq.s32.totalorder %s27, 0
        // Predicated region
        $region57: #{sepconv_forward.4} parent=39 // pred_check
          %p361 = pneg %p360
        $region58: #{sepconv_forward.4} parent=39 // pred_check_branch
          %363 = sbr.rel (%p361) target = $region60
        $region59: #{sepconv_forward.4} parent=39 // pred_region
          %vm364 = vcmask 146432
          %365 = vst.msk [vmem:[#allocation2] sm:$0xff] %vm364, 0.0
          %366 = vst.msk [vmem:[#allocation2 + $0x8] sm:$0xff] %vm364, 0.0
          %vm367 = vcmask 140288
          %368 = vst.msk [vmem:[#allocation2 + $0x10] sm:$0x3] %vm367, 0.0
          %369 = vst.msk [vmem:[#allocation2 + $0x18] sm:$0xff] %vm364, 0.0
          %370 = vst.msk [vmem:[#allocation2 + $0x20] sm:$0xff] %vm364, 0.0
          %371 = vst.msk [vmem:[#allocation2 + $0x28] sm:$0x3] %vm367, 0.0
          %372 = vst.msk [vmem:[#allocation2 + $0x30] sm:$0xff] %vm364, 0.0
          %373 = vst.msk [vmem:[#allocation2 + $0x38] sm:$0xff] %vm364, 0.0
          %374 = vst.msk [vmem:[#allocation2 + $0x40] sm:$0x3] %vm367, 0.0
          %375 = vst.msk [vmem:[#allocation2 + $0x48] sm:$0xff] %vm364, 0.0
          %376 = vst.msk [vmem:[#allocation2 + $0x50] sm:$0xff] %vm364, 0.0
          %377 = vst.msk [vmem:[#allocation2 + $0x58] sm:$0x3] %vm367, 0.0
          %v378 = vld [vmem:[%s351] sm:$0xff]
          %v379 = vld [vmem:[%s351 + $0x8] sm:$0xff]
          %s380 = sld [smem:[#allocation7]]
          %v381 = vstv %s380
          %v382 = vmul.f32 %v378, %v381
          %v383 = vmul.f32 %v379, %v381
          %s384 = sld [smem:[#allocation8]]
          %v385 = vstv %s384
          %v386 = vadd.f32 %v382, %v385
          %v387 = vadd.f32 %v383, %v385
          %v388 = vmax.f32 %v386, 0.0
          %v389 = vmax.f32 %v387, 0.0
          %392 = vrot.lane.b32.xlu0 %v388, 1
          %v393 = vpop.permute.xlu0 %392
          %394 = vrot.lane.b32.xlu0 %v389, 1
          %v395 = vpop.permute.xlu0 %394
          %vm398 = vcmask 138248
          %399 = vst.msk [vmem:[#allocation2 + $0x1] sm:$0xff] %vm398, %v393
          %400 = vst.msk [vmem:[#allocation2 + $0x9] sm:$0xff] %vm398, %v395
          %s401 = scalar_lea.vmem %s351, 16
          %v402 = vld [vmem:[%s401] sm:$0xff]
          %v403 = vld [vmem:[%s401 + $0x8] sm:$0xff]
          %s404 = sld [smem:[#allocation7 + $0x1]]
          %v405 = vstv %s404
          %v406 = vmul.f32 %v402, %v405
          %v407 = vmul.f32 %v403, %v405
          %s408 = sld [smem:[#allocation8 + $0x1]]
          %v409 = vstv %s408
          %v410 = vadd.f32 %v406, %v409
          %v411 = vadd.f32 %v407, %v409
          %v412 = vmax.f32 %v410, 0.0
          %v413 = vmax.f32 %v411, 0.0
          %416 = vrot.lane.b32.xlu0 %v412, 1
          %v417 = vpop.permute.xlu0 %416
          %418 = vrot.lane.b32.xlu0 %v413, 1
          %v419 = vpop.permute.xlu0 %418
          %s422 = scalar_lea.vmem [#allocation2], 24
          %423 = vst.msk [vmem:[%s422 + $0x1] sm:$0xff] %vm398, %v417
          %424 = vst.msk [vmem:[%s422 + $0x9] sm:$0xff] %vm398, %v419
          %s425 = scalar_lea.vmem %s351, 32
          %v426 = vld [vmem:[%s425] sm:$0xff]
          %v427 = vld [vmem:[%s425 + $0x8] sm:$0xff]
          %s428 = sld [smem:[#allocation7 + $0x2]]
          %v429 = vstv %s428
          %v430 = vmul.f32 %v426, %v429
          %v431 = vmul.f32 %v427, %v429
          %s432 = sld [smem:[#allocation8 + $0x2]]
          %v433 = vstv %s432
          %v434 = vadd.f32 %v430, %v433
          %v435 = vadd.f32 %v431, %v433
          %v436 = vmax.f32 %v434, 0.0
          %v437 = vmax.f32 %v435, 0.0
          %440 = vrot.lane.b32.xlu0 %v436, 1
          %v441 = vpop.permute.xlu0 %440
          %442 = vrot.lane.b32.xlu0 %v437, 1
          %v443 = vpop.permute.xlu0 %442
          %s446 = scalar_lea.vmem [#allocation2], 48
          %447 = vst.msk [vmem:[%s446 + $0x1] sm:$0xff] %vm398, %v441
          %448 = vst.msk [vmem:[%s446 + $0x9] sm:$0xff] %vm398, %v443
          %s449 = scalar_lea.vmem %s351, 48
          %v450 = vld [vmem:[%s449] sm:$0xff]
          %v451 = vld [vmem:[%s449 + $0x8] sm:$0xff]
          %s452 = sld [smem:[#allocation7 + $0x3]]
          %v453 = vstv %s452
          %v454 = vmul.f32 %v450, %v453
          %v455 = vmul.f32 %v451, %v453
          %s456 = sld [smem:[#allocation8 + $0x3]]
          %v457 = vstv %s456
          %v458 = vadd.f32 %v454, %v457
          %v459 = vadd.f32 %v455, %v457
          %v460 = vmax.f32 %v458, 0.0
          %v461 = vmax.f32 %v459, 0.0
          %464 = vrot.lane.b32.xlu0 %v460, 1
          %v465 = vpop.permute.xlu0 %464
          %466 = vrot.lane.b32.xlu0 %v461, 1
          %v467 = vpop.permute.xlu0 %466
          %s470 = scalar_lea.vmem [#allocation2], 72
          %471 = vst.msk [vmem:[%s470 + $0x1] sm:$0xff] %vm398, %v465
          %472 = vst.msk [vmem:[%s470 + $0x9] sm:$0xff] %vm398, %v467
        $region60: #{sepconv_forward.4} parent=39 // pred_fallthru
          _
        %s473 = smul.u32 %s27, 8
        %s474 = scalar_lea.vmem [#allocation2], %s473
        %v475 = vld [vmem:[%s474] sm:$0xff]
        %s476 = sld [smem:[#allocation3]]
        %v477 = vstv %s476
        %v478 = vmul.f32 %v475, %v477
        %v479 = vadd.f32 %v478, 0.0
        %s480 = sld [smem:[#allocation3 + $0x4]]
        %v481 = vstv %s480
        %v482 = vmul.f32 %v475, %v481
        %484 = vrot.lane.b32.xlu0 %v482, 127
        %v485 = vpop.permute.xlu0 %484
        %v487 = vadd.f32 %v479, %v485
        %s488 = sld [smem:[#allocation3 + $0x8]]
        %v489 = vstv %s488
        %v490 = vmul.f32 %v475, %v489
        %492 = vrot.lane.b32.xlu0 %v490, 126
        %v493 = vpop.permute.xlu0 %492
        %v495 = vadd.f32 %v487, %v493
        %s496 = sadd.s32 %s473, 1
        %s497 = scalar_lea.vmem [#allocation2], %s496
        %v498 = vld [vmem:[%s497] sm:$0xff]
        %s499 = sld [smem:[#allocation3 + $0xc]]
        %v500 = vstv %s499
        %v501 = vmul.f32 %v498, %v500
        %v502 = vadd.f32 %v495, %v501
        %s503 = sld [smem:[#allocation3 + $0x10]]
        %v504 = vstv %s503
        %v505 = vmul.f32 %v498, %v504
        %507 = vrot.lane.b32.xlu0 %v505, 127
        %v508 = vpop.permute.xlu0 %507
        %v510 = vadd.f32 %v502, %v508
        %s511 = sld [smem:[#allocation3 + $0x14]]
        %v512 = vstv %s511
        %v513 = vmul.f32 %v498, %v512
        %515 = vrot.lane.b32.xlu0 %v513, 126
        %v516 = vpop.permute.xlu0 %515
        %v518 = vadd.f32 %v510, %v516
        %s519 = sadd.s32 %s473, 2
        %s520 = scalar_lea.vmem [#allocation2], %s519
        %v521 = vld [vmem:[%s520] sm:$0xff]
        %s522 = sld [smem:[#allocation3 + $0x18]]
        %v523 = vstv %s522
        %v524 = vmul.f32 %v521, %v523
        %v525 = vadd.f32 %v518, %v524
        %s526 = sld [smem:[#allocation3 + $0x1c]]
        %v527 = vstv %s526
        %v528 = vmul.f32 %v521, %v527
        %530 = vrot.lane.b32.xlu0 %v528, 127
        %v531 = vpop.permute.xlu0 %530
        %v533 = vadd.f32 %v525, %v531
        %s534 = sld [smem:[#allocation3 + $0x20]]
        %v535 = vstv %s534
        %v536 = vmul.f32 %v521, %v535
        %538 = vrot.lane.b32.xlu0 %v536, 126
        %v539 = vpop.permute.xlu0 %538
        %v541 = vadd.f32 %v533, %v539
        %s542 = sadd.s32 %s473, 24
        %s543 = scalar_lea.vmem [#allocation2], %s542
        %v544 = vld [vmem:[%s543] sm:$0xff]
        %s545 = sld [smem:[#allocation3 + $0x1]]
        %v546 = vstv %s545
        %v547 = vmul.f32 %v544, %v546
        %v548 = vadd.f32 %v547, 0.0
        %s549 = sld [smem:[#allocation3 + $0x5]]
        %v550 = vstv %s549
        %v551 = vmul.f32 %v544, %v550
        %553 = vrot.lane.b32.xlu0 %v551, 127
        %v554 = vpop.permute.xlu0 %553
        %v556 = vadd.f32 %v548, %v554
        %s557 = sld [smem:[#allocation3 + $0x9]]
        %v558 = vstv %s557
        %v559 = vmul.f32 %v544, %v558
        %561 = vrot.lane.b32.xlu0 %v559, 126
        %v562 = vpop.permute.xlu0 %561
        %v564 = vadd.f32 %v556, %v562
        %s565 = sadd.s32 %s496, 24
        %s566 = scalar_lea.vmem [#allocation2], %s565
        %v567 = vld [vmem:[%s566] sm:$0xff]
        %s568 = sld [smem:[#allocation3 + $0xd]]
        %v569 = vstv %s568
        %v570 = vmul.f32 %v567, %v569
        %v571 = vadd.f32 %v564, %v570
        %s572 = sld [smem:[#allocation3 + $0x11]]
        %v573 = vstv %s572
        %v574 = vmul.f32 %v567, %v573
        %576 = vrot.lane.b32.xlu0 %v574, 127
        %v577 = vpop.permute.xlu0 %576
        %v579 = vadd.f32 %v571, %v577
        %s580 = sld [smem:[#allocation3 + $0x15]]
        %v581 = vstv %s580
        %v582 = vmul.f32 %v567, %v581
        %584 = vrot.lane.b32.xlu0 %v582, 126
        %v585 = vpop.permute.xlu0 %584
        %v587 = vadd.f32 %v579, %v585
        %s588 = sadd.s32 %s519, 24
        %s589 = scalar_lea.vmem [#allocation2], %s588
        %v590 = vld [vmem:[%s589] sm:$0xff]
        %s591 = sld [smem:[#allocation3 + $0x19]]
        %v592 = vstv %s591
        %v593 = vmul.f32 %v590, %v592
        %v594 = vadd.f32 %v587, %v593
        %s595 = sld [smem:[#allocation3 + $0x1d]]
        %v596 = vstv %s595
        %v597 = vmul.f32 %v590, %v596
        %599 = vrot.lane.b32.xlu0 %v597, 127
        %v600 = vpop.permute.xlu0 %599
        %v602 = vadd.f32 %v594, %v600
        %s603 = sld [smem:[#allocation3 + $0x21]]
        %v604 = vstv %s603
        %v605 = vmul.f32 %v590, %v604
        %607 = vrot.lane.b32.xlu0 %v605, 126
        %v608 = vpop.permute.xlu0 %607
        %v610 = vadd.f32 %v602, %v608
        %s611 = sadd.s32 %s473, 48
        %s612 = scalar_lea.vmem [#allocation2], %s611
        %v613 = vld [vmem:[%s612] sm:$0xff]
        %s614 = sld [smem:[#allocation3 + $0x2]]
        %v615 = vstv %s614
        %v616 = vmul.f32 %v613, %v615
        %v617 = vadd.f32 %v616, 0.0
        %s618 = sld [smem:[#allocation3 + $0x6]]
        %v619 = vstv %s618
        %v620 = vmul.f32 %v613, %v619
        %622 = vrot.lane.b32.xlu0 %v620, 127
        %v623 = vpop.permute.xlu0 %622
        %v625 = vadd.f32 %v617, %v623
        %s626 = sld [smem:[#allocation3 + $0xa]]
        %v627 = vstv %s626
        %v628 = vmul.f32 %v613, %v627
        %630 = vrot.lane.b32.xlu0 %v628, 126
        %v631 = vpop.permute.xlu0 %630
        %v633 = vadd.f32 %v625, %v631
        %s634 = sadd.s32 %s496, 48
        %s635 = scalar_lea.vmem [#allocation2], %s634
        %v636 = vld [vmem:[%s635] sm:$0xff]
        %s637 = sld [smem:[#allocation3 + $0xe]]
        %v638 = vstv %s637
        %v639 = vmul.f32 %v636, %v638
        %v640 = vadd.f32 %v633, %v639
        %s641 = sld [smem:[#allocation3 + $0x12]]
        %v642 = vstv %s641
        %v643 = vmul.f32 %v636, %v642
        %645 = vrot.lane.b32.xlu0 %v643, 127
        %v646 = vpop.permute.xlu0 %645
        %v648 = vadd.f32 %v640, %v646
        %s649 = sld [smem:[#allocation3 + $0x16]]
        %v650 = vstv %s649
        %v651 = vmul.f32 %v636, %v650
        %653 = vrot.lane.b32.xlu0 %v651, 126
        %v654 = vpop.permute.xlu0 %653
        %v656 = vadd.f32 %v648, %v654
        %s657 = sadd.s32 %s519, 48
        %s658 = scalar_lea.vmem [#allocation2], %s657
        %v659 = vld [vmem:[%s658] sm:$0xff]
        %s660 = sld [smem:[#allocation3 + $0x1a]]
        %v661 = vstv %s660
        %v662 = vmul.f32 %v659, %v661
        %v663 = vadd.f32 %v656, %v662
        %s664 = sld [smem:[#allocation3 + $0x1e]]
        %v665 = vstv %s664
        %v666 = vmul.f32 %v659, %v665
        %668 = vrot.lane.b32.xlu0 %v666, 127
        %v669 = vpop.permute.xlu0 %668
        %v671 = vadd.f32 %v663, %v669
        %s672 = sld [smem:[#allocation3 + $0x22]]
        %v673 = vstv %s672
        %v674 = vmul.f32 %v659, %v673
        %676 = vrot.lane.b32.xlu0 %v674, 126
        %v677 = vpop.permute.xlu0 %676
        %v679 = vadd.f32 %v671, %v677
        %s680 = sadd.s32 %s473, 72
        %s681 = scalar_lea.vmem [#allocation2], %s680
        %v682 = vld [vmem:[%s681] sm:$0xff]
        %s683 = sld [smem:[#allocation3 + $0x3]]
        %v684 = vstv %s683
        %v685 = vmul.f32 %v682, %v684
        %v686 = vadd.f32 %v685, 0.0
        %s687 = sld [smem:[#allocation3 + $0x7]]
        %v688 = vstv %s687
        %v689 = vmul.f32 %v682, %v688
        %691 = vrot.lane.b32.xlu0 %v689, 127
        %v692 = vpop.permute.xlu0 %691
        %v694 = vadd.f32 %v686, %v692
        %s695 = sld [smem:[#allocation3 + $0xb]]
        %v696 = vstv %s695
        %v697 = vmul.f32 %v682, %v696
        %699 = vrot.lane.b32.xlu0 %v697, 126
        %v700 = vpop.permute.xlu0 %699
        %v702 = vadd.f32 %v694, %v700
        %s703 = sadd.s32 %s496, 72
        %s704 = scalar_lea.vmem [#allocation2], %s703
        %v705 = vld [vmem:[%s704] sm:$0xff]
        %s706 = sld [smem:[#allocation3 + $0xf]]
        %v707 = vstv %s706
        %v708 = vmul.f32 %v705, %v707
        %v709 = vadd.f32 %v702, %v708
        %s710 = sld [smem:[#allocation3 + $0x13]]
        %v711 = vstv %s710
        %v712 = vmul.f32 %v705, %v711
        %714 = vrot.lane.b32.xlu0 %v712, 127
        %v715 = vpop.permute.xlu0 %714
        %v717 = vadd.f32 %v709, %v715
        %s718 = sld [smem:[#allocation3 + $0x17]]
        %v719 = vstv %s718
        %v720 = vmul.f32 %v705, %v719
        %722 = vrot.lane.b32.xlu0 %v720, 126
        %v723 = vpop.permute.xlu0 %722
        %v725 = vadd.f32 %v717, %v723
        %s726 = sadd.s32 %s519, 72
        %s727 = scalar_lea.vmem [#allocation2], %s726
        %v728 = vld [vmem:[%s727] sm:$0xff]
        %s729 = sld [smem:[#allocation3 + $0x1b]]
        %v730 = vstv %s729
        %v731 = vmul.f32 %v728, %v730
        %v732 = vadd.f32 %v725, %v731
        %s733 = sld [smem:[#allocation3 + $0x1f]]
        %v734 = vstv %s733
        %v735 = vmul.f32 %v728, %v734
        %737 = vrot.lane.b32.xlu0 %v735, 127
        %v738 = vpop.permute.xlu0 %737
        %v740 = vadd.f32 %v732, %v738
        %s741 = sld [smem:[#allocation3 + $0x23]]
        %v742 = vstv %s741
        %v743 = vmul.f32 %v728, %v742
        %745 = vrot.lane.b32.xlu0 %v743, 126
        %v746 = vpop.permute.xlu0 %745
        %v748 = vadd.f32 %v740, %v746
        // Predicated region
        $region61: #{sepconv_forward.4} parent=39 // pred_check
          %p749 = pneg %p360
        $region62: #{sepconv_forward.4} parent=39 // pred_check_branch
          %751 = sbr.rel (%p749) target = $region64
        $region63: #{sepconv_forward.4} parent=39 // pred_region
          %vm752 = vcmask 130048
          %753 = vst.msk [vmem:[%s355] sm:$0xff] %vm752, 0.0
          %754 = vst.msk [vmem:[%s359] sm:$0xff] %vm752, 0.0
        $region64: #{sepconv_forward.4} parent=39 // pred_fallthru
          _
        %s755 = sld [smem:[#allocation5]]
        %v756 = vstv %s755
        %v757 = vmul.f32 %v541, %v756
        %s758 = sld [smem:[#allocation5 + $0x8]]
        %v759 = vstv %s758
        %v760 = vmul.f32 %v610, %v759
        %v761 = vadd.f32 %v757, %v760
        %s762 = sld [smem:[#allocation5 + $0x10]]
        %v763 = vstv %s762
        %v764 = vmul.f32 %v679, %v763
        %v765 = vadd.f32 %v761, %v764
        %s766 = sld [smem:[#allocation5 + $0x18]]
        %v767 = vstv %s766
        %v768 = vmul.f32 %v748, %v767
        %v769 = vadd.f32 %v765, %v768
        %vm770 = vcmask 130048
        %771 = vst.msk [vmem:[%s334] sm:$0xff] %vm770, %v769
        %v772 = vld [vmem:[%s355] sm:$0x1]
        %v773 = vsel %vm770, %v769, 0.0
        %v774 = vrot.slane %v773, 4
        %v775 = vadd.f32 %v773, %v774
        %v776 = vrot.slane %v775, 2
        %v777 = vadd.f32 %v775, %v776
        %v778 = vrot.slane %v777, 1
        %v779 = vadd.f32 %v777, %v778
        %v780 = vadd.f32 %v772, %v779
        %vm781 = vcmask 122880
        %782 = vst.msk [vmem:[%s355] sm:$0x1] %vm781, %v780
        %v783 = vld [vmem:[%s359] sm:$0x1]
        %v784 = vmul.f32 %v769, %v769
        %v785 = vsel %vm770, %v784, 0.0
        %v786 = vrot.slane %v785, 4
        %v787 = vadd.f32 %v785, %v786
        %v788 = vrot.slane %v787, 2
        %v789 = vadd.f32 %v787, %v788
        %v790 = vrot.slane %v789, 1
        %v791 = vadd.f32 %v789, %v790
        %v792 = vadd.f32 %v783, %v791
        %793 = vst.msk [vmem:[%s359] sm:$0x1] %vm781, %v792
        %s794 = sld [smem:[#allocation5 + $0x1]]
        %v795 = vstv %s794
        %v796 = vmul.f32 %v541, %v795
        %s797 = sld [smem:[#allocation5 + $0x9]]
        %v798 = vstv %s797
        %v799 = vmul.f32 %v610, %v798
        %v800 = vadd.f32 %v796, %v799
        %s801 = sld [smem:[#allocation5 + $0x11]]
        %v802 = vstv %s801
        %v803 = vmul.f32 %v679, %v802
        %v804 = vadd.f32 %v800, %v803
        %s805 = sld [smem:[#allocation5 + $0x19]]
        %v806 = vstv %s805
        %v807 = vmul.f32 %v748, %v806
        %v808 = vadd.f32 %v804, %v807
        %s809 = scalar_lea.vmem %s334, 8 [#allocation10]
        %810 = vst.msk [vmem:[%s809] sm:$0xff] %vm770, %v808
        %v811 = vld [vmem:[%s355 + $0x1] sm:$0x1]
        %v812 = vsel %vm770, %v808, 0.0
        %v813 = vrot.slane %v812, 4
        %v814 = vadd.f32 %v812, %v813
        %v815 = vrot.slane %v814, 2
        %v816 = vadd.f32 %v814, %v815
        %v817 = vrot.slane %v816, 1
        %v818 = vadd.f32 %v816, %v817
        %v819 = vadd.f32 %v811, %v818
        %820 = vst.msk [vmem:[%s355 + $0x1] sm:$0x1] %vm781, %v819
        %v821 = vld [vmem:[%s359 + $0x1] sm:$0x1]
        %v822 = vmul.f32 %v808, %v808
        %v823 = vsel %vm770, %v822, 0.0
        %v824 = vrot.slane %v823, 4
        %v825 = vadd.f32 %v823, %v824
        %v826 = vrot.slane %v825, 2
        %v827 = vadd.f32 %v825, %v826
        %v828 = vrot.slane %v827, 1
        %v829 = vadd.f32 %v827, %v828
        %v830 = vadd.f32 %v821, %v829
        %831 = vst.msk [vmem:[%s359 + $0x1] sm:$0x1] %vm781, %v830
        %s832 = sld [smem:[#allocation5 + $0x2]]
        %v833 = vstv %s832
        %v834 = vmul.f32 %v541, %v833
        %s835 = sld [smem:[#allocation5 + $0xa]]
        %v836 = vstv %s835
        %v837 = vmul.f32 %v610, %v836
        %v838 = vadd.f32 %v834, %v837
        %s839 = sld [smem:[#allocation5 + $0x12]]
        %v840 = vstv %s839
        %v841 = vmul.f32 %v679, %v840
        %v842 = vadd.f32 %v838, %v841
        %s843 = sld [smem:[#allocation5 + $0x1a]]
        %v844 = vstv %s843
        %v845 = vmul.f32 %v748, %v844
        %v846 = vadd.f32 %v842, %v845
        %s847 = scalar_lea.vmem %s334, 16 [#allocation10]
        %848 = vst.msk [vmem:[%s847] sm:$0xff] %vm770, %v846
        %v849 = vld [vmem:[%s355 + $0x2] sm:$0x1]
        %v850 = vsel %vm770, %v846, 0.0
        %v851 = vrot.slane %v850, 4
        %v852 = vadd.f32 %v850, %v851
        %v853 = vrot.slane %v852, 2
        %v854 = vadd.f32 %v852, %v853
        %v855 = vrot.slane %v854, 1
        %v856 = vadd.f32 %v854, %v855
        %v857 = vadd.f32 %v849, %v856
        %858 = vst.msk [vmem:[%s355 + $0x2] sm:$0x1] %vm781, %v857
        %v859 = vld [vmem:[%s359 + $0x2] sm:$0x1]
        %v860 = vmul.f32 %v846, %v846
        %v861 = vsel %vm770, %v860, 0.0
        %v862 = vrot.slane %v861, 4
        %v863 = vadd.f32 %v861, %v862
        %v864 = vrot.slane %v863, 2
        %v865 = vadd.f32 %v863, %v864
        %v866 = vrot.slane %v865, 1
        %v867 = vadd.f32 %v865, %v866
        %v868 = vadd.f32 %v859, %v867
        %869 = vst.msk [vmem:[%s359 + $0x2] sm:$0x1] %vm781, %v868
        %s870 = sld [smem:[#allocation5 + $0x3]]
        %v871 = vstv %s870
        %v872 = vmul.f32 %v541, %v871
        %s873 = sld [smem:[#allocation5 + $0xb]]
        %v874 = vstv %s873
        %v875 = vmul.f32 %v610, %v874
        %v876 = vadd.f32 %v872, %v875
        %s877 = sld [smem:[#allocation5 + $0x13]]
        %v878 = vstv %s877
        %v879 = vmul.f32 %v679, %v878
        %v880 = vadd.f32 %v876, %v879
        %s881 = sld [smem:[#allocation5 + $0x1b]]
        %v882 = vstv %s881
        %v883 = vmul.f32 %v748, %v882
        %v884 = vadd.f32 %v880, %v883
        %s885 = scalar_lea.vmem %s334, 24 [#allocation10]
        %886 = vst.msk [vmem:[%s885] sm:$0xff] %vm770, %v884
        %v887 = vld [vmem:[%s355 + $0x3] sm:$0x1]
        %v888 = vsel %vm770, %v884, 0.0
        %v889 = vrot.slane %v888, 4
        %v890 = vadd.f32 %v888, %v889
        %v891 = vrot.slane %v890, 2
        %v892 = vadd.f32 %v890, %v891
        %v893 = vrot.slane %v892, 1
        %v894 = vadd.f32 %v892, %v893
        %v895 = vadd.f32 %v887, %v894
        %896 = vst.msk [vmem:[%s355 + $0x3] sm:$0x1] %vm781, %v895
        %v897 = vld [vmem:[%s359 + $0x3] sm:$0x1]
        %v898 = vmul.f32 %v884, %v884
        %v899 = vsel %vm770, %v898, 0.0
        %v900 = vrot.slane %v899, 4
        %v901 = vadd.f32 %v899, %v900
        %v902 = vrot.slane %v901, 2
        %v903 = vadd.f32 %v901, %v902
        %v904 = vrot.slane %v903, 1
        %v905 = vadd.f32 %v903, %v904
        %v906 = vadd.f32 %v897, %v905
        %907 = vst.msk [vmem:[%s359 + $0x3] sm:$0x1] %vm781, %v906
        %s908 = sld [smem:[#allocation5 + $0x4]]
        %v909 = vstv %s908
        %v910 = vmul.f32 %v541, %v909
        %s911 = sld [smem:[#allocation5 + $0xc]]
        %v912 = vstv %s911
        %v913 = vmul.f32 %v610, %v912
        %v914 = vadd.f32 %v910, %v913
        %s915 = sld [smem:[#allocation5 + $0x14]]
        %v916 = vstv %s915
        %v917 = vmul.f32 %v679, %v916
        %v918 = vadd.f32 %v914, %v917
        %s919 = sld [smem:[#allocation5 + $0x1c]]
        %v920 = vstv %s919
        %v921 = vmul.f32 %v748, %v920
        %v922 = vadd.f32 %v918, %v921
        %s923 = scalar_lea.vmem %s334, 32 [#allocation10]
        %924 = vst.msk [vmem:[%s923] sm:$0xff] %vm770, %v922
        %v925 = vld [vmem:[%s355 + $0x4] sm:$0x1]
        %v926 = vsel %vm770, %v922, 0.0
        %v927 = vrot.slane %v926, 4
        %v928 = vadd.f32 %v926, %v927
        %v929 = vrot.slane %v928, 2
        %v930 = vadd.f32 %v928, %v929
        %v931 = vrot.slane %v930, 1
        %v932 = vadd.f32 %v930, %v931
        %v933 = vadd.f32 %v925, %v932
        %934 = vst.msk [vmem:[%s355 + $0x4] sm:$0x1] %vm781, %v933
        %v935 = vld [vmem:[%s359 + $0x4] sm:$0x1]
        %v936 = vmul.f32 %v922, %v922
        %v937 = vsel %vm770, %v936, 0.0
        %v938 = vrot.slane %v937, 4
        %v939 = vadd.f32 %v937, %v938
        %v940 = vrot.slane %v939, 2
        %v941 = vadd.f32 %v939, %v940
        %v942 = vrot.slane %v941, 1
        %v943 = vadd.f32 %v941, %v942
        %v944 = vadd.f32 %v935, %v943
        %945 = vst.msk [vmem:[%s359 + $0x4] sm:$0x1] %vm781, %v944
        %s946 = sld [smem:[#allocation5 + $0x5]]
        %v947 = vstv %s946
        %v948 = vmul.f32 %v541, %v947
        %s949 = sld [smem:[#allocation5 + $0xd]]
        %v950 = vstv %s949
        %v951 = vmul.f32 %v610, %v950
        %v952 = vadd.f32 %v948, %v951
        %s953 = sld [smem:[#allocation5 + $0x15]]
        %v954 = vstv %s953
        %v955 = vmul.f32 %v679, %v954
        %v956 = vadd.f32 %v952, %v955
        %s957 = sld [smem:[#allocation5 + $0x1d]]
        %v958 = vstv %s957
        %v959 = vmul.f32 %v748, %v958
        %v960 = vadd.f32 %v956, %v959
        %s961 = scalar_lea.vmem %s334, 40 [#allocation10]
        %962 = vst.msk [vmem:[%s961] sm:$0xff] %vm770, %v960
        %v963 = vld [vmem:[%s355 + $0x5] sm:$0x1]
        %v964 = vsel %vm770, %v960, 0.0
        %v965 = vrot.slane %v964, 4
        %v966 = vadd.f32 %v964, %v965
        %v967 = vrot.slane %v966, 2
        %v968 = vadd.f32 %v966, %v967
        %v969 = vrot.slane %v968, 1
        %v970 = vadd.f32 %v968, %v969
        %v971 = vadd.f32 %v963, %v970
        %972 = vst.msk [vmem:[%s355 + $0x5] sm:$0x1] %vm781, %v971
        %v973 = vld [vmem:[%s359 + $0x5] sm:$0x1]
        %v974 = vmul.f32 %v960, %v960
        %v975 = vsel %vm770, %v974, 0.0
        %v976 = vrot.slane %v975, 4
        %v977 = vadd.f32 %v975, %v976
        %v978 = vrot.slane %v977, 2
        %v979 = vadd.f32 %v977, %v978
        %v980 = vrot.slane %v979, 1
        %v981 = vadd.f32 %v979, %v980
        %v982 = vadd.f32 %v973, %v981
        %983 = vst.msk [vmem:[%s359 + $0x5] sm:$0x1] %vm781, %v982
        %s984 = sld [smem:[#allocation5 + $0x6]]
        %v985 = vstv %s984
        %v986 = vmul.f32 %v541, %v985
        %s987 = sld [smem:[#allocation5 + $0xe]]
        %v988 = vstv %s987
        %v989 = vmul.f32 %v610, %v988
        %v990 = vadd.f32 %v986, %v989
        %s991 = sld [smem:[#allocation5 + $0x16]]
        %v992 = vstv %s991
        %v993 = vmul.f32 %v679, %v992
        %v994 = vadd.f32 %v990, %v993
        %s995 = sld [smem:[#allocation5 + $0x1e]]
        %v996 = vstv %s995
        %v997 = vmul.f32 %v748, %v996
        %v998 = vadd.f32 %v994, %v997
        %s999 = scalar_lea.vmem %s334, 48 [#allocation10]
        %1000 = vst.msk [vmem:[%s999] sm:$0xff] %vm770, %v998
        %v1001 = vld [vmem:[%s355 + $0x6] sm:$0x1]
        %v1002 = vsel %vm770, %v998, 0.0
        %v1003 = vrot.slane %v1002, 4
        %v1004 = vadd.f32 %v1002, %v1003
        %v1005 = vrot.slane %v1004, 2
        %v1006 = vadd.f32 %v1004, %v1005
        %v1007 = vrot.slane %v1006, 1
        %v1008 = vadd.f32 %v1006, %v1007
        %v1009 = vadd.f32 %v1001, %v1008
        %1010 = vst.msk [vmem:[%s355 + $0x6] sm:$0x1] %vm781, %v1009
        %v1011 = vld [vmem:[%s359 + $0x6] sm:$0x1]
        %v1012 = vmul.f32 %v998, %v998
        %v1013 = vsel %vm770, %v1012, 0.0
        %v1014 = vrot.slane %v1013, 4
        %v1015 = vadd.f32 %v1013, %v1014
        %v1016 = vrot.slane %v1015, 2
        %v1017 = vadd.f32 %v1015, %v1016
        %v1018 = vrot.slane %v1017, 1
        %v1019 = vadd.f32 %v1017, %v1018
        %v1020 = vadd.f32 %v1011, %v1019
        %1021 = vst.msk [vmem:[%s359 + $0x6] sm:$0x1] %vm781, %v1020
        %s1022 = sld [smem:[#allocation5 + $0x7]]
        %v1023 = vstv %s1022
        %v1024 = vmul.f32 %v541, %v1023
        %s1025 = sld [smem:[#allocation5 + $0xf]]
        %v1026 = vstv %s1025
        %v1027 = vmul.f32 %v610, %v1026
        %v1028 = vadd.f32 %v1024, %v1027
        %s1029 = sld [smem:[#allocation5 + $0x17]]
        %v1030 = vstv %s1029
        %v1031 = vmul.f32 %v679, %v1030
        %v1032 = vadd.f32 %v1028, %v1031
        %s1033 = sld [smem:[#allocation5 + $0x1f]]
        %v1034 = vstv %s1033
        %v1035 = vmul.f32 %v748, %v1034
        %v1036 = vadd.f32 %v1032, %v1035
        %s1037 = scalar_lea.vmem %s334, 56 [#allocation10]
        %1038 = vst.msk [vmem:[%s1037] sm:$0xff] %vm770, %v1036
        %v1039 = vld [vmem:[%s355 + $0x7] sm:$0x1]
        %v1040 = vsel %vm770, %v1036, 0.0
        %v1041 = vrot.slane %v1040, 4
        %v1042 = vadd.f32 %v1040, %v1041
        %v1043 = vrot.slane %v1042, 2
        %v1044 = vadd.f32 %v1042, %v1043
        %v1045 = vrot.slane %v1044, 1
        %v1046 = vadd.f32 %v1044, %v1045
        %v1047 = vadd.f32 %v1039, %v1046
        %1048 = vst.msk [vmem:[%s355 + $0x7] sm:$0x1] %vm781, %v1047
        %v1049 = vld [vmem:[%s359 + $0x7] sm:$0x1]
        %v1050 = vmul.f32 %v1036, %v1036
        %v1051 = vsel %vm770, %v1050, 0.0
        %v1052 = vrot.slane %v1051, 4
        %v1053 = vadd.f32 %v1051, %v1052
        %v1054 = vrot.slane %v1053, 2
        %v1055 = vadd.f32 %v1053, %v1054
        %v1056 = vrot.slane %v1055, 1
        %v1057 = vadd.f32 %v1055, %v1056
        %v1058 = vadd.f32 %v1049, %v1057
        %1059 = vst.msk [vmem:[%s359 + $0x7] sm:$0x1] %vm781, %v1058
        %s1060 = sand.u32 %s154, 1
        %s1061 = sand.u32 %s154, 1
        %s1062 = smul.addr %s1061, 64
        %s1063 = scalar_lea.vmem [#allocation10], %s1062
        %p1064 = scmp.lt.s32.totalorder %s26, 1
        %s1065 = scalar_select %p1064, %s26, 1
        %s1066 = smul.addr %s1065, 8
        %s1067 = scalar_lea.vmem %s6, %s1066
        %p1068 = scmp.lt.s32.totalorder %s26, 1
        %s1069 = scalar_select %p1068, %s26, 1
        %s1070 = smul.addr %s1069, 8
        %s1071 = scalar_lea.vmem %s7, %s1070
        // Predicated region
        $region65: #{sepconv_forward.4} parent=39 // pred_check
          %p1072 = pneg %p164
        $region66: #{sepconv_forward.4} parent=39 // pred_check_branch
          %1074 = sbr.rel (%p1072) target = $region68
        $region67: #{sepconv_forward.4} parent=39 // pred_region
          %s1075 = smul.addr %s26, 16
          %s1076 = sadd.s32 %s27, %s1075
          %s1077 = smul.addr %s1076, 8
          %s1078 = scalar_lea.vmem %s5, %s1077
          // Predicated region
          $region69: #{sepconv_forward.4} parent=67 // pred_check
            _
          $region70: #{sepconv_forward.4} parent=67 // pred_check_branch
            %1080 = sbr.rel (0) target = $region72
          $region71: #{sepconv_forward.4} parent=67 // pred_region
            // Predicated region
            $region73: #{sepconv_forward.4} parent=71 // pred_check
              _
            $region74: #{sepconv_forward.4} parent=71 // pred_check_branch
              %1082 = sbr.rel (0) target = $region76
            $region75: #{sepconv_forward.4} parent=71 // pred_region
              // Predicated region
              $region88: #{sepconv_forward.4} parent=75 // pred_check
                _
              $region89: #{sepconv_forward.4} parent=75 // pred_check_branch
                %1112 = sbr.rel (0) target = $region91
              $region90: #{sepconv_forward.4} parent=75 // pred_region
                loop: start=0, step=1, limit=1
                $region92: #{sepconv_forward.4} parent=90 // loop_pre_header
                  _
                $region93: #{sepconv_forward.4} parent=90 // loop_header
                  %s1114 = sphi 0, %s1118
                  %p1115 = scmp.ge.s32.totalorder %s1114, 1
                  %s1119 = sphi %s1063, %s1063
                  %s1120 = sphi %s1078, %s1078
                $region94: #{sepconv_forward.4} parent=90 // loop_header_branch
                  %1117 = sbr.rel (%p1115) target = $region98
                $region95: #{sepconv_forward.4} parent=90 // loop_body
                  %v1121 = vld [vmem:[%s1119] sm:$0xff]
                  %1122 = vst [vmem:[%s1120] sm:$0xff] %v1121
                  %v1123 = vld [vmem:[%s1119 + $0x8] sm:$0xff]
                  %1124 = vst [vmem:[%s1120 + $0x10] sm:$0xff] %v1123
                  %v1125 = vld [vmem:[%s1119 + $0x10] sm:$0xff]
                  %1126 = vst [vmem:[%s1120 + $0x20] sm:$0xff] %v1125
                  %v1127 = vld [vmem:[%s1119 + $0x18] sm:$0xff]
                  %1128 = vst [vmem:[%s1120 + $0x30] sm:$0xff] %v1127
                  %v1129 = vld [vmem:[%s1119 + $0x20] sm:$0xff]
                  %1130 = vst [vmem:[%s1120 + $0x40] sm:$0xff] %v1129
                  %v1131 = vld [vmem:[%s1119 + $0x28] sm:$0xff]
                  %1132 = vst [vmem:[%s1120 + $0x50] sm:$0xff] %v1131
                  %v1133 = vld [vmem:[%s1119 + $0x30] sm:$0xff]
                  %1134 = vst [vmem:[%s1120 + $0x60] sm:$0xff] %v1133
                  %v1135 = vld [vmem:[%s1119 + $0x38] sm:$0xff]
                  %1136 = vst [vmem:[%s1120 + $0x70] sm:$0xff] %v1135
                $region96: #{sepconv_forward.4} parent=90 // loop_footer
                  %s1118 = sadd.s32 1, %s1114
                $region97: #{sepconv_forward.4} parent=90 // loop_footer_branch
                  %1113 = sbr.rel target = $region93
                $region98: #{sepconv_forward.4} parent=90 // loop_exit
                  _
              $region91: #{sepconv_forward.4} parent=75 // pred_fallthru
                _
              // Predicated region
              $region99: #{sepconv_forward.4} parent=75 // pred_check
                _
              $region100: #{sepconv_forward.4} parent=75 // pred_check_branch
                %1138 = sbr.rel target = $region102
              $region101: #{sepconv_forward.4} parent=75 // pred_region
                _
              $region102: #{sepconv_forward.4} parent=75 // pred_fallthru
                _
            $region76: #{sepconv_forward.4} parent=71 // pred_fallthru
              _
            // Predicated region
            $region77: #{sepconv_forward.4} parent=71 // pred_check
              _
            $region78: #{sepconv_forward.4} parent=71 // pred_check_branch
              %1084 = sbr.rel target = $region80
            $region79: #{sepconv_forward.4} parent=71 // pred_region
              %s1086 = ssub.s32 256, 1
              loop: start=0, step=1, limit=1
              $region81: #{sepconv_forward.4} parent=79 // loop_pre_header
                _
              $region82: #{sepconv_forward.4} parent=79 // loop_header
                %s1088 = sphi 0, %s1092
                %p1089 = scmp.ge.s32.totalorder %s1088, 1
                %s1093 = sphi %s1063, %s1063
                %s1094 = sphi %s1078, %s1078
              $region83: #{sepconv_forward.4} parent=79 // loop_header_branch
                %1091 = sbr.rel (%p1089) target = $region87
              $region84: #{sepconv_forward.4} parent=79 // loop_body
                %v1095 = vld [vmem:[%s1093] sm:%s1086]
                %1096 = vst [vmem:[%s1094] sm:%s1086] %v1095
                %v1097 = vld [vmem:[%s1093 + $0x8] sm:%s1086]
                %1098 = vst [vmem:[%s1094 + $0x10] sm:%s1086] %v1097
                %v1099 = vld [vmem:[%s1093 + $0x10] sm:%s1086]
                %1100 = vst [vmem:[%s1094 + $0x20] sm:%s1086] %v1099
                %v1101 = vld [vmem:[%s1093 + $0x18] sm:%s1086]
                %1102 = vst [vmem:[%s1094 + $0x30] sm:%s1086] %v1101
                %v1103 = vld [vmem:[%s1093 + $0x20] sm:%s1086]
                %1104 = vst [vmem:[%s1094 + $0x40] sm:%s1086] %v1103
                %v1105 = vld [vmem:[%s1093 + $0x28] sm:%s1086]
                %1106 = vst [vmem:[%s1094 + $0x50] sm:%s1086] %v1105
                %v1107 = vld [vmem:[%s1093 + $0x30] sm:%s1086]
                %1108 = vst [vmem:[%s1094 + $0x60] sm:%s1086] %v1107
                %v1109 = vld [vmem:[%s1093 + $0x38] sm:%s1086]
                %1110 = vst [vmem:[%s1094 + $0x70] sm:%s1086] %v1109
              $region85: #{sepconv_forward.4} parent=79 // loop_footer
                %s1092 = sadd.s32 1, %s1088
              $region86: #{sepconv_forward.4} parent=79 // loop_footer_branch
                %1087 = sbr.rel target = $region82
              $region87: #{sepconv_forward.4} parent=79 // loop_exit
                _
            $region80: #{sepconv_forward.4} parent=71 // pred_fallthru
              _
          $region72: #{sepconv_forward.4} parent=67 // pred_fallthru
            _
          %1139 = vnop
        $region68: #{sepconv_forward.4} parent=39 // pred_fallthru
          _
        // Predicated region
        $region103: #{sepconv_forward.4} parent=39 // pred_check
          %p1140 = pneg %p190
        $region104: #{sepconv_forward.4} parent=39 // pred_check_branch
          %1142 = sbr.rel (%p1140) target = $region106
        $region105: #{sepconv_forward.4} parent=39 // pred_region
          _
        $region106: #{sepconv_forward.4} parent=39 // pred_fallthru
          _
        // Predicated region
        $region107: #{sepconv_forward.4} parent=39 // pred_check
          %p1143 = pneg %p216
        $region108: #{sepconv_forward.4} parent=39 // pred_check_branch
          %1145 = sbr.rel (%p1143) target = $region110
        $region109: #{sepconv_forward.4} parent=39 // pred_region
          _
        $region110: #{sepconv_forward.4} parent=39 // pred_fallthru
          _
      $region40: #{sepconv_forward.4} parent=5 // pred_fallthru
        _
      %p1146 = scmp.le.s32.totalorder 2, %s17
      // Predicated region
      $region111: #{sepconv_forward.4} parent=5 // pred_check
        %p1147 = pneg %p1146
      $region112: #{sepconv_forward.4} parent=5 // pred_check_branch
        %1149 = sbr.rel (%p1147) target = $region114
      $region113: #{sepconv_forward.4} parent=5 // pred_region
        %s1150 = ssub.s32 %s17, 2
        // Predicated region
        $region115: #{sepconv_forward.4} parent=113 // pred_check
          %p1151 = pneg %p170
        $region116: #{sepconv_forward.4} parent=113 // pred_check_branch
          %1153 = sbr.rel (%p1151) target = $region118
        $region117: #{sepconv_forward.4} parent=113 // pred_region
          %s1154 = sand.u32 %s155, 1
          %s1155 = sand.u32 %s155, 1
          %s1156 = smul.addr %s1155, 64
          %s1157 = scalar_lea.vmem [#allocation10], %s1156
        $region118: #{sepconv_forward.4} parent=113 // pred_fallthru
          _
        // Predicated region
        $region119: #{sepconv_forward.4} parent=113 // pred_check
          %p1158 = pneg %p196
        $region120: #{sepconv_forward.4} parent=113 // pred_check_branch
          %1160 = sbr.rel (%p1158) target = $region122
        $region121: #{sepconv_forward.4} parent=113 // pred_region
          %p1161 = scmp.lt.s32.totalorder %s28, 1
          %s1162 = scalar_select %p1161, %s28, 1
          %s1163 = smul.addr %s1162, 8
          %s1164 = scalar_lea.vmem %s6, %s1163
        $region122: #{sepconv_forward.4} parent=113 // pred_fallthru
          _
        // Predicated region
        $region123: #{sepconv_forward.4} parent=113 // pred_check
          %p1165 = pneg %p222
        $region124: #{sepconv_forward.4} parent=113 // pred_check_branch
          %1167 = sbr.rel (%p1165) target = $region126
        $region125: #{sepconv_forward.4} parent=113 // pred_region
          %p1168 = scmp.lt.s32.totalorder %s28, 1
          %s1169 = scalar_select %p1168, %s28, 1
          %s1170 = smul.addr %s1169, 8
          %s1171 = scalar_lea.vmem %s7, %s1170
        $region126: #{sepconv_forward.4} parent=113 // pred_fallthru
          _
      $region114: #{sepconv_forward.4} parent=5 // pred_fallthru
        _
    $region6: #{sepconv_forward.4} parent=1 // loop_footer
      %s21 = sadd.s32 1, %s17
    $region7: #{sepconv_forward.4} parent=1 // loop_footer_branch
      %16 = sbr.rel target = $region3
    $region8: #{sepconv_forward.4} parent=1 // loop_exit
      _
    %1172 = vsyncpa [#allocation4], 1
    %s1173 = scalar_lea.sflag [#allocation4], 1
    %1174 = vsyncpa %s1173, 1
    %1175 = vsyncpa [#allocation6], 1
    %1176 = vsyncpa [#allocation9], 1

</llo_original>
